<compile_context>
chip_gen: v7x
topology: tpu7x:2x2x1
jax: 0.10.0
libtpu: 0.0.40
codegen_flags: <defaults>
</compile_context>

<pallas_src>
import functools

import numpy as np
import jax
import jax.numpy as jnp
from jax.experimental import pallas as pl
from jax.experimental.pallas import tpu as pltpu


def _hardswish(x):
    return x * jnp.clip(x + 3.0, 0.0, 6.0) * (1.0 / 6.0)


# ---------------------------------------------------------------------------
# Fused kernel: conv1 + BN1 + hswish -> depthwise + BN2 + hswish -> SE ->
#               conv3 + BN3 + optional residual.   One grid step per batch.
# ---------------------------------------------------------------------------
def _fused_ir_kernel(x_ref, w1_ref, s1_ref, b1_ref,
                     wd_ref, p_ref, s2_ref, b2_ref,
                     wse1_ref, bse1_ref, wse2_ref, bse2_ref,
                     w3_ref, s3_ref, b3_ref, o_ref, *, use_res):
    x = x_ref[0]                                                        # (C, HW)

    # --- conv1 (1x1) as (E,C)@(C,HW) on the MXU, + folded BN1 + Hardswish --
    y1 = jnp.dot(w1_ref[...], x, preferred_element_type=jnp.float32)    # (E, HW)
    y1 = _hardswish(y1 * s1_ref[...] + b1_ref[...])

    # --- depthwise KxK conv via per-tap shift-matrix matmuls + BN2 + hswish -
    n_taps = wd_ref.shape[1]                 # K*K (static)
    hw_out = p_ref.shape[2]                  # Ho*Wo (static)
    acc = jnp.zeros((y1.shape[0], hw_out), jnp.float32)                 # (E, HWo)
    for t in range(n_taps):
        scaled = y1 * wd_ref[:, t:t + 1]     # per-channel tap weight (E,1)
        acc = acc + jnp.dot(scaled, p_ref[t],
                            preferred_element_type=jnp.float32)
    y2 = _hardswish(acc * s2_ref[...] + b2_ref[...])                    # (E, HWo)

    # --- SqueezeExcitation: avgpool -> fc1+ReLU -> fc2+Sigmoid -> gate ------
    # Tiny FCs run on the VPU (broadcast-mul + reductions), not the MXU.
    pooled = jnp.mean(y2, axis=1, keepdims=True)                        # (E, 1)
    h = jnp.sum(wse1_ref[...] * pooled, axis=0, keepdims=True)          # (1, S)
    h = jnp.maximum(h + bse1_ref[...], 0.0)                             # ReLU
    g = jnp.sum(wse2_ref[...] * h, axis=1, keepdims=True)               # (E, 1)
    gate = jax.nn.sigmoid(g + bse2_ref[...])
    y2 = y2 * gate

    # --- conv3 (1x1) as (Cout,E)@(E,HWo) + folded BN3 + residual ------------
    out = jnp.dot(w3_ref[...], y2, preferred_element_type=jnp.float32)  # (Cout, HWo)
    out = out * s3_ref[...] + b3_ref[...]
    if use_res:
        out = out + x
    o_ref[0] = out


# ---------------------------------------------------------------------------
# Shift-matrix construction (encodes tap offset + zero padding + stride).
# (y1 @ P[t])[:, ho*Wo+wo] == y1[:, hi*W+wi] with (hi, wi) the t-th tap source,
# and 0 where the tap falls in the padding.
# ---------------------------------------------------------------------------
def _build_shift_matrices(H, W, K, stride):
    pad = (K - 1) // 2
    Ho = (H + 2 * pad - K) // stride + 1
    Wo = (W + 2 * pad - K) // stride + 1
    mats = np.zeros((K * K, H * W, Ho * Wo), np.float32)
    t = 0
    for kh in range(K):
        for kw in range(K):
            for ho in range(Ho):
                hi = ho * stride + kh - pad
                if 0 <= hi < H:
                    for wo in range(Wo):
                        wi = wo * stride + kw - pad
                        if 0 <= wi < W:
                            mats[t, hi * W + wi, ho * Wo + wo] = 1.0
            t += 1
    return mats, Ho, Wo


# ---------------------------------------------------------------------------
# Wrapper: NCHW in, NCHW out.  Single pallas_call, grid over batch.
# ---------------------------------------------------------------------------
def inverted_residual_forward(x_nchw, params, *, stride, use_res):
    N, C, H, W = x_nchw.shape
    E = params["w1"].shape[0]
    Cout = params["w3"].shape[0]
    K = params["wd"].shape[1]
    S = params["wse1"].shape[1]
    if use_res:
        assert stride == 1 and C == Cout

    pmats_np, Ho, Wo = _build_shift_matrices(H, W, K, stride)
    pmats = jnp.asarray(pmats_np)
    HW, HWo = H * W, Ho * Wo

    x2 = x_nchw.reshape(N, C, HW).astype(jnp.float32)   # free reshape (no transpose)
    wd_col = params["wd"].reshape(E, K * K)

    kern = functools.partial(_fused_ir_kernel, use_res=use_res)

    def full(shape):  # whole-array block, constant index map
        return pl.BlockSpec(shape, lambda n: (0,) * len(shape))

    out = pl.pallas_call(
        kern,
        out_shape=jax.ShapeDtypeStruct((N, Cout, HWo), jnp.float32),
        grid_spec=pltpu.PrefetchScalarGridSpec(
            num_scalar_prefetch=0,
            grid=(N,),
            in_specs=[
                pl.BlockSpec((1, C, HW), lambda n: (n, 0, 0)),   # x (also residual)
                full((E, C)),                                    # w1
                full((E, 1)), full((E, 1)),                      # s1, b1
                full((E, K * K)),                                # depthwise tap weights
                full((K * K, HW, HWo)),                          # shift matrices
                full((E, 1)), full((E, 1)),                      # s2, b2
                full((E, S)), full((1, S)),                      # wse1 (E->S), bse1
                full((E, S)), full((E, 1)),                      # wse2 (S->E), bse2
                full((Cout, E)),                                 # w3
                full((Cout, 1)), full((Cout, 1)),                # s3, b3
            ],
            out_specs=pl.BlockSpec((1, Cout, HWo), lambda n: (n, 0, 0)),
        ),
        compiler_params=pltpu.CompilerParams(
            dimension_semantics=("parallel",)),
    )(x2, params["w1"], params["s1"], params["b1"],
      wd_col, pmats, params["s2"], params["b2"],
      params["wse1"], params["bse1"], params["wse2"], params["bse2"],
      params["w3"], params["s3"], params["b3"])

    return out.reshape(N, Cout, Ho, Wo)


# ---------------------------------------------------------------------------
# Parameter construction (channel-major layout, BN folded to scale/bias cols)
# ---------------------------------------------------------------------------
def _fold_bn(gamma, beta, mean, var, eps=1e-5):
    scale = gamma / jnp.sqrt(var + eps)
    bias = beta - mean * scale
    return scale[:, None], bias[:, None]          # (C, 1) column vectors


def init_params(key, in_channels, out_channels, kernel_size, expansion, se_ratio=0.25):
    E = expansion
    S = max(1, int(E * se_ratio))
    ks = jax.random.split(key, 10)

    def bn(k, c):
        k1, k2, k3, k4 = jax.random.split(k, 4)
        gamma = jax.random.uniform(k1, (c,), jnp.float32, 0.5, 1.5)
        beta = 0.1 * jax.random.normal(k2, (c,), jnp.float32)
        mean = 0.1 * jax.random.normal(k3, (c,), jnp.float32)
        var = jax.random.uniform(k4, (c,), jnp.float32, 0.5, 1.5)
        return _fold_bn(gamma, beta, mean, var)

    p = {}
    p["w1"] = 0.2 * jax.random.normal(ks[0], (E, in_channels), jnp.float32)
    p["s1"], p["b1"] = bn(ks[1], E)
    p["wd"] = 0.2 * jax.random.normal(ks[2], (E, kernel_size, kernel_size), jnp.float32)
    p["s2"], p["b2"] = bn(ks[3], E)
    p["wse1"] = 0.2 * jax.random.normal(ks[4], (E, S), jnp.float32)   # fc1: E -> S
    p["bse1"] = 0.1 * jax.random.normal(ks[5], (1, S), jnp.float32)
    p["wse2"] = 0.2 * jax.random.normal(ks[6], (E, S), jnp.float32)   # fc2: S -> E
    p["bse2"] = 0.1 * jax.random.normal(ks[7], (E, 1), jnp.float32)
    p["w3"] = 0.2 * jax.random.normal(ks[8], (out_channels, E), jnp.float32)
    p["s3"], p["b3"] = bn(ks[9], out_channels)
    return p


# ---------------------------------------------------------------------------
# Pure-JAX reference (NCHW, exact elementwise depthwise / SE) for correctness
# ---------------------------------------------------------------------------
def reference_forward(x, params, *, stride, use_res):
    x = x.astype(jnp.float32)
    N, C, H, W = x.shape
    K = params["wd"].shape[1]
    pad = (K - 1) // 2

    out = jnp.einsum("ec,nchw->nehw", params["w1"], x)
    out = _hardswish(out * params["s1"][:, :, None] + params["b1"][:, :, None])

    xp = jnp.pad(out, ((0, 0), (0, 0), (pad, pad), (pad, pad)))
    Ho = (H + 2 * pad - K) // stride + 1
    Wo = (W + 2 * pad - K) // stride + 1
    acc = jnp.zeros((N, out.shape[1], Ho, Wo), jnp.float32)
    for kh in range(K):
        for kw in range(K):
            patch = xp[:, :, kh:kh + stride * Ho:stride, kw:kw + stride * Wo:stride]
            acc = acc + patch * params["wd"][:, kh, kw][None, :, None, None]
    out = _hardswish(acc * params["s2"][:, :, None] + params["b2"][:, :, None])

    pooled = jnp.mean(out, axis=(2, 3))                                    # (N, E)
    h = jnp.sum(pooled[:, :, None] * params["wse1"][None, :, :], axis=1)   # (N, S)
    h = jnp.maximum(h + params["bse1"], 0.0)
    g = jnp.sum(params["wse2"][None, :, :] * h[:, None, :], axis=2)        # (N, E)
    gate = jax.nn.sigmoid(g + params["bse2"][:, 0][None, :])
    out = out * gate[:, :, None, None]

    out = jnp.einsum("oe,nehw->nohw", params["w3"], out)
    out = out * params["s3"][:, :, None] + params["b3"][:, :, None]
    if use_res:
        out = out + x
    return out


if __name__ == "__main__":
    # Module config: InvertedResidual(in=8, out=8, kernel_size=3, stride=1,
    #                                 expansion=32, se_ratio=0.25)
    in_channels, out_channels = 8, 8
    kernel_size, stride, expansion = 3, 1, 32
    use_res = (stride == 1 and in_channels == out_channels)

    key = jax.random.PRNGKey(0)
    kx, kp = jax.random.split(key)
    x = jax.random.normal(kx, (2, in_channels, 16, 16), jnp.float32)   # NCHW input
    params = init_params(kp, in_channels, out_channels, kernel_size, expansion)

    out = inverted_residual_forward(x, params, stride=stride, use_res=use_res)
    out = jax.block_until_ready(out)

    ref = jax.block_until_ready(
        reference_forward(x, params, stride=stride, use_res=use_res))

    assert out.shape == ref.shape == (2, out_channels, 16, 16)
    # Tolerance covers MXU default-precision (bf16-input pass) matmuls in the
    # kernel vs. the exact-f32 elementwise depthwise math in the reference.
    assert jnp.allclose(out, ref, atol=2e-2, rtol=2e-2), (
        float(jnp.max(jnp.abs(out - ref))))
    print("KERNEL_OK")
</pallas_src>

<mosaic_0001>
module attributes {stable_mosaic.version = 11 : i64} {
  func.func @_fused_ir_kernel(%arg0: i32, %arg1: memref<1x8x256xf32, #tpu.memory_space<vmem>>, %arg2: memref<32x8xf32, #tpu.memory_space<vmem>>, %arg3: memref<32x1xf32, #tpu.memory_space<vmem>>, %arg4: memref<32x1xf32, #tpu.memory_space<vmem>>, %arg5: memref<32x9xf32, #tpu.memory_space<vmem>>, %arg6: memref<9x256x256xf32, #tpu.memory_space<vmem>>, %arg7: memref<32x1xf32, #tpu.memory_space<vmem>>, %arg8: memref<32x1xf32, #tpu.memory_space<vmem>>, %arg9: memref<32x8xf32, #tpu.memory_space<vmem>>, %arg10: memref<1x8xf32, #tpu.memory_space<vmem>>, %arg11: memref<32x8xf32, #tpu.memory_space<vmem>>, %arg12: memref<32x1xf32, #tpu.memory_space<vmem>>, %arg13: memref<8x32xf32, #tpu.memory_space<vmem>>, %arg14: memref<8x1xf32, #tpu.memory_space<vmem>>, %arg15: memref<8x1xf32, #tpu.memory_space<vmem>>, %arg16: memref<1x8x256xf32, #tpu.memory_space<vmem>>) attributes {dimension_semantics = [#tpu.dimension_semantics<parallel>], iteration_bounds = array<i64: 2>, scalar_prefetch = 0 : i64, scratch_operands = 0 : i64, tpu.core_type = #tpu.core_type<tc>, window_params = [{transform_indices = @transform_0, window_bounds = array<i64: 1, 8, 256>}, {pipeline_mode = #tpu.pipeline_mode<synchronous>, transform_indices = @transform_1, window_bounds = array<i64: 32, 8>}, {pipeline_mode = #tpu.pipeline_mode<synchronous>, transform_indices = @transform_2, window_bounds = array<i64: 32, 1>}, {pipeline_mode = #tpu.pipeline_mode<synchronous>, transform_indices = @transform_3, window_bounds = array<i64: 32, 1>}, {pipeline_mode = #tpu.pipeline_mode<synchronous>, transform_indices = @transform_4, window_bounds = array<i64: 32, 9>}, {pipeline_mode = #tpu.pipeline_mode<synchronous>, transform_indices = @transform_5, window_bounds = array<i64: 9, 256, 256>}, {pipeline_mode = #tpu.pipeline_mode<synchronous>, transform_indices = @transform_6, window_bounds = array<i64: 32, 1>}, {pipeline_mode = #tpu.pipeline_mode<synchronous>, transform_indices = @transform_7, window_bounds = array<i64: 32, 1>}, {pipeline_mode = #tpu.pipeline_mode<synchronous>, transform_indices = @transform_8, window_bounds = array<i64: 32, 8>}, {pipeline_mode = #tpu.pipeline_mode<synchronous>, transform_indices = @transform_9, window_bounds = array<i64: 1, 8>}, {pipeline_mode = #tpu.pipeline_mode<synchronous>, transform_indices = @transform_10, window_bounds = array<i64: 32, 8>}, {pipeline_mode = #tpu.pipeline_mode<synchronous>, transform_indices = @transform_11, window_bounds = array<i64: 32, 1>}, {pipeline_mode = #tpu.pipeline_mode<synchronous>, transform_indices = @transform_12, window_bounds = array<i64: 8, 32>}, {pipeline_mode = #tpu.pipeline_mode<synchronous>, transform_indices = @transform_13, window_bounds = array<i64: 8, 1>}, {pipeline_mode = #tpu.pipeline_mode<synchronous>, transform_indices = @transform_14, window_bounds = array<i64: 8, 1>}, {transform_indices = @transform_15, window_bounds = array<i64: 1, 8, 256>}]} {
    %c0 = arith.constant 0 : index
    %c0_0 = arith.constant 0 : index
    %c0_1 = arith.constant 0 : index
    %0 = vector.load %arg1[%c0, %c0_0, %c0_1] : memref<1x8x256xf32, #tpu.memory_space<vmem>>, vector<1x8x256xf32>
    %1 = vector.shape_cast %0 : vector<1x8x256xf32> to vector<8x256xf32>
    %c0_2 = arith.constant 0 : index
    %c0_3 = arith.constant 0 : index
    %2 = vector.load %arg2[%c0_2, %c0_3] : memref<32x8xf32, #tpu.memory_space<vmem>>, vector<32x8xf32>
    %cst = arith.constant dense<0.000000e+00> : vector<32x256xf32>
    %3 = tpu.matmul %2, %1, %cst {dimension_numbers = #tpu.dot_dimension_numbers<[1], [0], [0], [1], [0, 0, 1, 1], [], []>} : vector<32x8xf32>, vector<8x256xf32>, vector<32x256xf32> -> vector<32x256xf32>
    %c0_4 = arith.constant 0 : index
    %c0_5 = arith.constant 0 : index
    %4 = vector.load %arg3[%c0_4, %c0_5] : memref<32x1xf32, #tpu.memory_space<vmem>>, vector<32x1xf32>
    %5 = vector.broadcast %4 : vector<32x1xf32> to vector<32x256xf32>
    %6 = arith.mulf %3, %5 : vector<32x256xf32>
    %c0_6 = arith.constant 0 : index
    %c0_7 = arith.constant 0 : index
    %7 = vector.load %arg4[%c0_6, %c0_7] : memref<32x1xf32, #tpu.memory_space<vmem>>, vector<32x1xf32>
    %8 = vector.broadcast %7 : vector<32x1xf32> to vector<32x256xf32>
    %9 = arith.addf %6, %8 : vector<32x256xf32>
    %cst_8 = arith.constant 3.000000e+00 : f32
    %10 = vector.broadcast %cst_8 : f32 to vector<32x256xf32>
    %11 = arith.addf %9, %10 : vector<32x256xf32>
    %cst_9 = arith.constant 0.000000e+00 : f32
    %cst_10 = arith.constant 6.000000e+00 : f32
    %12 = vector.broadcast %cst_9 : f32 to vector<32x256xf32>
    %13 = arith.maximumf %12, %11 : vector<32x256xf32>
    %14 = vector.broadcast %cst_10 : f32 to vector<32x256xf32>
    %15 = arith.minimumf %14, %13 : vector<32x256xf32>
    %16 = arith.mulf %9, %15 : vector<32x256xf32>
    %cst_11 = arith.constant 0.166666672 : f32
    %17 = vector.broadcast %cst_11 : f32 to vector<32x256xf32>
    %18 = arith.mulf %16, %17 : vector<32x256xf32>
    %cst_12 = arith.constant 0.000000e+00 : f32
    %19 = vector.broadcast %cst_12 : f32 to vector<32x256xf32>
    %c0_13 = arith.constant 0 : index
    %c0_14 = arith.constant 0 : index
    %20 = vector.load %arg5[%c0_13, %c0_14] : memref<32x9xf32, #tpu.memory_space<vmem>>, vector<32x1xf32>
    %21 = vector.broadcast %20 : vector<32x1xf32> to vector<32x256xf32>
    %22 = arith.mulf %18, %21 : vector<32x256xf32>
    %c0_15 = arith.constant 0 : index
    %c0_16 = arith.constant 0 : index
    %c0_17 = arith.constant 0 : index
    %23 = vector.load %arg6[%c0_15, %c0_16, %c0_17] : memref<9x256x256xf32, #tpu.memory_space<vmem>>, vector<1x256x256xf32>
    %24 = vector.shape_cast %23 : vector<1x256x256xf32> to vector<256x256xf32>
    %cst_18 = arith.constant dense<0.000000e+00> : vector<32x256xf32>
    %25 = tpu.matmul %22, %24, %cst_18 {dimension_numbers = #tpu.dot_dimension_numbers<[1], [0], [0], [1], [0, 0, 1, 1], [], []>} : vector<32x256xf32>, vector<256x256xf32>, vector<32x256xf32> -> vector<32x256xf32>
    %26 = arith.addf %19, %25 : vector<32x256xf32>
    %c0_19 = arith.constant 0 : index
    %c1 = arith.constant 1 : index
    %27 = vector.load %arg5[%c0_19, %c1] : memref<32x9xf32, #tpu.memory_space<vmem>>, vector<32x1xf32>
    %28 = vector.broadcast %27 : vector<32x1xf32> to vector<32x256xf32>
    %29 = arith.mulf %18, %28 : vector<32x256xf32>
    %c1_20 = arith.constant 1 : index
    %c0_21 = arith.constant 0 : index
    %c0_22 = arith.constant 0 : index
    %30 = vector.load %arg6[%c1_20, %c0_21, %c0_22] : memref<9x256x256xf32, #tpu.memory_space<vmem>>, vector<1x256x256xf32>
    %31 = vector.shape_cast %30 : vector<1x256x256xf32> to vector<256x256xf32>
    %cst_23 = arith.constant dense<0.000000e+00> : vector<32x256xf32>
    %32 = tpu.matmul %29, %31, %cst_23 {dimension_numbers = #tpu.dot_dimension_numbers<[1], [0], [0], [1], [0, 0, 1, 1], [], []>} : vector<32x256xf32>, vector<256x256xf32>, vector<32x256xf32> -> vector<32x256xf32>
    %33 = arith.addf %26, %32 : vector<32x256xf32>
    %c0_24 = arith.constant 0 : index
    %c2 = arith.constant 2 : index
    %34 = vector.load %arg5[%c0_24, %c2] : memref<32x9xf32, #tpu.memory_space<vmem>>, vector<32x1xf32>
    %35 = vector.broadcast %34 : vector<32x1xf32> to vector<32x256xf32>
    %36 = arith.mulf %18, %35 : vector<32x256xf32>
    %c2_25 = arith.constant 2 : index
    %c0_26 = arith.constant 0 : index
    %c0_27 = arith.constant 0 : index
    %37 = vector.load %arg6[%c2_25, %c0_26, %c0_27] : memref<9x256x256xf32, #tpu.memory_space<vmem>>, vector<1x256x256xf32>
    %38 = vector.shape_cast %37 : vector<1x256x256xf32> to vector<256x256xf32>
    %cst_28 = arith.constant dense<0.000000e+00> : vector<32x256xf32>
    %39 = tpu.matmul %36, %38, %cst_28 {dimension_numbers = #tpu.dot_dimension_numbers<[1], [0], [0], [1], [0, 0, 1, 1], [], []>} : vector<32x256xf32>, vector<256x256xf32>, vector<32x256xf32> -> vector<32x256xf32>
    %40 = arith.addf %33, %39 : vector<32x256xf32>
    %c0_29 = arith.constant 0 : index
    %c3 = arith.constant 3 : index
    %41 = vector.load %arg5[%c0_29, %c3] : memref<32x9xf32, #tpu.memory_space<vmem>>, vector<32x1xf32>
    %42 = vector.broadcast %41 : vector<32x1xf32> to vector<32x256xf32>
    %43 = arith.mulf %18, %42 : vector<32x256xf32>
    %c3_30 = arith.constant 3 : index
    %c0_31 = arith.constant 0 : index
    %c0_32 = arith.constant 0 : index
    %44 = vector.load %arg6[%c3_30, %c0_31, %c0_32] : memref<9x256x256xf32, #tpu.memory_space<vmem>>, vector<1x256x256xf32>
    %45 = vector.shape_cast %44 : vector<1x256x256xf32> to vector<256x256xf32>
    %cst_33 = arith.constant dense<0.000000e+00> : vector<32x256xf32>
    %46 = tpu.matmul %43, %45, %cst_33 {dimension_numbers = #tpu.dot_dimension_numbers<[1], [0], [0], [1], [0, 0, 1, 1], [], []>} : vector<32x256xf32>, vector<256x256xf32>, vector<32x256xf32> -> vector<32x256xf32>
    %47 = arith.addf %40, %46 : vector<32x256xf32>
    %c0_34 = arith.constant 0 : index
    %c4 = arith.constant 4 : index
    %48 = vector.load %arg5[%c0_34, %c4] : memref<32x9xf32, #tpu.memory_space<vmem>>, vector<32x1xf32>
    %49 = vector.broadcast %48 : vector<32x1xf32> to vector<32x256xf32>
    %50 = arith.mulf %18, %49 : vector<32x256xf32>
    %c4_35 = arith.constant 4 : index
    %c0_36 = arith.constant 0 : index
    %c0_37 = arith.constant 0 : index
    %51 = vector.load %arg6[%c4_35, %c0_36, %c0_37] : memref<9x256x256xf32, #tpu.memory_space<vmem>>, vector<1x256x256xf32>
    %52 = vector.shape_cast %51 : vector<1x256x256xf32> to vector<256x256xf32>
    %cst_38 = arith.constant dense<0.000000e+00> : vector<32x256xf32>
    %53 = tpu.matmul %50, %52, %cst_38 {dimension_numbers = #tpu.dot_dimension_numbers<[1], [0], [0], [1], [0, 0, 1, 1], [], []>} : vector<32x256xf32>, vector<256x256xf32>, vector<32x256xf32> -> vector<32x256xf32>
    %54 = arith.addf %47, %53 : vector<32x256xf32>
    %c0_39 = arith.constant 0 : index
    %c5 = arith.constant 5 : index
    %55 = vector.load %arg5[%c0_39, %c5] : memref<32x9xf32, #tpu.memory_space<vmem>>, vector<32x1xf32>
    %56 = vector.broadcast %55 : vector<32x1xf32> to vector<32x256xf32>
    %57 = arith.mulf %18, %56 : vector<32x256xf32>
    %c5_40 = arith.constant 5 : index
    %c0_41 = arith.constant 0 : index
    %c0_42 = arith.constant 0 : index
    %58 = vector.load %arg6[%c5_40, %c0_41, %c0_42] : memref<9x256x256xf32, #tpu.memory_space<vmem>>, vector<1x256x256xf32>
    %59 = vector.shape_cast %58 : vector<1x256x256xf32> to vector<256x256xf32>
    %cst_43 = arith.constant dense<0.000000e+00> : vector<32x256xf32>
    %60 = tpu.matmul %57, %59, %cst_43 {dimension_numbers = #tpu.dot_dimension_numbers<[1], [0], [0], [1], [0, 0, 1, 1], [], []>} : vector<32x256xf32>, vector<256x256xf32>, vector<32x256xf32> -> vector<32x256xf32>
    %61 = arith.addf %54, %60 : vector<32x256xf32>
    %c0_44 = arith.constant 0 : index
    %c6 = arith.constant 6 : index
    %62 = vector.load %arg5[%c0_44, %c6] : memref<32x9xf32, #tpu.memory_space<vmem>>, vector<32x1xf32>
    %63 = vector.broadcast %62 : vector<32x1xf32> to vector<32x256xf32>
    %64 = arith.mulf %18, %63 : vector<32x256xf32>
    %c6_45 = arith.constant 6 : index
    %c0_46 = arith.constant 0 : index
    %c0_47 = arith.constant 0 : index
    %65 = vector.load %arg6[%c6_45, %c0_46, %c0_47] : memref<9x256x256xf32, #tpu.memory_space<vmem>>, vector<1x256x256xf32>
    %66 = vector.shape_cast %65 : vector<1x256x256xf32> to vector<256x256xf32>
    %cst_48 = arith.constant dense<0.000000e+00> : vector<32x256xf32>
    %67 = tpu.matmul %64, %66, %cst_48 {dimension_numbers = #tpu.dot_dimension_numbers<[1], [0], [0], [1], [0, 0, 1, 1], [], []>} : vector<32x256xf32>, vector<256x256xf32>, vector<32x256xf32> -> vector<32x256xf32>
    %68 = arith.addf %61, %67 : vector<32x256xf32>
    %c0_49 = arith.constant 0 : index
    %c7 = arith.constant 7 : index
    %69 = vector.load %arg5[%c0_49, %c7] : memref<32x9xf32, #tpu.memory_space<vmem>>, vector<32x1xf32>
    %70 = vector.broadcast %69 : vector<32x1xf32> to vector<32x256xf32>
    %71 = arith.mulf %18, %70 : vector<32x256xf32>
    %c7_50 = arith.constant 7 : index
    %c0_51 = arith.constant 0 : index
    %c0_52 = arith.constant 0 : index
    %72 = vector.load %arg6[%c7_50, %c0_51, %c0_52] : memref<9x256x256xf32, #tpu.memory_space<vmem>>, vector<1x256x256xf32>
    %73 = vector.shape_cast %72 : vector<1x256x256xf32> to vector<256x256xf32>
    %cst_53 = arith.constant dense<0.000000e+00> : vector<32x256xf32>
    %74 = tpu.matmul %71, %73, %cst_53 {dimension_numbers = #tpu.dot_dimension_numbers<[1], [0], [0], [1], [0, 0, 1, 1], [], []>} : vector<32x256xf32>, vector<256x256xf32>, vector<32x256xf32> -> vector<32x256xf32>
    %75 = arith.addf %68, %74 : vector<32x256xf32>
    %c0_54 = arith.constant 0 : index
    %c8 = arith.constant 8 : index
    %76 = vector.load %arg5[%c0_54, %c8] : memref<32x9xf32, #tpu.memory_space<vmem>>, vector<32x1xf32>
    %77 = vector.broadcast %76 : vector<32x1xf32> to vector<32x256xf32>
    %78 = arith.mulf %18, %77 : vector<32x256xf32>
    %c8_55 = arith.constant 8 : index
    %c0_56 = arith.constant 0 : index
    %c0_57 = arith.constant 0 : index
    %79 = vector.load %arg6[%c8_55, %c0_56, %c0_57] : memref<9x256x256xf32, #tpu.memory_space<vmem>>, vector<1x256x256xf32>
    %80 = vector.shape_cast %79 : vector<1x256x256xf32> to vector<256x256xf32>
    %cst_58 = arith.constant dense<0.000000e+00> : vector<32x256xf32>
    %81 = tpu.matmul %78, %80, %cst_58 {dimension_numbers = #tpu.dot_dimension_numbers<[1], [0], [0], [1], [0, 0, 1, 1], [], []>} : vector<32x256xf32>, vector<256x256xf32>, vector<32x256xf32> -> vector<32x256xf32>
    %82 = arith.addf %75, %81 : vector<32x256xf32>
    %c0_59 = arith.constant 0 : index
    %c0_60 = arith.constant 0 : index
    %83 = vector.load %arg7[%c0_59, %c0_60] : memref<32x1xf32, #tpu.memory_space<vmem>>, vector<32x1xf32>
    %84 = vector.broadcast %83 : vector<32x1xf32> to vector<32x256xf32>
    %85 = arith.mulf %82, %84 : vector<32x256xf32>
    %c0_61 = arith.constant 0 : index
    %c0_62 = arith.constant 0 : index
    %86 = vector.load %arg8[%c0_61, %c0_62] : memref<32x1xf32, #tpu.memory_space<vmem>>, vector<32x1xf32>
    %87 = vector.broadcast %86 : vector<32x1xf32> to vector<32x256xf32>
    %88 = arith.addf %85, %87 : vector<32x256xf32>
    %cst_63 = arith.constant 3.000000e+00 : f32
    %89 = vector.broadcast %cst_63 : f32 to vector<32x256xf32>
    %90 = arith.addf %88, %89 : vector<32x256xf32>
    %cst_64 = arith.constant 0.000000e+00 : f32
    %cst_65 = arith.constant 6.000000e+00 : f32
    %91 = vector.broadcast %cst_64 : f32 to vector<32x256xf32>
    %92 = arith.maximumf %91, %90 : vector<32x256xf32>
    %93 = vector.broadcast %cst_65 : f32 to vector<32x256xf32>
    %94 = arith.minimumf %93, %92 : vector<32x256xf32>
    %95 = arith.mulf %88, %94 : vector<32x256xf32>
    %cst_66 = arith.constant 0.166666672 : f32
    %96 = vector.broadcast %cst_66 : f32 to vector<32x256xf32>
    %97 = arith.mulf %95, %96 : vector<32x256xf32>
    %cst_67 = arith.constant dense<0.000000e+00> : vector<32xf32>
    %98 = vector.multi_reduction <add>, %97, %cst_67 [1] : vector<32x256xf32> to vector<32xf32>
    %99 = vector.shape_cast %98 : vector<32xf32> to vector<32x1xf32>
    %cst_68 = arith.constant 2.560000e+02 : f32
    %100 = vector.broadcast %cst_68 : f32 to vector<32x1xf32>
    %101 = arith.divf %99, %100 : vector<32x1xf32>
    %c0_69 = arith.constant 0 : index
    %c0_70 = arith.constant 0 : index
    %102 = vector.load %arg9[%c0_69, %c0_70] : memref<32x8xf32, #tpu.memory_space<vmem>>, vector<32x8xf32>
    %103 = vector.broadcast %101 : vector<32x1xf32> to vector<32x8xf32>
    %104 = arith.mulf %102, %103 : vector<32x8xf32>
    %cst_71 = arith.constant dense<0.000000e+00> : vector<8xf32>
    %105 = vector.multi_reduction <add>, %104, %cst_71 [0] : vector<32x8xf32> to vector<8xf32>
    %106 = vector.shape_cast %105 : vector<8xf32> to vector<1x8xf32>
    %c0_72 = arith.constant 0 : index
    %c0_73 = arith.constant 0 : index
    %107 = vector.load %arg10[%c0_72, %c0_73] : memref<1x8xf32, #tpu.memory_space<vmem>>, vector<1x8xf32>
    %108 = arith.addf %106, %107 : vector<1x8xf32>
    %cst_74 = arith.constant 0.000000e+00 : f32
    %109 = vector.broadcast %cst_74 : f32 to vector<1x8xf32>
    %110 = arith.maximumf %108, %109 : vector<1x8xf32>
    %c0_75 = arith.constant 0 : index
    %c0_76 = arith.constant 0 : index
    %111 = vector.load %arg11[%c0_75, %c0_76] : memref<32x8xf32, #tpu.memory_space<vmem>>, vector<32x8xf32>
    %112 = vector.broadcast %110 : vector<1x8xf32> to vector<32x8xf32>
    %113 = arith.mulf %111, %112 : vector<32x8xf32>
    %cst_77 = arith.constant dense<0.000000e+00> : vector<32xf32>
    %114 = vector.multi_reduction <add>, %113, %cst_77 [1] : vector<32x8xf32> to vector<32xf32>
    %115 = vector.shape_cast %114 : vector<32xf32> to vector<32x1xf32>
    %c0_78 = arith.constant 0 : index
    %c0_79 = arith.constant 0 : index
    %116 = vector.load %arg12[%c0_78, %c0_79] : memref<32x1xf32, #tpu.memory_space<vmem>>, vector<32x1xf32>
    %117 = arith.addf %115, %116 : vector<32x1xf32>
    %118 = arith.negf %117 : vector<32x1xf32>
    %119 = math.exp %118 : vector<32x1xf32>
    %cst_80 = arith.constant 1.000000e+00 : f32
    %120 = vector.broadcast %cst_80 : f32 to vector<32x1xf32>
    %121 = arith.addf %120, %119 : vector<32x1xf32>
    %122 = arith.divf %120, %121 : vector<32x1xf32>
    %123 = vector.broadcast %122 : vector<32x1xf32> to vector<32x256xf32>
    %124 = arith.mulf %97, %123 : vector<32x256xf32>
    %c0_81 = arith.constant 0 : index
    %c0_82 = arith.constant 0 : index
    %125 = vector.load %arg13[%c0_81, %c0_82] : memref<8x32xf32, #tpu.memory_space<vmem>>, vector<8x32xf32>
    %cst_83 = arith.constant dense<0.000000e+00> : vector<8x256xf32>
    %126 = tpu.matmul %125, %124, %cst_83 {dimension_numbers = #tpu.dot_dimension_numbers<[1], [0], [0], [1], [0, 0, 1, 1], [], []>} : vector<8x32xf32>, vector<32x256xf32>, vector<8x256xf32> -> vector<8x256xf32>
    %c0_84 = arith.constant 0 : index
    %c0_85 = arith.constant 0 : index
    %127 = vector.load %arg14[%c0_84, %c0_85] : memref<8x1xf32, #tpu.memory_space<vmem>>, vector<8x1xf32>
    %128 = vector.broadcast %127 : vector<8x1xf32> to vector<8x256xf32>
    %129 = arith.mulf %126, %128 : vector<8x256xf32>
    %c0_86 = arith.constant 0 : index
    %c0_87 = arith.constant 0 : index
    %130 = vector.load %arg15[%c0_86, %c0_87] : memref<8x1xf32, #tpu.memory_space<vmem>>, vector<8x1xf32>
    %131 = vector.broadcast %130 : vector<8x1xf32> to vector<8x256xf32>
    %132 = arith.addf %129, %131 : vector<8x256xf32>
    %133 = arith.addf %132, %1 : vector<8x256xf32>
    %c0_88 = arith.constant 0 : index
    %c0_89 = arith.constant 0 : index
    %c0_90 = arith.constant 0 : index
    %134 = vector.load %arg16[%c0_88, %c0_89, %c0_90] : memref<1x8x256xf32, #tpu.memory_space<vmem>>, vector<1x8x256xf32>
    %135 = vector.shape_cast %134 : vector<1x8x256xf32> to vector<8x256xf32>
    %136 = vector.shape_cast %133 : vector<8x256xf32> to vector<1x8x256xf32>
    tpu.vector_store %arg16[%c0_88, %c0_89, %c0_90], %136 {strides = array<i32>} : memref<1x8x256xf32, #tpu.memory_space<vmem>>, vector<1x8x256xf32>,
    return
  }
  func.func @transform_0(%arg0: i32) -> (i32, i32, i32) {
    %c0_i32 = arith.constant 0 : i32
    %c0_i32_0 = arith.constant 0 : i32
    %c0_i32_1 = arith.constant 0 : i32
    return %arg0, %c0_i32, %c0_i32_0 : i32, i32, i32
  }
  func.func @transform_1(%arg0: i32) -> (i32, i32) {
    %c0_i32 = arith.constant 0 : i32
    %c0_i32_0 = arith.constant 0 : i32
    %c0_i32_1 = arith.constant 0 : i32
    return %c0_i32, %c0_i32_0 : i32, i32
  }
  func.func @transform_2(%arg0: i32) -> (i32, i32) {
    %c0_i32 = arith.constant 0 : i32
    %c0_i32_0 = arith.constant 0 : i32
    %c0_i32_1 = arith.constant 0 : i32
    return %c0_i32, %c0_i32_0 : i32, i32
  }
  func.func @transform_3(%arg0: i32) -> (i32, i32) {
    %c0_i32 = arith.constant 0 : i32
    %c0_i32_0 = arith.constant 0 : i32
    %c0_i32_1 = arith.constant 0 : i32
    return %c0_i32, %c0_i32_0 : i32, i32
  }
  func.func @transform_4(%arg0: i32) -> (i32, i32) {
    %c0_i32 = arith.constant 0 : i32
    %c0_i32_0 = arith.constant 0 : i32
    %c0_i32_1 = arith.constant 0 : i32
    return %c0_i32, %c0_i32_0 : i32, i32
  }
  func.func @transform_5(%arg0: i32) -> (i32, i32, i32) {
    %c0_i32 = arith.constant 0 : i32
    %c0_i32_0 = arith.constant 0 : i32
    %c0_i32_1 = arith.constant 0 : i32
    %c0_i32_2 = arith.constant 0 : i32
    return %c0_i32, %c0_i32_0, %c0_i32_1 : i32, i32, i32
  }
  func.func @transform_6(%arg0: i32) -> (i32, i32) {
    %c0_i32 = arith.constant 0 : i32
    %c0_i32_0 = arith.constant 0 : i32
    %c0_i32_1 = arith.constant 0 : i32
    return %c0_i32, %c0_i32_0 : i32, i32
  }
  func.func @transform_7(%arg0: i32) -> (i32, i32) {
    %c0_i32 = arith.constant 0 : i32
    %c0_i32_0 = arith.constant 0 : i32
    %c0_i32_1 = arith.constant 0 : i32
    return %c0_i32, %c0_i32_0 : i32, i32
  }
  func.func @transform_8(%arg0: i32) -> (i32, i32) {
    %c0_i32 = arith.constant 0 : i32
    %c0_i32_0 = arith.constant 0 : i32
    %c0_i32_1 = arith.constant 0 : i32
    return %c0_i32, %c0_i32_0 : i32, i32
  }
  func.func @transform_9(%arg0: i32) -> (i32, i32) {
    %c0_i32 = arith.constant 0 : i32
    %c0_i32_0 = arith.constant 0 : i32
    %c0_i32_1 = arith.constant 0 : i32
    return %c0_i32, %c0_i32_0 : i32, i32
  }
  func.func @transform_10(%arg0: i32) -> (i32, i32) {
    %c0_i32 = arith.constant 0 : i32
    %c0_i32_0 = arith.constant 0 : i32
    %c0_i32_1 = arith.constant 0 : i32
    return %c0_i32, %c0_i32_0 : i32, i32
  }
  func.func @transform_11(%arg0: i32) -> (i32, i32) {
    %c0_i32 = arith.constant 0 : i32
    %c0_i32_0 = arith.constant 0 : i32
    %c0_i32_1 = arith.constant 0 : i32
    return %c0_i32, %c0_i32_0 : i32, i32
  }
  func.func @transform_12(%arg0: i32) -> (i32, i32) {
    %c0_i32 = arith.constant 0 : i32
    %c0_i32_0 = arith.constant 0 : i32
    %c0_i32_1 = arith.constant 0 : i32
    return %c0_i32, %c0_i32_0 : i32, i32
  }
  func.func @transform_13(%arg0: i32) -> (i32, i32) {
    %c0_i32 = arith.constant 0 : i32
    %c0_i32_0 = arith.constant 0 : i32
    %c0_i32_1 = arith.constant 0 : i32
    return %c0_i32, %c0_i32_0 : i32, i32
  }
  func.func @transform_14(%arg0: i32) -> (i32, i32) {
    %c0_i32 = arith.constant 0 : i32
    %c0_i32_0 = arith.constant 0 : i32
    %c0_i32_1 = arith.constant 0 : i32
    return %c0_i32, %c0_i32_0 : i32, i32
  }
  func.func @transform_15(%arg0: i32) -> (i32, i32, i32) {
    %c0_i32 = arith.constant 0 : i32
    %c0_i32_0 = arith.constant 0 : i32
    %c0_i32_1 = arith.constant 0 : i32
    return %arg0, %c0_i32, %c0_i32_0 : i32, i32, i32
  }
}

</mosaic_0001>

<llo_original>
// kernel: tpu_custom_call.1
$region0: #{tpu_custom_call.1}
  #allocation0 [shape = 'u32[]', space=smem, size = 0x4, offset = 0x4, fixed_abs, tag = 'smem constant byte address 0x4 - core index']
  #allocation1 [shape = 'u32[144,128]{1,0:T(1,128)}', space=vmem, size = 0x12000, scoped, tag = 'internal scratch']
  %s0 = inlined_call_operand.hbm [shape: f32[2,8,256], index: 0, kind: input, shape index: {}]
  %s1 = inlined_call_operand.vmem [shape: f32[32,8], index: 1, kind: input, shape index: {}]
  %s2 = inlined_call_operand.vmem [shape: f32[32,1], index: 2, kind: input, shape index: {}]
  %s3 = inlined_call_operand.vmem [shape: f32[32,1], index: 3, kind: input, shape index: {}]
  %s4 = inlined_call_operand.vmem [shape: f32[32,9], index: 4, kind: input, shape index: {}]
  %s5 = inlined_call_operand.hbm [shape: f32[9,256,256], index: 5, kind: input, shape index: {}]
  %s6 = inlined_call_operand.vmem [shape: f32[32,1], index: 6, kind: input, shape index: {}]
  %s7 = inlined_call_operand.vmem [shape: f32[32,1], index: 7, kind: input, shape index: {}]
  %s8 = inlined_call_operand.vmem [shape: f32[32,8], index: 8, kind: input, shape index: {}]
  %s9 = inlined_call_operand.hbm [shape: f32[1,8], index: 9, kind: input, shape index: {}]
  %s10 = inlined_call_operand.vmem [shape: f32[32,8], index: 10, kind: input, shape index: {}]
  %s11 = inlined_call_operand.vmem [shape: f32[32,1], index: 11, kind: input, shape index: {}]
  %s12 = inlined_call_operand.hbm [shape: f32[8,32], index: 12, kind: input, shape index: {}]
  %s13 = inlined_call_operand.vmem [shape: f32[8,1], index: 13, kind: input, shape index: {}]
  %s14 = inlined_call_operand.vmem [shape: f32[8,1], index: 14, kind: input, shape index: {}]
  %s15 = inlined_call_operand.hbm [shape: f32[2,8,256], index: 15, kind: output, shape index: {}]
  %s16 = sld [smem:[#allocation0]]
  $region109: #{tpu_custom_call.1} parent=0
    _
  %s18 = ssub.s32 1, %s16
  %s19 = scalar_select 0, %s18, %s16
  $region1: #{tpu_custom_call.1} parent=0
    #allocation2 [shape = 'u8[16384]{0}', space=vmem, size = 0x4000, scoped, tag = 'input window, operand 0']
    #allocation3 [shape = 's32[2]{0}', space=sflag, size = 0x8, scoped, tag = 'scoped memory for tpu_custom_call.1']
    #allocation4 [shape = 's32[2]{0}', space=sflag, size = 0x8, scoped, tag = 'scoped memory for tpu_custom_call.1']
    #allocation5 [shape = 'u8[2359296]{0}', space=vmem, size = 0x240000, scoped, tag = 'input window, operand 5, single buffered']
    #allocation6 [shape = 's32[1]{0}', space=sflag, size = 0x4, scoped, tag = 'scoped memory for tpu_custom_call.1']
    #allocation7 [shape = 'u8[512]{0}', space=vmem, size = 0x400, scoped, tag = 'input window, operand 9, single buffered']
    #allocation8 [shape = 'u8[4096]{0}', space=vmem, size = 0x1000, scoped, tag = 'input window, operand 12, single buffered']
    #allocation9 [shape = 's32[1]{0}', space=sflag, size = 0x4, scoped, tag = 'scoped memory for tpu_custom_call.1']
    #allocation10 [shape = 'u8[16384]{0}', space=vmem, size = 0x4000, scoped, tag = 'output window, operand 0']
    %20 = vsyncpa [#allocation3], 0
    %s21 = scalar_lea.sflag [#allocation3], 1
    %22 = vsyncpa %s21, 0
    %23 = vsyncpa [#allocation6], 0
    %24 = vsyncpa [#allocation9], 0
    %25 = vsyncpa [#allocation4], 0
    %s26 = scalar_lea.sflag [#allocation4], 1
    %27 = vsyncpa %s26, 0
    loop: start=0, step=1, limit=4
    $region2: #{tpu_custom_call.1} parent=1 // loop_pre_header
      _
    $region3: #{tpu_custom_call.1} parent=1 // loop_header
      %s29 = sphi 0, %s33
      %p30 = scmp.ge.s32.totalorder %s29, 4
      %s39 = sphi 0, %s41
      %s42 = sphi 0, %s39
      %s43 = sphi 0, %s42
      %s59 = sphi 0, %s43
      %s63 = sphi 0, %s63
      %s65 = sphi 0, %s63
      %s66 = sphi 0, %s65
      %s80 = sphi 0, %s66
      %s84 = sphi 0, %s84
      %s86 = sphi 0, %s84
      %s87 = sphi 0, %s86
      %s101 = sphi 0, %s87
      %s105 = sphi 0, %s105
      %s107 = sphi 0, %s105
      %s108 = sphi 0, %s107
      %s122 = sphi 0, %s108
      %s126 = sphi 0, %s126
      %s128 = sphi 0, %s126
      %s129 = sphi 0, %s128
      %s143 = sphi 0, %s129
      %s147 = sphi 0, %s147
      %s149 = sphi 0, %s147
      %s150 = sphi 0, %s149
      %s164 = sphi 0, %s150
      %s168 = sphi 0, %s168
      %s170 = sphi 0, %s168
      %s171 = sphi 0, %s170
      %s185 = sphi 0, %s171
      %s189 = sphi 0, %s189
      %s191 = sphi 0, %s189
      %s192 = sphi 0, %s191
      %s206 = sphi 0, %s192
      %s210 = sphi 0, %s210
      %s212 = sphi 0, %s210
      %s213 = sphi 0, %s212
      %s227 = sphi 0, %s213
      %s231 = sphi 0, %s231
      %s233 = sphi 0, %s231
      %s234 = sphi 0, %s233
      %s248 = sphi 0, %s234
      %s252 = sphi 0, %s252
      %s254 = sphi 0, %s252
      %s255 = sphi 0, %s254
      %s269 = sphi 0, %s255
      %s273 = sphi 0, %s273
      %s275 = sphi 0, %s273
      %s276 = sphi 0, %s275
      %s290 = sphi 0, %s276
      %s294 = sphi 0, %s294
      %s296 = sphi 0, %s294
      %s297 = sphi 0, %s296
      %s311 = sphi 0, %s297
      %s315 = sphi 0, %s315
      %s317 = sphi 0, %s315
      %s318 = sphi 0, %s317
      %s332 = sphi 0, %s318
      %s336 = sphi 0, %s336
      %s338 = sphi 0, %s336
      %s339 = sphi 0, %s338
      %s353 = sphi 0, %s339
      %s359 = sphi 0, %s361
      %s362 = sphi 0, %s359
      %s363 = sphi 0, %s362
      %s379 = sphi 0, %s363
    $region4: #{tpu_custom_call.1} parent=1 // loop_header_branch
      %32 = sbr.rel (%p30) target = $region8
    $region5: #{tpu_custom_call.1} parent=1 // loop_body
      %s34 = ssub.s32 %s29, 1
      %s35 = ssub.s32 %s29, 2
      %s36 = sadd.s32 %s29, 1
      %s37 = ssub.s32 %s29, %s36
      %p38 = scmp.eq.s32.totalorder %s37, 0
      %s40 = sadd.s32 %s39, 1
      %s41 = scalar_select %p38, %s39, %s40
      %p44 = pneg %p38
      %p45 = scmp.eq.s32.totalorder %s29, 1
      %p46 = por %p44, %p45
      %p47 = scmp.ne.s32.totalorder %s39, %s42
      %p48 = scmp.eq.s32.totalorder %s29, 0
      %p49 = por %p47, %p48
      %p50 = scmp.ne.s32.totalorder %s39, %s42
      %p51 = scmp.eq.s32.totalorder %s34, 1
      %p52 = por %p50, %p51
      %p53 = scmp.ne.s32.totalorder %s42, %s43
      %p54 = scmp.eq.s32.totalorder %s34, 0
      %p55 = por %p53, %p54
      %p56 = scmp.ne.s32.totalorder %s42, %s43
      %p57 = scmp.eq.s32.totalorder %s35, 1
      %p58 = por %p56, %p57
      %p60 = scmp.ne.s32.totalorder %s43, %s59
      %p61 = scmp.eq.s32.totalorder %s35, 0
      %p62 = por %p60, %p61
      %s64 = sadd.s32 %s63, 1
      %p67 = scmp.eq.s32.totalorder %s29, 1
      %p68 = scmp.ne.s32.totalorder %s63, %s65
      %p69 = scmp.eq.s32.totalorder %s29, 0
      %p70 = por %p68, %p69
      %p71 = scmp.ne.s32.totalorder %s63, %s65
      %p72 = scmp.eq.s32.totalorder %s34, 1
      %p73 = por %p71, %p72
      %p74 = scmp.ne.s32.totalorder %s65, %s66
      %p75 = scmp.eq.s32.totalorder %s34, 0
      %p76 = por %p74, %p75
      %p77 = scmp.ne.s32.totalorder %s65, %s66
      %p78 = scmp.eq.s32.totalorder %s35, 1
      %p79 = por %p77, %p78
      %p81 = scmp.ne.s32.totalorder %s66, %s80
      %p82 = scmp.eq.s32.totalorder %s35, 0
      %p83 = por %p81, %p82
      %s85 = sadd.s32 %s84, 1
      %p88 = scmp.eq.s32.totalorder %s29, 1
      %p89 = scmp.ne.s32.totalorder %s84, %s86
      %p90 = scmp.eq.s32.totalorder %s29, 0
      %p91 = por %p89, %p90
      %p92 = scmp.ne.s32.totalorder %s84, %s86
      %p93 = scmp.eq.s32.totalorder %s34, 1
      %p94 = por %p92, %p93
      %p95 = scmp.ne.s32.totalorder %s86, %s87
      %p96 = scmp.eq.s32.totalorder %s34, 0
      %p97 = por %p95, %p96
      %p98 = scmp.ne.s32.totalorder %s86, %s87
      %p99 = scmp.eq.s32.totalorder %s35, 1
      %p100 = por %p98, %p99
      %p102 = scmp.ne.s32.totalorder %s87, %s101
      %p103 = scmp.eq.s32.totalorder %s35, 0
      %p104 = por %p102, %p103
      %s106 = sadd.s32 %s105, 1
      %p109 = scmp.eq.s32.totalorder %s29, 1
      %p110 = scmp.ne.s32.totalorder %s105, %s107
      %p111 = scmp.eq.s32.totalorder %s29, 0
      %p112 = por %p110, %p111
      %p113 = scmp.ne.s32.totalorder %s105, %s107
      %p114 = scmp.eq.s32.totalorder %s34, 1
      %p115 = por %p113, %p114
      %p116 = scmp.ne.s32.totalorder %s107, %s108
      %p117 = scmp.eq.s32.totalorder %s34, 0
      %p118 = por %p116, %p117
      %p119 = scmp.ne.s32.totalorder %s107, %s108
      %p120 = scmp.eq.s32.totalorder %s35, 1
      %p121 = por %p119, %p120
      %p123 = scmp.ne.s32.totalorder %s108, %s122
      %p124 = scmp.eq.s32.totalorder %s35, 0
      %p125 = por %p123, %p124
      %s127 = sadd.s32 %s126, 1
      %p130 = scmp.eq.s32.totalorder %s29, 1
      %p131 = scmp.ne.s32.totalorder %s126, %s128
      %p132 = scmp.eq.s32.totalorder %s29, 0
      %p133 = por %p131, %p132
      %p134 = scmp.ne.s32.totalorder %s126, %s128
      %p135 = scmp.eq.s32.totalorder %s34, 1
      %p136 = por %p134, %p135
      %p137 = scmp.ne.s32.totalorder %s128, %s129
      %p138 = scmp.eq.s32.totalorder %s34, 0
      %p139 = por %p137, %p138
      %p140 = scmp.ne.s32.totalorder %s128, %s129
      %p141 = scmp.eq.s32.totalorder %s35, 1
      %p142 = por %p140, %p141
      %p144 = scmp.ne.s32.totalorder %s129, %s143
      %p145 = scmp.eq.s32.totalorder %s35, 0
      %p146 = por %p144, %p145
      %s148 = sadd.s32 %s147, 1
      %p151 = scmp.eq.s32.totalorder %s29, 1
      %p152 = scmp.ne.s32.totalorder %s147, %s149
      %p153 = scmp.eq.s32.totalorder %s29, 0
      %p154 = por %p152, %p153
      %p155 = scmp.ne.s32.totalorder %s147, %s149
      %p156 = scmp.eq.s32.totalorder %s34, 1
      %p157 = por %p155, %p156
      %p158 = scmp.ne.s32.totalorder %s149, %s150
      %p159 = scmp.eq.s32.totalorder %s34, 0
      %p160 = por %p158, %p159
      %p161 = scmp.ne.s32.totalorder %s149, %s150
      %p162 = scmp.eq.s32.totalorder %s35, 1
      %p163 = por %p161, %p162
      %p165 = scmp.ne.s32.totalorder %s150, %s164
      %p166 = scmp.eq.s32.totalorder %s35, 0
      %p167 = por %p165, %p166
      %s169 = sadd.s32 %s168, 1
      %p172 = scmp.eq.s32.totalorder %s29, 1
      %p173 = scmp.ne.s32.totalorder %s168, %s170
      %p174 = scmp.eq.s32.totalorder %s29, 0
      %p175 = por %p173, %p174
      %p176 = scmp.ne.s32.totalorder %s168, %s170
      %p177 = scmp.eq.s32.totalorder %s34, 1
      %p178 = por %p176, %p177
      %p179 = scmp.ne.s32.totalorder %s170, %s171
      %p180 = scmp.eq.s32.totalorder %s34, 0
      %p181 = por %p179, %p180
      %p182 = scmp.ne.s32.totalorder %s170, %s171
      %p183 = scmp.eq.s32.totalorder %s35, 1
      %p184 = por %p182, %p183
      %p186 = scmp.ne.s32.totalorder %s171, %s185
      %p187 = scmp.eq.s32.totalorder %s35, 0
      %p188 = por %p186, %p187
      %s190 = sadd.s32 %s189, 1
      %p193 = scmp.eq.s32.totalorder %s29, 1
      %p194 = scmp.ne.s32.totalorder %s189, %s191
      %p195 = scmp.eq.s32.totalorder %s29, 0
      %p196 = por %p194, %p195
      %p197 = scmp.ne.s32.totalorder %s189, %s191
      %p198 = scmp.eq.s32.totalorder %s34, 1
      %p199 = por %p197, %p198
      %p200 = scmp.ne.s32.totalorder %s191, %s192
      %p201 = scmp.eq.s32.totalorder %s34, 0
      %p202 = por %p200, %p201
      %p203 = scmp.ne.s32.totalorder %s191, %s192
      %p204 = scmp.eq.s32.totalorder %s35, 1
      %p205 = por %p203, %p204
      %p207 = scmp.ne.s32.totalorder %s192, %s206
      %p208 = scmp.eq.s32.totalorder %s35, 0
      %p209 = por %p207, %p208
      %s211 = sadd.s32 %s210, 1
      %p214 = scmp.eq.s32.totalorder %s29, 1
      %p215 = scmp.ne.s32.totalorder %s210, %s212
      %p216 = scmp.eq.s32.totalorder %s29, 0
      %p217 = por %p215, %p216
      %p218 = scmp.ne.s32.totalorder %s210, %s212
      %p219 = scmp.eq.s32.totalorder %s34, 1
      %p220 = por %p218, %p219
      %p221 = scmp.ne.s32.totalorder %s212, %s213
      %p222 = scmp.eq.s32.totalorder %s34, 0
      %p223 = por %p221, %p222
      %p224 = scmp.ne.s32.totalorder %s212, %s213
      %p225 = scmp.eq.s32.totalorder %s35, 1
      %p226 = por %p224, %p225
      %p228 = scmp.ne.s32.totalorder %s213, %s227
      %p229 = scmp.eq.s32.totalorder %s35, 0
      %p230 = por %p228, %p229
      %s232 = sadd.s32 %s231, 1
      %p235 = scmp.eq.s32.totalorder %s29, 1
      %p236 = scmp.ne.s32.totalorder %s231, %s233
      %p237 = scmp.eq.s32.totalorder %s29, 0
      %p238 = por %p236, %p237
      %p239 = scmp.ne.s32.totalorder %s231, %s233
      %p240 = scmp.eq.s32.totalorder %s34, 1
      %p241 = por %p239, %p240
      %p242 = scmp.ne.s32.totalorder %s233, %s234
      %p243 = scmp.eq.s32.totalorder %s34, 0
      %p244 = por %p242, %p243
      %p245 = scmp.ne.s32.totalorder %s233, %s234
      %p246 = scmp.eq.s32.totalorder %s35, 1
      %p247 = por %p245, %p246
      %p249 = scmp.ne.s32.totalorder %s234, %s248
      %p250 = scmp.eq.s32.totalorder %s35, 0
      %p251 = por %p249, %p250
      %s253 = sadd.s32 %s252, 1
      %p256 = scmp.eq.s32.totalorder %s29, 1
      %p257 = scmp.ne.s32.totalorder %s252, %s254
      %p258 = scmp.eq.s32.totalorder %s29, 0
      %p259 = por %p257, %p258
      %p260 = scmp.ne.s32.totalorder %s252, %s254
      %p261 = scmp.eq.s32.totalorder %s34, 1
      %p262 = por %p260, %p261
      %p263 = scmp.ne.s32.totalorder %s254, %s255
      %p264 = scmp.eq.s32.totalorder %s34, 0
      %p265 = por %p263, %p264
      %p266 = scmp.ne.s32.totalorder %s254, %s255
      %p267 = scmp.eq.s32.totalorder %s35, 1
      %p268 = por %p266, %p267
      %p270 = scmp.ne.s32.totalorder %s255, %s269
      %p271 = scmp.eq.s32.totalorder %s35, 0
      %p272 = por %p270, %p271
      %s274 = sadd.s32 %s273, 1
      %p277 = scmp.eq.s32.totalorder %s29, 1
      %p278 = scmp.ne.s32.totalorder %s273, %s275
      %p279 = scmp.eq.s32.totalorder %s29, 0
      %p280 = por %p278, %p279
      %p281 = scmp.ne.s32.totalorder %s273, %s275
      %p282 = scmp.eq.s32.totalorder %s34, 1
      %p283 = por %p281, %p282
      %p284 = scmp.ne.s32.totalorder %s275, %s276
      %p285 = scmp.eq.s32.totalorder %s34, 0
      %p286 = por %p284, %p285
      %p287 = scmp.ne.s32.totalorder %s275, %s276
      %p288 = scmp.eq.s32.totalorder %s35, 1
      %p289 = por %p287, %p288
      %p291 = scmp.ne.s32.totalorder %s276, %s290
      %p292 = scmp.eq.s32.totalorder %s35, 0
      %p293 = por %p291, %p292
      %s295 = sadd.s32 %s294, 1
      %p298 = scmp.eq.s32.totalorder %s29, 1
      %p299 = scmp.ne.s32.totalorder %s294, %s296
      %p300 = scmp.eq.s32.totalorder %s29, 0
      %p301 = por %p299, %p300
      %p302 = scmp.ne.s32.totalorder %s294, %s296
      %p303 = scmp.eq.s32.totalorder %s34, 1
      %p304 = por %p302, %p303
      %p305 = scmp.ne.s32.totalorder %s296, %s297
      %p306 = scmp.eq.s32.totalorder %s34, 0
      %p307 = por %p305, %p306
      %p308 = scmp.ne.s32.totalorder %s296, %s297
      %p309 = scmp.eq.s32.totalorder %s35, 1
      %p310 = por %p308, %p309
      %p312 = scmp.ne.s32.totalorder %s297, %s311
      %p313 = scmp.eq.s32.totalorder %s35, 0
      %p314 = por %p312, %p313
      %s316 = sadd.s32 %s315, 1
      %p319 = scmp.eq.s32.totalorder %s29, 1
      %p320 = scmp.ne.s32.totalorder %s315, %s317
      %p321 = scmp.eq.s32.totalorder %s29, 0
      %p322 = por %p320, %p321
      %p323 = scmp.ne.s32.totalorder %s315, %s317
      %p324 = scmp.eq.s32.totalorder %s34, 1
      %p325 = por %p323, %p324
      %p326 = scmp.ne.s32.totalorder %s317, %s318
      %p327 = scmp.eq.s32.totalorder %s34, 0
      %p328 = por %p326, %p327
      %p329 = scmp.ne.s32.totalorder %s317, %s318
      %p330 = scmp.eq.s32.totalorder %s35, 1
      %p331 = por %p329, %p330
      %p333 = scmp.ne.s32.totalorder %s318, %s332
      %p334 = scmp.eq.s32.totalorder %s35, 0
      %p335 = por %p333, %p334
      %s337 = sadd.s32 %s336, 1
      %p340 = scmp.eq.s32.totalorder %s29, 1
      %p341 = scmp.ne.s32.totalorder %s336, %s338
      %p342 = scmp.eq.s32.totalorder %s29, 0
      %p343 = por %p341, %p342
      %p344 = scmp.ne.s32.totalorder %s336, %s338
      %p345 = scmp.eq.s32.totalorder %s34, 1
      %p346 = por %p344, %p345
      %p347 = scmp.ne.s32.totalorder %s338, %s339
      %p348 = scmp.eq.s32.totalorder %s34, 0
      %p349 = por %p347, %p348
      %p350 = scmp.ne.s32.totalorder %s338, %s339
      %p351 = scmp.eq.s32.totalorder %s35, 1
      %p352 = por %p350, %p351
      %p354 = scmp.ne.s32.totalorder %s339, %s353
      %p355 = scmp.eq.s32.totalorder %s35, 0
      %p356 = por %p354, %p355
      %s357 = ssub.s32 %s29, %s36
      %p358 = scmp.eq.s32.totalorder %s357, 0
      %s360 = sadd.s32 %s359, 1
      %s361 = scalar_select %p358, %s359, %s360
      %p364 = pneg %p358
      %p365 = scmp.eq.s32.totalorder %s29, 1
      %p366 = por %p364, %p365
      %p367 = scmp.ne.s32.totalorder %s359, %s362
      %p368 = scmp.eq.s32.totalorder %s29, 0
      %p369 = por %p367, %p368
      %p370 = scmp.ne.s32.totalorder %s359, %s362
      %p371 = scmp.eq.s32.totalorder %s34, 1
      %p372 = por %p370, %p371
      %p373 = scmp.ne.s32.totalorder %s362, %s363
      %p374 = scmp.eq.s32.totalorder %s34, 0
      %p375 = por %p373, %p374
      %p376 = scmp.ne.s32.totalorder %s362, %s363
      %p377 = scmp.eq.s32.totalorder %s35, 1
      %p378 = por %p376, %p377
      %p380 = scmp.ne.s32.totalorder %s363, %s379
      %p381 = scmp.eq.s32.totalorder %s35, 0
      %p382 = por %p380, %p381
      %p383 = scmp.le.s32.totalorder 1, %s29
      %p384 = scmp.lt.s32.totalorder %s29, 3
      %p385 = pnand %p383, %p384
      %p386 = pneg %p385
      // Predicated region
      $region9: #{tpu_custom_call.1} parent=5 // pred_check
        _
      $region10: #{tpu_custom_call.1} parent=5 // pred_check_branch
        %388 = sbr.rel (%p385) target = $region12
      $region11: #{tpu_custom_call.1} parent=5 // pred_region
        %s389 = ssub.s32 %s29, 1
        // Predicated region
        $region13: #{tpu_custom_call.1} parent=11 // pred_check
          %p390 = pneg %p76
        $region14: #{tpu_custom_call.1} parent=11 // pred_check_branch
          %392 = sbr.rel (%p390) target = $region16
        $region15: #{tpu_custom_call.1} parent=11 // pred_region
          _
        $region16: #{tpu_custom_call.1} parent=11 // pred_fallthru
          _
        // Predicated region
        $region17: #{tpu_custom_call.1} parent=11 // pred_check
          %p393 = pneg %p97
        $region18: #{tpu_custom_call.1} parent=11 // pred_check_branch
          %395 = sbr.rel (%p393) target = $region20
        $region19: #{tpu_custom_call.1} parent=11 // pred_region
          _
        $region20: #{tpu_custom_call.1} parent=11 // pred_fallthru
          _
        // Predicated region
        $region21: #{tpu_custom_call.1} parent=11 // pred_check
          %p396 = pneg %p118
        $region22: #{tpu_custom_call.1} parent=11 // pred_check_branch
          %398 = sbr.rel (%p396) target = $region24
        $region23: #{tpu_custom_call.1} parent=11 // pred_region
          _
        $region24: #{tpu_custom_call.1} parent=11 // pred_fallthru
          _
        // Predicated region
        $region25: #{tpu_custom_call.1} parent=11 // pred_check
          %p399 = pneg %p139
        $region26: #{tpu_custom_call.1} parent=11 // pred_check_branch
          %401 = sbr.rel (%p399) target = $region28
        $region27: #{tpu_custom_call.1} parent=11 // pred_region
          _
        $region28: #{tpu_custom_call.1} parent=11 // pred_fallthru
          _
        // Predicated region
        $region29: #{tpu_custom_call.1} parent=11 // pred_check
          %p402 = pneg %p160
        $region30: #{tpu_custom_call.1} parent=11 // pred_check_branch
          %404 = sbr.rel (%p402) target = $region32
        $region31: #{tpu_custom_call.1} parent=11 // pred_region
          %s406 = ssub.s32 73728, 73728
          %407 = vsyncadd [#allocation6], %s406
          %s408 = sshll.u32 [#allocation5], 4
          %s409 = int_to_ptr.vmem [resolvable:$true] %s408
          %414 = dma.hbm_to_vmem [thread:$0]  %s5, 73728, %s409, [#allocation6], 256, 256, 16
        $region32: #{tpu_custom_call.1} parent=11 // pred_fallthru
          _
        // Predicated region
        $region33: #{tpu_custom_call.1} parent=11 // pred_check
          %p415 = pneg %p181
        $region34: #{tpu_custom_call.1} parent=11 // pred_check_branch
          %417 = sbr.rel (%p415) target = $region36
        $region35: #{tpu_custom_call.1} parent=11 // pred_region
          _
        $region36: #{tpu_custom_call.1} parent=11 // pred_fallthru
          _
        // Predicated region
        $region37: #{tpu_custom_call.1} parent=11 // pred_check
          %p418 = pneg %p202
        $region38: #{tpu_custom_call.1} parent=11 // pred_check_branch
          %420 = sbr.rel (%p418) target = $region40
        $region39: #{tpu_custom_call.1} parent=11 // pred_region
          _
        $region40: #{tpu_custom_call.1} parent=11 // pred_fallthru
          _
        // Predicated region
        $region41: #{tpu_custom_call.1} parent=11 // pred_check
          %p421 = pneg %p223
        $region42: #{tpu_custom_call.1} parent=11 // pred_check_branch
          %423 = sbr.rel (%p421) target = $region44
        $region43: #{tpu_custom_call.1} parent=11 // pred_region
          _
        $region44: #{tpu_custom_call.1} parent=11 // pred_fallthru
          _
        // Predicated region
        $region45: #{tpu_custom_call.1} parent=11 // pred_check
          %p424 = pneg %p244
        $region46: #{tpu_custom_call.1} parent=11 // pred_check_branch
          %426 = sbr.rel (%p424) target = $region48
        $region47: #{tpu_custom_call.1} parent=11 // pred_region
          %s428 = ssub.s32 16, 16
          %429 = vsyncadd [#allocation6], %s428
          %s431 = sshll.u32 [#allocation7], 4
          %s432 = int_to_ptr.vmem [resolvable:$true] %s431
          %434 = dma.hbm_to_vmem [thread:$0]  %s9, 16, %s432, [#allocation6]
        $region48: #{tpu_custom_call.1} parent=11 // pred_fallthru
          _
        // Predicated region
        $region49: #{tpu_custom_call.1} parent=11 // pred_check
          %p435 = pneg %p265
        $region50: #{tpu_custom_call.1} parent=11 // pred_check_branch
          %437 = sbr.rel (%p435) target = $region52
        $region51: #{tpu_custom_call.1} parent=11 // pred_region
          _
        $region52: #{tpu_custom_call.1} parent=11 // pred_fallthru
          _
        // Predicated region
        $region53: #{tpu_custom_call.1} parent=11 // pred_check
          %p438 = pneg %p286
        $region54: #{tpu_custom_call.1} parent=11 // pred_check_branch
          %440 = sbr.rel (%p438) target = $region56
        $region55: #{tpu_custom_call.1} parent=11 // pred_region
          _
        $region56: #{tpu_custom_call.1} parent=11 // pred_fallthru
          _
        // Predicated region
        $region57: #{tpu_custom_call.1} parent=11 // pred_check
          %p441 = pneg %p307
        $region58: #{tpu_custom_call.1} parent=11 // pred_check_branch
          %443 = sbr.rel (%p441) target = $region60
        $region59: #{tpu_custom_call.1} parent=11 // pred_region
          %s445 = ssub.s32 128, 128
          %446 = vsyncadd [#allocation9], %s445
          %s448 = sshll.u32 [#allocation8], 4
          %s449 = int_to_ptr.vmem [resolvable:$true] %s448
          %451 = dma.hbm_to_vmem [thread:$0]  %s12, 128, %s449, [#allocation9]
        $region60: #{tpu_custom_call.1} parent=11 // pred_fallthru
          _
        // Predicated region
        $region61: #{tpu_custom_call.1} parent=11 // pred_check
          %p452 = pneg %p328
        $region62: #{tpu_custom_call.1} parent=11 // pred_check_branch
          %454 = sbr.rel (%p452) target = $region64
        $region63: #{tpu_custom_call.1} parent=11 // pred_region
          _
        $region64: #{tpu_custom_call.1} parent=11 // pred_fallthru
          _
        // Predicated region
        $region65: #{tpu_custom_call.1} parent=11 // pred_check
          %p455 = pneg %p349
        $region66: #{tpu_custom_call.1} parent=11 // pred_check_branch
          %457 = sbr.rel (%p455) target = $region68
        $region67: #{tpu_custom_call.1} parent=11 // pred_region
          _
        $region68: #{tpu_custom_call.1} parent=11 // pred_fallthru
          _
      $region12: #{tpu_custom_call.1} parent=5 // pred_fallthru
        _
      %p458 = scmp.lt.s32.totalorder %s29, 2
      // Predicated region
      $region69: #{tpu_custom_call.1} parent=5 // pred_check
        %p459 = pneg %p458
      $region70: #{tpu_custom_call.1} parent=5 // pred_check_branch
        %461 = sbr.rel (%p459) target = $region72
      $region71: #{tpu_custom_call.1} parent=5 // pred_region
        // Predicated region
        $region73: #{tpu_custom_call.1} parent=71 // pred_check
          %p462 = pneg %p49
        $region74: #{tpu_custom_call.1} parent=71 // pred_check_branch
          %464 = sbr.rel (%p462) target = $region76
        $region75: #{tpu_custom_call.1} parent=71 // pred_region
          %s465 = sand.u32 %s39, 1
          %s466 = scalar_lea.sflag [#allocation3], %s465
          %s467 = sand.u32 %s39, 1
          %s468 = smul.addr %s467, 16
          %s469 = scalar_lea.vmem [#allocation2], %s468
          %s471 = ssub.s32 256, 256
          %472 = vsyncadd %s466, %s471
          %s473 = smul.addr %s29, 2
          %s474 = smul.addr %s473, 128
          %s475 = scalar_lea.hbm %s0, %s474
          %s477 = sshll.u32 %s469, 4
          %s478 = int_to_ptr.vmem [resolvable:$true] %s477
          %480 = dma.hbm_to_vmem [thread:$0]  %s475, 256, %s478, %s466
        $region76: #{tpu_custom_call.1} parent=71 // pred_fallthru
          _
      $region72: #{tpu_custom_call.1} parent=5 // pred_fallthru
        _
      %p481 = scmp.le.s32.totalorder 1, %s29
      %p482 = scmp.lt.s32.totalorder %s29, 3
      %p483 = pnand %p481, %p482
      %p484 = pneg %p483
      // Predicated region
      $region77: #{tpu_custom_call.1} parent=5 // pred_check
        _
      $region78: #{tpu_custom_call.1} parent=5 // pred_check_branch
        %486 = sbr.rel (%p483) target = $region80
      $region79: #{tpu_custom_call.1} parent=5 // pred_region
        %s487 = ssub.s32 %s29, 1
        %s488 = sand.u32 %s42, 1
        %s489 = scalar_lea.sflag [#allocation3], %s488
        %s490 = sand.u32 %s42, 1
        %s491 = smul.addr %s490, 16
        %s492 = scalar_lea.vmem [#allocation2], %s491
        // Predicated region
        $region81: #{tpu_custom_call.1} parent=79 // pred_check
          %p493 = pneg %p55
        $region82: #{tpu_custom_call.1} parent=79 // pred_check_branch
          %495 = sbr.rel (%p493) target = $region84
        $region83: #{tpu_custom_call.1} parent=79 // pred_region
          %496 = dma.done %s489, 256
        $region84: #{tpu_custom_call.1} parent=79 // pred_fallthru
          _
        // Predicated region
        $region85: #{tpu_custom_call.1} parent=79 // pred_check
          %p497 = pneg %p160
        $region86: #{tpu_custom_call.1} parent=79 // pred_check_branch
          %499 = sbr.rel (%p497) target = $region88
        $region87: #{tpu_custom_call.1} parent=79 // pred_region
          %500 = dma.done [#allocation6], 73728
        $region88: #{tpu_custom_call.1} parent=79 // pred_fallthru
          _
        // Predicated region
        $region89: #{tpu_custom_call.1} parent=79 // pred_check
          %p501 = pneg %p244
        $region90: #{tpu_custom_call.1} parent=79 // pred_check_branch
          %503 = sbr.rel (%p501) target = $region92
        $region91: #{tpu_custom_call.1} parent=79 // pred_region
          %504 = dma.done [#allocation6], 16
        $region92: #{tpu_custom_call.1} parent=79 // pred_fallthru
          _
        // Predicated region
        $region93: #{tpu_custom_call.1} parent=79 // pred_check
          %p505 = pneg %p307
        $region94: #{tpu_custom_call.1} parent=79 // pred_check_branch
          %507 = sbr.rel (%p505) target = $region96
        $region95: #{tpu_custom_call.1} parent=79 // pred_region
          %508 = dma.done [#allocation9], 128
        $region96: #{tpu_custom_call.1} parent=79 // pred_fallthru
          _
        %s509 = sand.u32 %s42, 1
        %s510 = scalar_lea.sflag [#allocation3], %s509
        %s511 = sand.u32 %s42, 1
        %s512 = smul.addr %s511, 16
        %s513 = scalar_lea.vmem [#allocation2], %s512
        %p514 = pneg %p55
        %p515 = pneg %p52
        %p516 = pneg %p76
        %p517 = pneg %p73
        %p518 = pneg %p97
        %p519 = pneg %p94
        %p520 = pneg %p118
        %p521 = pneg %p115
        %p522 = pneg %p139
        %p523 = pneg %p136
        %p524 = pneg %p160
        %p525 = pneg %p157
        %p526 = pneg %p181
        %p527 = pneg %p178
        %p528 = pneg %p202
        %p529 = pneg %p199
        %p530 = pneg %p223
        %p531 = pneg %p220
        %p532 = pneg %p244
        %p533 = pneg %p241
        %p534 = pneg %p265
        %p535 = pneg %p262
        %p536 = pneg %p286
        %p537 = pneg %p283
        %p538 = pneg %p307
        %p539 = pneg %p304
        %p540 = pneg %p328
        %p541 = pneg %p325
        %p542 = pneg %p349
        %p543 = pneg %p346
        %p544 = pneg %p375
        %p545 = pneg %p372
        %s546 = sand.u32 %s362, 1
        %s547 = scalar_lea.sflag [#allocation4], %s546
        %s548 = sand.u32 %s362, 1
        %s549 = smul.addr %s548, 16
        %s550 = scalar_lea.vmem [#allocation10], %s549
        %v551 = vld [vmem:[%s492] sm:$0xff]
        %v552 = vld [vmem:[%s492 + $0x8] sm:$0xff]
        %v553 = vld [vmem:[%s1] sm:$0xff]
        %v554 = vld [vmem:[%s1 + $0x8] sm:$0xff]
        %v555 = vld [vmem:[%s1 + $0x10] sm:$0xff]
        %v556 = vld [vmem:[%s1 + $0x18] sm:$0xff]
        %vm557 = vcmask 64512
        %v559 = vsel %vm557, %v553, 0
        %v562 = vsel %vm557, %v554, 0
        %v565 = vsel %vm557, %v555, 0
        %v568 = vsel %vm557, %v556, 0
        %570 = vmatprep.subr.mxu0 %v552
        %571 = vmatpush1.msra.mxu0 %v551
        %572 = vmatprep.subr.mxu0 0.0
        %573 = vmatpush1.msra.mxu0 0.0
        %574 = vmatprep.subr.mxu0 0.0
        %575 = vmatpush1.msra.mxu0 0.0
        %576 = vmatprep.subr.mxu0 0.0
        %577 = vmatpush1.msra.mxu0 0.0
        %578 = vmatprep.subr.mxu0 0.0
        %579 = vmatpush1.msra.mxu0 0.0
        %580 = vmatprep.subr.mxu0 0.0
        %581 = vmatpush1.msra.mxu0 0.0
        %582 = vmatprep.subr.mxu0 0.0
        %583 = vmatpush1.msra.mxu0 0.0
        %584 = vmatprep.subr.mxu0 0.0
        %585 = vmatpush1.msra.mxu0 0.0
        %586 = vmatprep.subr.mxu0 0.0
        %587 = vmatpush1.msra.mxu0 0.0
        %588 = vmatprep.subr.mxu0 0.0
        %589 = vmatpush1.msra.mxu0 0.0
        %590 = vmatprep.subr.mxu0 0.0
        %591 = vmatpush1.msra.mxu0 0.0
        %592 = vmatprep.subr.mxu0 0.0
        %593 = vmatpush1.msra.mxu0 0.0
        %594 = vmatprep.subr.mxu0 0.0
        %595 = vmatpush1.msra.mxu0 0.0
        %596 = vmatprep.subr.mxu0 0.0
        %597 = vmatpush1.msra.mxu0 0.0
        %598 = vmatprep.subr.mxu0 0.0
        %599 = vmatpush1.msra.mxu0 0.0
        %600 = vmatprep.subr.mxu0 0.0
        %601 = vmatpush1.msra.mxu0 0.0
        %602 = vmatprep.subr.mxu0 0.0
        %603 = vmatpush1.msra.mxu0 0.0
        %604 = vmatprep.subr.mxu0 0.0
        %605 = vmatpush1.msra.mxu0 0.0
        %606 = vmatprep.subr.mxu0 0.0
        %607 = vmatpush1.msra.mxu0 0.0
        %608 = vmatprep.subr.mxu0 0.0
        %609 = vmatpush1.msra.mxu0 0.0
        %610 = vmatprep.subr.mxu0 0.0
        %611 = vmatpush1.msra.mxu0 0.0
        %612 = vmatprep.subr.mxu0 0.0
        %613 = vmatpush1.msra.mxu0 0.0
        %614 = vmatprep.subr.mxu0 0.0
        %615 = vmatpush1.msra.mxu0 0.0
        %616 = vmatprep.subr.mxu0 0.0
        %617 = vmatpush1.msra.mxu0 0.0
        %618 = vmatprep.subr.mxu0 0.0
        %619 = vmatpush1.msra.mxu0 0.0
        %620 = vmatprep.subr.mxu0 0.0
        %621 = vmatpush1.msra.mxu0 0.0
        %622 = vmatprep.subr.mxu0 0.0
        %623 = vmatpush1.msra.mxu0 0.0
        %624 = vmatprep.subr.mxu0 0.0
        %625 = vmatpush1.msra.mxu0 0.0
        %626 = vmatprep.subr.mxu0 0.0
        %627 = vmatpush1.msra.mxu0 0.0
        %628 = vmatprep.subr.mxu0 0.0
        %629 = vmatpush1.msra.mxu0 0.0
        %630 = vmatprep.subr.mxu0 0.0
        %631 = vmatpush1.msra.mxu0 0.0
        %632 = vmatprep.subr.mxu0 0.0
        %633 = vmatpush1.msra.mxu0 0.0
        %634 = vmatprep.mubr.f32.mxu0 0.0
        %635 = vmatmul.mubr.f32.gmra.mrb[0].mxu0 %v559
        %v636 = vpop.f32.mrb[0].mxu0
        %v637 = vadd.f32 0.0, %v636
        %v638 = vpop.f32.mrb[0].mxu0
        %v639 = vadd.f32 0.0, %v638
        %640 = vmatprep.mubr.f32.mxu0 0.0
        %641 = vmatmul.mubr.f32.gmra.mrb[0].mxu0 %v562
        %v642 = vpop.f32.mrb[0].mxu0
        %v643 = vadd.f32 0.0, %v642
        %v644 = vpop.f32.mrb[0].mxu0
        %v645 = vadd.f32 0.0, %v644
        %646 = vmatprep.mubr.f32.mxu0 0.0
        %647 = vmatmul.mubr.f32.gmra.mrb[0].mxu0 %v565
        %v648 = vpop.f32.mrb[0].mxu0
        %v649 = vadd.f32 0.0, %v648
        %v650 = vpop.f32.mrb[0].mxu0
        %v651 = vadd.f32 0.0, %v650
        %652 = vmatprep.mubr.f32.mxu0 0.0
        %653 = vmatmul.mubr.f32.gmra.mrb[0].mxu0 %v568
        %v654 = vpop.f32.mrb[0].mxu0
        %v655 = vadd.f32 0.0, %v654
        %v656 = vpop.f32.mrb[0].mxu0
        %v657 = vadd.f32 0.0, %v656
        %658 = vdwg.mxu0
        %v659 = vld [vmem:[%s2] sm:$0xff]
        %v660 = vld [vmem:[%s2 + $0x8] sm:$0xff]
        %v661 = vld [vmem:[%s2 + $0x10] sm:$0xff]
        %v662 = vld [vmem:[%s2 + $0x18] sm:$0xff]
        %664 = vset.pattern.permute.xlu0 0
        %665 = vperm.xlu0 %664, %v659
        %v666 = vpop.permute.xlu0 %665
        %669 = vset.pattern.permute.xlu0 0
        %670 = vperm.xlu0 %669, %v660
        %v671 = vpop.permute.xlu0 %670
        %674 = vset.pattern.permute.xlu0 0
        %675 = vperm.xlu0 %674, %v661
        %v676 = vpop.permute.xlu0 %675
        %679 = vset.pattern.permute.xlu0 0
        %680 = vperm.xlu0 %679, %v662
        %v681 = vpop.permute.xlu0 %680
        %v683 = vmul.f32 %v637, %v666
        %v684 = vmul.f32 %v639, %v666
        %v685 = vmul.f32 %v643, %v671
        %v686 = vmul.f32 %v645, %v671
        %v687 = vmul.f32 %v649, %v676
        %v688 = vmul.f32 %v651, %v676
        %v689 = vmul.f32 %v655, %v681
        %v690 = vmul.f32 %v657, %v681
        %v691 = vld [vmem:[%s3] sm:$0xff]
        %v692 = vld [vmem:[%s3 + $0x8] sm:$0xff]
        %v693 = vld [vmem:[%s3 + $0x10] sm:$0xff]
        %v694 = vld [vmem:[%s3 + $0x18] sm:$0xff]
        %696 = vset.pattern.permute.xlu0 0
        %697 = vperm.xlu0 %696, %v691
        %v698 = vpop.permute.xlu0 %697
        %701 = vset.pattern.permute.xlu0 0
        %702 = vperm.xlu0 %701, %v692
        %v703 = vpop.permute.xlu0 %702
        %706 = vset.pattern.permute.xlu0 0
        %707 = vperm.xlu0 %706, %v693
        %v708 = vpop.permute.xlu0 %707
        %711 = vset.pattern.permute.xlu0 0
        %712 = vperm.xlu0 %711, %v694
        %v713 = vpop.permute.xlu0 %712
        %v715 = vadd.f32 %v683, %v698
        %v716 = vadd.f32 %v684, %v698
        %v717 = vadd.f32 %v685, %v703
        %v718 = vadd.f32 %v686, %v703
        %v719 = vadd.f32 %v687, %v708
        %v720 = vadd.f32 %v688, %v708
        %v721 = vadd.f32 %v689, %v713
        %v722 = vadd.f32 %v690, %v713
        %v723 = vadd.f32 %v715, 3.0
        %v724 = vadd.f32 %v716, 3.0
        %v725 = vadd.f32 %v717, 3.0
        %v726 = vadd.f32 %v718, 3.0
        %v727 = vadd.f32 %v719, 3.0
        %v728 = vadd.f32 %v720, 3.0
        %v729 = vadd.f32 %v721, 3.0
        %v730 = vadd.f32 %v722, 3.0
        %v731 = vmax.f32 %v723, 0.0
        %v732 = vmax.f32 %v724, 0.0
        %v733 = vmax.f32 %v725, 0.0
        %v734 = vmax.f32 %v726, 0.0
        %v735 = vmax.f32 %v727, 0.0
        %v736 = vmax.f32 %v728, 0.0
        %v737 = vmax.f32 %v729, 0.0
        %v738 = vmax.f32 %v730, 0.0
        %v739 = vmin.f32 %v731, 6.0
        %v740 = vmin.f32 %v732, 6.0
        %v741 = vmin.f32 %v733, 6.0
        %v742 = vmin.f32 %v734, 6.0
        %v743 = vmin.f32 %v735, 6.0
        %v744 = vmin.f32 %v736, 6.0
        %v745 = vmin.f32 %v737, 6.0
        %v746 = vmin.f32 %v738, 6.0
        %v747 = vmul.f32 %v715, %v739
        %v748 = vmul.f32 %v716, %v740
        %v749 = vmul.f32 %v717, %v741
        %v750 = vmul.f32 %v718, %v742
        %v751 = vmul.f32 %v719, %v743
        %v752 = vmul.f32 %v720, %v744
        %v753 = vmul.f32 %v721, %v745
        %v754 = vmul.f32 %v722, %v746
        %v755 = vmul.f32 %v747, 0.16666667
        %v756 = vmul.f32 %v748, 0.16666667
        %v757 = vmul.f32 %v749, 0.16666667
        %v758 = vmul.f32 %v750, 0.16666667
        %v759 = vmul.f32 %v751, 0.16666667
        %v760 = vmul.f32 %v752, 0.16666667
        %v761 = vmul.f32 %v753, 0.16666667
        %v762 = vmul.f32 %v754, 0.16666667
        %v763 = vld [vmem:[%s4] sm:$0xff]
        %v764 = vld [vmem:[%s4 + $0x8] sm:$0xff]
        %v765 = vld [vmem:[%s4 + $0x10] sm:$0xff]
        %v766 = vld [vmem:[%s4 + $0x18] sm:$0xff]
        %768 = vset.pattern.permute.xlu0 0
        %769 = vperm.xlu0 %768, %v763
        %v770 = vpop.permute.xlu0 %769
        %773 = vset.pattern.permute.xlu0 0
        %774 = vperm.xlu0 %773, %v764
        %v775 = vpop.permute.xlu0 %774
        %778 = vset.pattern.permute.xlu0 0
        %779 = vperm.xlu0 %778, %v765
        %v780 = vpop.permute.xlu0 %779
        %783 = vset.pattern.permute.xlu0 0
        %784 = vperm.xlu0 %783, %v766
        %v785 = vpop.permute.xlu0 %784
        %v787 = vmul.f32 %v755, %v770
        %v788 = vmul.f32 %v756, %v770
        %v789 = vmul.f32 %v757, %v775
        %v790 = vmul.f32 %v758, %v775
        %v791 = vmul.f32 %v759, %v780
        %v792 = vmul.f32 %v760, %v780
        %v793 = vmul.f32 %v761, %v785
        %v794 = vmul.f32 %v762, %v785
        %v795 = vld [vmem:[#allocation5] sm:$0xff]
        %v796 = vld [vmem:[#allocation5 + $0x8] sm:$0xff]
        %v797 = vld [vmem:[#allocation5 + $0x10] sm:$0xff]
        %v798 = vld [vmem:[#allocation5 + $0x18] sm:$0xff]
        %v799 = vld [vmem:[#allocation5 + $0x20] sm:$0xff]
        %v800 = vld [vmem:[#allocation5 + $0x28] sm:$0xff]
        %v801 = vld [vmem:[#allocation5 + $0x30] sm:$0xff]
        %v802 = vld [vmem:[#allocation5 + $0x38] sm:$0xff]
        %v803 = vld [vmem:[#allocation5 + $0x40] sm:$0xff]
        %v804 = vld [vmem:[#allocation5 + $0x48] sm:$0xff]
        %v805 = vld [vmem:[#allocation5 + $0x50] sm:$0xff]
        %v806 = vld [vmem:[#allocation5 + $0x58] sm:$0xff]
        %v807 = vld [vmem:[#allocation5 + $0x60] sm:$0xff]
        %v808 = vld [vmem:[#allocation5 + $0x68] sm:$0xff]
        %v809 = vld [vmem:[#allocation5 + $0x70] sm:$0xff]
        %v810 = vld [vmem:[#allocation5 + $0x78] sm:$0xff]
        %v811 = vld [vmem:[#allocation5 + $0x80] sm:$0xff]
        %v812 = vld [vmem:[#allocation5 + $0x88] sm:$0xff]
        %v813 = vld [vmem:[#allocation5 + $0x90] sm:$0xff]
        %v814 = vld [vmem:[#allocation5 + $0x98] sm:$0xff]
        %v815 = vld [vmem:[#allocation5 + $0xa0] sm:$0xff]
        %v816 = vld [vmem:[#allocation5 + $0xa8] sm:$0xff]
        %v817 = vld [vmem:[#allocation5 + $0xb0] sm:$0xff]
        %v818 = vld [vmem:[#allocation5 + $0xb8] sm:$0xff]
        %v819 = vld [vmem:[#allocation5 + $0xc0] sm:$0xff]
        %v820 = vld [vmem:[#allocation5 + $0xc8] sm:$0xff]
        %v821 = vld [vmem:[#allocation5 + $0xd0] sm:$0xff]
        %v822 = vld [vmem:[#allocation5 + $0xd8] sm:$0xff]
        %v823 = vld [vmem:[#allocation5 + $0xe0] sm:$0xff]
        %v824 = vld [vmem:[#allocation5 + $0xe8] sm:$0xff]
        %v825 = vld [vmem:[#allocation5 + $0xf0] sm:$0xff]
        %v826 = vld [vmem:[#allocation5 + $0xf8] sm:$0xff]
        %v827 = vld [vmem:[#allocation5 + $0x100] sm:$0xff]
        %v828 = vld [vmem:[#allocation5 + $0x108] sm:$0xff]
        %v829 = vld [vmem:[#allocation5 + $0x110] sm:$0xff]
        %v830 = vld [vmem:[#allocation5 + $0x118] sm:$0xff]
        %v831 = vld [vmem:[#allocation5 + $0x120] sm:$0xff]
        %v832 = vld [vmem:[#allocation5 + $0x128] sm:$0xff]
        %v833 = vld [vmem:[#allocation5 + $0x130] sm:$0xff]
        %v834 = vld [vmem:[#allocation5 + $0x138] sm:$0xff]
        %v835 = vld [vmem:[#allocation5 + $0x140] sm:$0xff]
        %v836 = vld [vmem:[#allocation5 + $0x148] sm:$0xff]
        %v837 = vld [vmem:[#allocation5 + $0x150] sm:$0xff]
        %v838 = vld [vmem:[#allocation5 + $0x158] sm:$0xff]
        %v839 = vld [vmem:[#allocation5 + $0x160] sm:$0xff]
        %v840 = vld [vmem:[#allocation5 + $0x168] sm:$0xff]
        %v841 = vld [vmem:[#allocation5 + $0x170] sm:$0xff]
        %v842 = vld [vmem:[#allocation5 + $0x178] sm:$0xff]
        %v843 = vld [vmem:[#allocation5 + $0x180] sm:$0xff]
        %v844 = vld [vmem:[#allocation5 + $0x188] sm:$0xff]
        %v845 = vld [vmem:[#allocation5 + $0x190] sm:$0xff]
        %v846 = vld [vmem:[#allocation5 + $0x198] sm:$0xff]
        %v847 = vld [vmem:[#allocation5 + $0x1a0] sm:$0xff]
        %v848 = vld [vmem:[#allocation5 + $0x1a8] sm:$0xff]
        %v849 = vld [vmem:[#allocation5 + $0x1b0] sm:$0xff]
        %v850 = vld [vmem:[#allocation5 + $0x1b8] sm:$0xff]
        %v851 = vld [vmem:[#allocation5 + $0x1c0] sm:$0xff]
        %v852 = vld [vmem:[#allocation5 + $0x1c8] sm:$0xff]
        %v853 = vld [vmem:[#allocation5 + $0x1d0] sm:$0xff]
        %v854 = vld [vmem:[#allocation5 + $0x1d8] sm:$0xff]
        %v855 = vld [vmem:[#allocation5 + $0x1e0] sm:$0xff]
        %v856 = vld [vmem:[#allocation5 + $0x1e8] sm:$0xff]
        %v857 = vld [vmem:[#allocation5 + $0x1f0] sm:$0xff]
        %v858 = vld [vmem:[#allocation5 + $0x1f8] sm:$0xff]
        %859 = vset.pattern.permute.xlu0 1
        %860 = vperm.xlu0 %859, %v763
        %v861 = vpop.permute.xlu0 %860
        %863 = vset.pattern.permute.xlu0 1
        %864 = vperm.xlu0 %863, %v764
        %v865 = vpop.permute.xlu0 %864
        %867 = vset.pattern.permute.xlu0 1
        %868 = vperm.xlu0 %867, %v765
        %v869 = vpop.permute.xlu0 %868
        %871 = vset.pattern.permute.xlu0 1
        %872 = vperm.xlu0 %871, %v766
        %v873 = vpop.permute.xlu0 %872
        %v875 = vmul.f32 %v755, %v861
        %v876 = vmul.f32 %v756, %v861
        %v877 = vmul.f32 %v757, %v865
        %v878 = vmul.f32 %v758, %v865
        %v879 = vmul.f32 %v759, %v869
        %v880 = vmul.f32 %v760, %v869
        %v881 = vmul.f32 %v761, %v873
        %v882 = vmul.f32 %v762, %v873
        %s883 = scalar_lea.vmem [#allocation5], 512
        %v884 = vld [vmem:[%s883] sm:$0xff]
        %v885 = vld [vmem:[%s883 + $0x8] sm:$0xff]
        %v886 = vld [vmem:[%s883 + $0x10] sm:$0xff]
        %v887 = vld [vmem:[%s883 + $0x18] sm:$0xff]
        %v888 = vld [vmem:[%s883 + $0x20] sm:$0xff]
        %v889 = vld [vmem:[%s883 + $0x28] sm:$0xff]
        %v890 = vld [vmem:[%s883 + $0x30] sm:$0xff]
        %v891 = vld [vmem:[%s883 + $0x38] sm:$0xff]
        %v892 = vld [vmem:[%s883 + $0x40] sm:$0xff]
        %v893 = vld [vmem:[%s883 + $0x48] sm:$0xff]
        %v894 = vld [vmem:[%s883 + $0x50] sm:$0xff]
        %v895 = vld [vmem:[%s883 + $0x58] sm:$0xff]
        %v896 = vld [vmem:[%s883 + $0x60] sm:$0xff]
        %v897 = vld [vmem:[%s883 + $0x68] sm:$0xff]
        %v898 = vld [vmem:[%s883 + $0x70] sm:$0xff]
        %v899 = vld [vmem:[%s883 + $0x78] sm:$0xff]
        %v900 = vld [vmem:[%s883 + $0x80] sm:$0xff]
        %v901 = vld [vmem:[%s883 + $0x88] sm:$0xff]
        %v902 = vld [vmem:[%s883 + $0x90] sm:$0xff]
        %v903 = vld [vmem:[%s883 + $0x98] sm:$0xff]
        %v904 = vld [vmem:[%s883 + $0xa0] sm:$0xff]
        %v905 = vld [vmem:[%s883 + $0xa8] sm:$0xff]
        %v906 = vld [vmem:[%s883 + $0xb0] sm:$0xff]
        %v907 = vld [vmem:[%s883 + $0xb8] sm:$0xff]
        %v908 = vld [vmem:[%s883 + $0xc0] sm:$0xff]
        %v909 = vld [vmem:[%s883 + $0xc8] sm:$0xff]
        %v910 = vld [vmem:[%s883 + $0xd0] sm:$0xff]
        %v911 = vld [vmem:[%s883 + $0xd8] sm:$0xff]
        %v912 = vld [vmem:[%s883 + $0xe0] sm:$0xff]
        %v913 = vld [vmem:[%s883 + $0xe8] sm:$0xff]
        %v914 = vld [vmem:[%s883 + $0xf0] sm:$0xff]
        %v915 = vld [vmem:[%s883 + $0xf8] sm:$0xff]
        %v916 = vld [vmem:[%s883 + $0x100] sm:$0xff]
        %v917 = vld [vmem:[%s883 + $0x108] sm:$0xff]
        %v918 = vld [vmem:[%s883 + $0x110] sm:$0xff]
        %v919 = vld [vmem:[%s883 + $0x118] sm:$0xff]
        %v920 = vld [vmem:[%s883 + $0x120] sm:$0xff]
        %v921 = vld [vmem:[%s883 + $0x128] sm:$0xff]
        %v922 = vld [vmem:[%s883 + $0x130] sm:$0xff]
        %v923 = vld [vmem:[%s883 + $0x138] sm:$0xff]
        %v924 = vld [vmem:[%s883 + $0x140] sm:$0xff]
        %v925 = vld [vmem:[%s883 + $0x148] sm:$0xff]
        %v926 = vld [vmem:[%s883 + $0x150] sm:$0xff]
        %v927 = vld [vmem:[%s883 + $0x158] sm:$0xff]
        %v928 = vld [vmem:[%s883 + $0x160] sm:$0xff]
        %v929 = vld [vmem:[%s883 + $0x168] sm:$0xff]
        %v930 = vld [vmem:[%s883 + $0x170] sm:$0xff]
        %v931 = vld [vmem:[%s883 + $0x178] sm:$0xff]
        %v932 = vld [vmem:[%s883 + $0x180] sm:$0xff]
        %v933 = vld [vmem:[%s883 + $0x188] sm:$0xff]
        %v934 = vld [vmem:[%s883 + $0x190] sm:$0xff]
        %v935 = vld [vmem:[%s883 + $0x198] sm:$0xff]
        %v936 = vld [vmem:[%s883 + $0x1a0] sm:$0xff]
        %v937 = vld [vmem:[%s883 + $0x1a8] sm:$0xff]
        %v938 = vld [vmem:[%s883 + $0x1b0] sm:$0xff]
        %v939 = vld [vmem:[%s883 + $0x1b8] sm:$0xff]
        %v940 = vld [vmem:[%s883 + $0x1c0] sm:$0xff]
        %v941 = vld [vmem:[%s883 + $0x1c8] sm:$0xff]
        %v942 = vld [vmem:[%s883 + $0x1d0] sm:$0xff]
        %v943 = vld [vmem:[%s883 + $0x1d8] sm:$0xff]
        %v944 = vld [vmem:[%s883 + $0x1e0] sm:$0xff]
        %v945 = vld [vmem:[%s883 + $0x1e8] sm:$0xff]
        %v946 = vld [vmem:[%s883 + $0x1f0] sm:$0xff]
        %v947 = vld [vmem:[%s883 + $0x1f8] sm:$0xff]
        %948 = vmatprep.subr.mxu0 %v885
        %949 = vmatpush1.msra.mxu0 %v884
        %950 = vmatprep.subr.mxu0 %v887
        %951 = vmatpush1.msra.mxu0 %v886
        %952 = vmatprep.subr.mxu0 %v889
        %953 = vmatpush1.msra.mxu0 %v888
        %954 = vmatprep.subr.mxu0 %v891
        %955 = vmatpush1.msra.mxu0 %v890
        %956 = vmatprep.subr.mxu0 %v893
        %957 = vmatpush1.msra.mxu0 %v892
        %958 = vmatprep.subr.mxu0 %v895
        %959 = vmatpush1.msra.mxu0 %v894
        %960 = vmatprep.subr.mxu0 %v897
        %961 = vmatpush1.msra.mxu0 %v896
        %962 = vmatprep.subr.mxu0 %v899
        %963 = vmatpush1.msra.mxu0 %v898
        %964 = vmatprep.subr.mxu0 %v901
        %965 = vmatpush1.msra.mxu0 %v900
        %966 = vmatprep.subr.mxu0 %v903
        %967 = vmatpush1.msra.mxu0 %v902
        %968 = vmatprep.subr.mxu0 %v905
        %969 = vmatpush1.msra.mxu0 %v904
        %970 = vmatprep.subr.mxu0 %v907
        %971 = vmatpush1.msra.mxu0 %v906
        %972 = vmatprep.subr.mxu0 %v909
        %973 = vmatpush1.msra.mxu0 %v908
        %974 = vmatprep.subr.mxu0 %v911
        %975 = vmatpush1.msra.mxu0 %v910
        %976 = vmatprep.subr.mxu0 %v913
        %977 = vmatpush1.msra.mxu0 %v912
        %978 = vmatprep.subr.mxu0 %v915
        %979 = vmatpush1.msra.mxu0 %v914
        %980 = vmatprep.subr.mxu0 %v917
        %981 = vmatpush1.msra.mxu0 %v916
        %982 = vmatprep.subr.mxu0 %v919
        %983 = vmatpush1.msra.mxu0 %v918
        %984 = vmatprep.subr.mxu0 %v921
        %985 = vmatpush1.msra.mxu0 %v920
        %986 = vmatprep.subr.mxu0 %v923
        %987 = vmatpush1.msra.mxu0 %v922
        %988 = vmatprep.subr.mxu0 %v925
        %989 = vmatpush1.msra.mxu0 %v924
        %990 = vmatprep.subr.mxu0 %v927
        %991 = vmatpush1.msra.mxu0 %v926
        %992 = vmatprep.subr.mxu0 %v929
        %993 = vmatpush1.msra.mxu0 %v928
        %994 = vmatprep.subr.mxu0 %v931
        %995 = vmatpush1.msra.mxu0 %v930
        %996 = vmatprep.subr.mxu0 %v933
        %997 = vmatpush1.msra.mxu0 %v932
        %998 = vmatprep.subr.mxu0 %v935
        %999 = vmatpush1.msra.mxu0 %v934
        %1000 = vmatprep.subr.mxu0 %v937
        %1001 = vmatpush1.msra.mxu0 %v936
        %1002 = vmatprep.subr.mxu0 %v939
        %1003 = vmatpush1.msra.mxu0 %v938
        %1004 = vmatprep.subr.mxu0 %v941
        %1005 = vmatpush1.msra.mxu0 %v940
        %1006 = vmatprep.subr.mxu0 %v943
        %1007 = vmatpush1.msra.mxu0 %v942
        %1008 = vmatprep.subr.mxu0 %v945
        %1009 = vmatpush1.msra.mxu0 %v944
        %1010 = vmatprep.subr.mxu0 %v947
        %1011 = vmatpush1.msra.mxu0 %v946
        %1012 = vmatprep.mubr.f32.mxu0 %v876
        %1013 = vmatmul.mubr.f32.gmra.mrb[0].mxu0 %v875
        %v1014 = vpop.f32.mrb[0].mxu0
        %v1015 = vadd.f32 0.0, %v1014
        %v1016 = vpop.f32.mrb[0].mxu0
        %v1017 = vadd.f32 0.0, %v1016
        %1018 = vmatprep.mubr.f32.mxu0 %v878
        %1019 = vmatmul.mubr.f32.gmra.mrb[0].mxu0 %v877
        %v1020 = vpop.f32.mrb[0].mxu0
        %v1021 = vadd.f32 0.0, %v1020
        %v1022 = vpop.f32.mrb[0].mxu0
        %v1023 = vadd.f32 0.0, %v1022
        %1024 = vmatprep.mubr.f32.mxu0 %v880
        %1025 = vmatmul.mubr.f32.gmra.mrb[0].mxu0 %v879
        %v1026 = vpop.f32.mrb[0].mxu0
        %v1027 = vadd.f32 0.0, %v1026
        %v1028 = vpop.f32.mrb[0].mxu0
        %v1029 = vadd.f32 0.0, %v1028
        %1030 = vmatprep.mubr.f32.mxu0 %v882
        %1031 = vmatmul.mubr.f32.gmra.mrb[0].mxu0 %v881
        %v1032 = vpop.f32.mrb[0].mxu0
        %v1033 = vadd.f32 0.0, %v1032
        %v1034 = vpop.f32.mrb[0].mxu0
        %v1035 = vadd.f32 0.0, %v1034
        %1036 = vdwg.mxu0
        %1037 = vmatprep.subr.mxu0 %v796
        %1038 = vmatpush1.msra.mxu0 %v795
        %1039 = vmatprep.subr.mxu0 %v798
        %1040 = vmatpush1.msra.mxu0 %v797
        %1041 = vmatprep.subr.mxu0 %v800
        %1042 = vmatpush1.msra.mxu0 %v799
        %1043 = vmatprep.subr.mxu0 %v802
        %1044 = vmatpush1.msra.mxu0 %v801
        %1045 = vmatprep.subr.mxu0 %v804
        %1046 = vmatpush1.msra.mxu0 %v803
        %1047 = vmatprep.subr.mxu0 %v806
        %1048 = vmatpush1.msra.mxu0 %v805
        %1049 = vmatprep.subr.mxu0 %v808
        %1050 = vmatpush1.msra.mxu0 %v807
        %1051 = vmatprep.subr.mxu0 %v810
        %1052 = vmatpush1.msra.mxu0 %v809
        %1053 = vmatprep.subr.mxu0 %v812
        %1054 = vmatpush1.msra.mxu0 %v811
        %1055 = vmatprep.subr.mxu0 %v814
        %1056 = vmatpush1.msra.mxu0 %v813
        %1057 = vmatprep.subr.mxu0 %v816
        %1058 = vmatpush1.msra.mxu0 %v815
        %1059 = vmatprep.subr.mxu0 %v818
        %1060 = vmatpush1.msra.mxu0 %v817
        %1061 = vmatprep.subr.mxu0 %v820
        %1062 = vmatpush1.msra.mxu0 %v819
        %1063 = vmatprep.subr.mxu0 %v822
        %1064 = vmatpush1.msra.mxu0 %v821
        %1065 = vmatprep.subr.mxu0 %v824
        %1066 = vmatpush1.msra.mxu0 %v823
        %1067 = vmatprep.subr.mxu0 %v826
        %1068 = vmatpush1.msra.mxu0 %v825
        %1069 = vmatprep.subr.mxu0 %v828
        %1070 = vmatpush1.msra.mxu0 %v827
        %1071 = vmatprep.subr.mxu0 %v830
        %1072 = vmatpush1.msra.mxu0 %v829
        %1073 = vmatprep.subr.mxu0 %v832
        %1074 = vmatpush1.msra.mxu0 %v831
        %1075 = vmatprep.subr.mxu0 %v834
        %1076 = vmatpush1.msra.mxu0 %v833
        %1077 = vmatprep.subr.mxu0 %v836
        %1078 = vmatpush1.msra.mxu0 %v835
        %1079 = vmatprep.subr.mxu0 %v838
        %1080 = vmatpush1.msra.mxu0 %v837
        %1081 = vmatprep.subr.mxu0 %v840
        %1082 = vmatpush1.msra.mxu0 %v839
        %1083 = vmatprep.subr.mxu0 %v842
        %1084 = vmatpush1.msra.mxu0 %v841
        %1085 = vmatprep.subr.mxu0 %v844
        %1086 = vmatpush1.msra.mxu0 %v843
        %1087 = vmatprep.subr.mxu0 %v846
        %1088 = vmatpush1.msra.mxu0 %v845
        %1089 = vmatprep.subr.mxu0 %v848
        %1090 = vmatpush1.msra.mxu0 %v847
        %1091 = vmatprep.subr.mxu0 %v850
        %1092 = vmatpush1.msra.mxu0 %v849
        %1093 = vmatprep.subr.mxu0 %v852
        %1094 = vmatpush1.msra.mxu0 %v851
        %1095 = vmatprep.subr.mxu0 %v854
        %1096 = vmatpush1.msra.mxu0 %v853
        %1097 = vmatprep.subr.mxu0 %v856
        %1098 = vmatpush1.msra.mxu0 %v855
        %1099 = vmatprep.subr.mxu0 %v858
        %1100 = vmatpush1.msra.mxu0 %v857
        %1101 = vmatprep.mubr.f32.mxu0 %v788
        %1102 = vmatmul.mubr.f32.gmra.mrb[0].mxu0 %v787
        %v1103 = vpop.f32.mrb[0].mxu0
        %v1104 = vadd.f32 %v1015, %v1103
        %v1105 = vpop.f32.mrb[0].mxu0
        %v1106 = vadd.f32 %v1017, %v1105
        %1107 = vmatprep.mubr.f32.mxu0 %v790
        %1108 = vmatmul.mubr.f32.gmra.mrb[0].mxu0 %v789
        %v1109 = vpop.f32.mrb[0].mxu0
        %v1110 = vadd.f32 %v1021, %v1109
        %v1111 = vpop.f32.mrb[0].mxu0
        %v1112 = vadd.f32 %v1023, %v1111
        %1113 = vmatprep.mubr.f32.mxu0 %v792
        %1114 = vmatmul.mubr.f32.gmra.mrb[0].mxu0 %v791
        %v1115 = vpop.f32.mrb[0].mxu0
        %v1116 = vadd.f32 %v1027, %v1115
        %v1117 = vpop.f32.mrb[0].mxu0
        %v1118 = vadd.f32 %v1029, %v1117
        %1119 = vmatprep.mubr.f32.mxu0 %v794
        %1120 = vmatmul.mubr.f32.gmra.mrb[0].mxu0 %v793
        %v1121 = vpop.f32.mrb[0].mxu0
        %v1122 = vadd.f32 %v1033, %v1121
        %v1123 = vpop.f32.mrb[0].mxu0
        %v1124 = vadd.f32 %v1035, %v1123
        %1125 = vdwg.mxu0
        %1126 = vset.pattern.permute.xlu0 2
        %1127 = vperm.xlu0 %1126, %v763
        %v1128 = vpop.permute.xlu0 %1127
        %1130 = vset.pattern.permute.xlu0 2
        %1131 = vperm.xlu0 %1130, %v764
        %v1132 = vpop.permute.xlu0 %1131
        %1134 = vset.pattern.permute.xlu0 2
        %1135 = vperm.xlu0 %1134, %v765
        %v1136 = vpop.permute.xlu0 %1135
        %1138 = vset.pattern.permute.xlu0 2
        %1139 = vperm.xlu0 %1138, %v766
        %v1140 = vpop.permute.xlu0 %1139
        %v1142 = vmul.f32 %v755, %v1128
        %v1143 = vmul.f32 %v756, %v1128
        %v1144 = vmul.f32 %v757, %v1132
        %v1145 = vmul.f32 %v758, %v1132
        %v1146 = vmul.f32 %v759, %v1136
        %v1147 = vmul.f32 %v760, %v1136
        %v1148 = vmul.f32 %v761, %v1140
        %v1149 = vmul.f32 %v762, %v1140
        %s1150 = scalar_lea.vmem [#allocation5], 1024
        %v1151 = vld [vmem:[%s1150] sm:$0xff]
        %v1152 = vld [vmem:[%s1150 + $0x8] sm:$0xff]
        %v1153 = vld [vmem:[%s1150 + $0x10] sm:$0xff]
        %v1154 = vld [vmem:[%s1150 + $0x18] sm:$0xff]
        %v1155 = vld [vmem:[%s1150 + $0x20] sm:$0xff]
        %v1156 = vld [vmem:[%s1150 + $0x28] sm:$0xff]
        %v1157 = vld [vmem:[%s1150 + $0x30] sm:$0xff]
        %v1158 = vld [vmem:[%s1150 + $0x38] sm:$0xff]
        %v1159 = vld [vmem:[%s1150 + $0x40] sm:$0xff]
        %v1160 = vld [vmem:[%s1150 + $0x48] sm:$0xff]
        %v1161 = vld [vmem:[%s1150 + $0x50] sm:$0xff]
        %v1162 = vld [vmem:[%s1150 + $0x58] sm:$0xff]
        %v1163 = vld [vmem:[%s1150 + $0x60] sm:$0xff]
        %v1164 = vld [vmem:[%s1150 + $0x68] sm:$0xff]
        %v1165 = vld [vmem:[%s1150 + $0x70] sm:$0xff]
        %v1166 = vld [vmem:[%s1150 + $0x78] sm:$0xff]
        %v1167 = vld [vmem:[%s1150 + $0x80] sm:$0xff]
        %v1168 = vld [vmem:[%s1150 + $0x88] sm:$0xff]
        %v1169 = vld [vmem:[%s1150 + $0x90] sm:$0xff]
        %v1170 = vld [vmem:[%s1150 + $0x98] sm:$0xff]
        %v1171 = vld [vmem:[%s1150 + $0xa0] sm:$0xff]
        %v1172 = vld [vmem:[%s1150 + $0xa8] sm:$0xff]
        %v1173 = vld [vmem:[%s1150 + $0xb0] sm:$0xff]
        %v1174 = vld [vmem:[%s1150 + $0xb8] sm:$0xff]
        %v1175 = vld [vmem:[%s1150 + $0xc0] sm:$0xff]
        %v1176 = vld [vmem:[%s1150 + $0xc8] sm:$0xff]
        %v1177 = vld [vmem:[%s1150 + $0xd0] sm:$0xff]
        %v1178 = vld [vmem:[%s1150 + $0xd8] sm:$0xff]
        %v1179 = vld [vmem:[%s1150 + $0xe0] sm:$0xff]
        %v1180 = vld [vmem:[%s1150 + $0xe8] sm:$0xff]
        %v1181 = vld [vmem:[%s1150 + $0xf0] sm:$0xff]
        %v1182 = vld [vmem:[%s1150 + $0xf8] sm:$0xff]
        %v1183 = vld [vmem:[%s1150 + $0x100] sm:$0xff]
        %v1184 = vld [vmem:[%s1150 + $0x108] sm:$0xff]
        %v1185 = vld [vmem:[%s1150 + $0x110] sm:$0xff]
        %v1186 = vld [vmem:[%s1150 + $0x118] sm:$0xff]
        %v1187 = vld [vmem:[%s1150 + $0x120] sm:$0xff]
        %v1188 = vld [vmem:[%s1150 + $0x128] sm:$0xff]
        %v1189 = vld [vmem:[%s1150 + $0x130] sm:$0xff]
        %v1190 = vld [vmem:[%s1150 + $0x138] sm:$0xff]
        %v1191 = vld [vmem:[%s1150 + $0x140] sm:$0xff]
        %v1192 = vld [vmem:[%s1150 + $0x148] sm:$0xff]
        %v1193 = vld [vmem:[%s1150 + $0x150] sm:$0xff]
        %v1194 = vld [vmem:[%s1150 + $0x158] sm:$0xff]
        %v1195 = vld [vmem:[%s1150 + $0x160] sm:$0xff]
        %v1196 = vld [vmem:[%s1150 + $0x168] sm:$0xff]
        %v1197 = vld [vmem:[%s1150 + $0x170] sm:$0xff]
        %v1198 = vld [vmem:[%s1150 + $0x178] sm:$0xff]
        %v1199 = vld [vmem:[%s1150 + $0x180] sm:$0xff]
        %v1200 = vld [vmem:[%s1150 + $0x188] sm:$0xff]
        %v1201 = vld [vmem:[%s1150 + $0x190] sm:$0xff]
        %v1202 = vld [vmem:[%s1150 + $0x198] sm:$0xff]
        %v1203 = vld [vmem:[%s1150 + $0x1a0] sm:$0xff]
        %v1204 = vld [vmem:[%s1150 + $0x1a8] sm:$0xff]
        %v1205 = vld [vmem:[%s1150 + $0x1b0] sm:$0xff]
        %v1206 = vld [vmem:[%s1150 + $0x1b8] sm:$0xff]
        %v1207 = vld [vmem:[%s1150 + $0x1c0] sm:$0xff]
        %v1208 = vld [vmem:[%s1150 + $0x1c8] sm:$0xff]
        %v1209 = vld [vmem:[%s1150 + $0x1d0] sm:$0xff]
        %v1210 = vld [vmem:[%s1150 + $0x1d8] sm:$0xff]
        %v1211 = vld [vmem:[%s1150 + $0x1e0] sm:$0xff]
        %v1212 = vld [vmem:[%s1150 + $0x1e8] sm:$0xff]
        %v1213 = vld [vmem:[%s1150 + $0x1f0] sm:$0xff]
        %v1214 = vld [vmem:[%s1150 + $0x1f8] sm:$0xff]
        %1215 = vmatprep.subr.mxu0 %v1152
        %1216 = vmatpush1.msra.mxu0 %v1151
        %1217 = vmatprep.subr.mxu0 %v1154
        %1218 = vmatpush1.msra.mxu0 %v1153
        %1219 = vmatprep.subr.mxu0 %v1156
        %1220 = vmatpush1.msra.mxu0 %v1155
        %1221 = vmatprep.subr.mxu0 %v1158
        %1222 = vmatpush1.msra.mxu0 %v1157
        %1223 = vmatprep.subr.mxu0 %v1160
        %1224 = vmatpush1.msra.mxu0 %v1159
        %1225 = vmatprep.subr.mxu0 %v1162
        %1226 = vmatpush1.msra.mxu0 %v1161
        %1227 = vmatprep.subr.mxu0 %v1164
        %1228 = vmatpush1.msra.mxu0 %v1163
        %1229 = vmatprep.subr.mxu0 %v1166
        %1230 = vmatpush1.msra.mxu0 %v1165
        %1231 = vmatprep.subr.mxu0 %v1168
        %1232 = vmatpush1.msra.mxu0 %v1167
        %1233 = vmatprep.subr.mxu0 %v1170
        %1234 = vmatpush1.msra.mxu0 %v1169
        %1235 = vmatprep.subr.mxu0 %v1172
        %1236 = vmatpush1.msra.mxu0 %v1171
        %1237 = vmatprep.subr.mxu0 %v1174
        %1238 = vmatpush1.msra.mxu0 %v1173
        %1239 = vmatprep.subr.mxu0 %v1176
        %1240 = vmatpush1.msra.mxu0 %v1175
        %1241 = vmatprep.subr.mxu0 %v1178
        %1242 = vmatpush1.msra.mxu0 %v1177
        %1243 = vmatprep.subr.mxu0 %v1180
        %1244 = vmatpush1.msra.mxu0 %v1179
        %1245 = vmatprep.subr.mxu0 %v1182
        %1246 = vmatpush1.msra.mxu0 %v1181
        %1247 = vmatprep.subr.mxu0 %v1184
        %1248 = vmatpush1.msra.mxu0 %v1183
        %1249 = vmatprep.subr.mxu0 %v1186
        %1250 = vmatpush1.msra.mxu0 %v1185
        %1251 = vmatprep.subr.mxu0 %v1188
        %1252 = vmatpush1.msra.mxu0 %v1187
        %1253 = vmatprep.subr.mxu0 %v1190
        %1254 = vmatpush1.msra.mxu0 %v1189
        %1255 = vmatprep.subr.mxu0 %v1192
        %1256 = vmatpush1.msra.mxu0 %v1191
        %1257 = vmatprep.subr.mxu0 %v1194
        %1258 = vmatpush1.msra.mxu0 %v1193
        %1259 = vmatprep.subr.mxu0 %v1196
        %1260 = vmatpush1.msra.mxu0 %v1195
        %1261 = vmatprep.subr.mxu0 %v1198
        %1262 = vmatpush1.msra.mxu0 %v1197
        %1263 = vmatprep.subr.mxu0 %v1200
        %1264 = vmatpush1.msra.mxu0 %v1199
        %1265 = vmatprep.subr.mxu0 %v1202
        %1266 = vmatpush1.msra.mxu0 %v1201
        %1267 = vmatprep.subr.mxu0 %v1204
        %1268 = vmatpush1.msra.mxu0 %v1203
        %1269 = vmatprep.subr.mxu0 %v1206
        %1270 = vmatpush1.msra.mxu0 %v1205
        %1271 = vmatprep.subr.mxu0 %v1208
        %1272 = vmatpush1.msra.mxu0 %v1207
        %1273 = vmatprep.subr.mxu0 %v1210
        %1274 = vmatpush1.msra.mxu0 %v1209
        %1275 = vmatprep.subr.mxu0 %v1212
        %1276 = vmatpush1.msra.mxu0 %v1211
        %1277 = vmatprep.subr.mxu0 %v1214
        %1278 = vmatpush1.msra.mxu0 %v1213
        %1279 = vmatprep.mubr.f32.mxu0 %v1143
        %1280 = vmatmul.mubr.f32.gmra.mrb[0].mxu0 %v1142
        %v1281 = vpop.f32.mrb[0].mxu0
        %v1282 = vadd.f32 0.0, %v1281
        %v1283 = vpop.f32.mrb[0].mxu0
        %v1284 = vadd.f32 0.0, %v1283
        %1285 = vmatprep.mubr.f32.mxu0 %v1145
        %1286 = vmatmul.mubr.f32.gmra.mrb[0].mxu0 %v1144
        %v1287 = vpop.f32.mrb[0].mxu0
        %v1288 = vadd.f32 0.0, %v1287
        %v1289 = vpop.f32.mrb[0].mxu0
        %v1290 = vadd.f32 0.0, %v1289
        %1291 = vmatprep.mubr.f32.mxu0 %v1147
        %1292 = vmatmul.mubr.f32.gmra.mrb[0].mxu0 %v1146
        %v1293 = vpop.f32.mrb[0].mxu0
        %v1294 = vadd.f32 0.0, %v1293
        %v1295 = vpop.f32.mrb[0].mxu0
        %v1296 = vadd.f32 0.0, %v1295
        %1297 = vmatprep.mubr.f32.mxu0 %v1149
        %1298 = vmatmul.mubr.f32.gmra.mrb[0].mxu0 %v1148
        %v1299 = vpop.f32.mrb[0].mxu0
        %v1300 = vadd.f32 0.0, %v1299
        %v1301 = vpop.f32.mrb[0].mxu0
        %v1302 = vadd.f32 0.0, %v1301
        %1303 = vdwg.mxu0
        %v1304 = vadd.f32 %v1104, %v1282
        %v1305 = vadd.f32 %v1106, %v1284
        %v1306 = vadd.f32 %v1110, %v1288
        %v1307 = vadd.f32 %v1112, %v1290
        %v1308 = vadd.f32 %v1116, %v1294
        %v1309 = vadd.f32 %v1118, %v1296
        %v1310 = vadd.f32 %v1122, %v1300
        %v1311 = vadd.f32 %v1124, %v1302
        %1312 = vset.pattern.permute.xlu0 3
        %1313 = vperm.xlu0 %1312, %v763
        %v1314 = vpop.permute.xlu0 %1313
        %1316 = vset.pattern.permute.xlu0 3
        %1317 = vperm.xlu0 %1316, %v764
        %v1318 = vpop.permute.xlu0 %1317
        %1320 = vset.pattern.permute.xlu0 3
        %1321 = vperm.xlu0 %1320, %v765
        %v1322 = vpop.permute.xlu0 %1321
        %1324 = vset.pattern.permute.xlu0 3
        %1325 = vperm.xlu0 %1324, %v766
        %v1326 = vpop.permute.xlu0 %1325
        %v1328 = vmul.f32 %v755, %v1314
        %v1329 = vmul.f32 %v756, %v1314
        %v1330 = vmul.f32 %v757, %v1318
        %v1331 = vmul.f32 %v758, %v1318
        %v1332 = vmul.f32 %v759, %v1322
        %v1333 = vmul.f32 %v760, %v1322
        %v1334 = vmul.f32 %v761, %v1326
        %v1335 = vmul.f32 %v762, %v1326
        %s1336 = scalar_lea.vmem [#allocation5], 1536
        %v1337 = vld [vmem:[%s1336] sm:$0xff]
        %v1338 = vld [vmem:[%s1336 + $0x8] sm:$0xff]
        %v1339 = vld [vmem:[%s1336 + $0x10] sm:$0xff]
        %v1340 = vld [vmem:[%s1336 + $0x18] sm:$0xff]
        %v1341 = vld [vmem:[%s1336 + $0x20] sm:$0xff]
        %v1342 = vld [vmem:[%s1336 + $0x28] sm:$0xff]
        %v1343 = vld [vmem:[%s1336 + $0x30] sm:$0xff]
        %v1344 = vld [vmem:[%s1336 + $0x38] sm:$0xff]
        %v1345 = vld [vmem:[%s1336 + $0x40] sm:$0xff]
        %v1346 = vld [vmem:[%s1336 + $0x48] sm:$0xff]
        %v1347 = vld [vmem:[%s1336 + $0x50] sm:$0xff]
        %v1348 = vld [vmem:[%s1336 + $0x58] sm:$0xff]
        %v1349 = vld [vmem:[%s1336 + $0x60] sm:$0xff]
        %v1350 = vld [vmem:[%s1336 + $0x68] sm:$0xff]
        %v1351 = vld [vmem:[%s1336 + $0x70] sm:$0xff]
        %v1352 = vld [vmem:[%s1336 + $0x78] sm:$0xff]
        %v1353 = vld [vmem:[%s1336 + $0x80] sm:$0xff]
        %v1354 = vld [vmem:[%s1336 + $0x88] sm:$0xff]
        %v1355 = vld [vmem:[%s1336 + $0x90] sm:$0xff]
        %v1356 = vld [vmem:[%s1336 + $0x98] sm:$0xff]
        %v1357 = vld [vmem:[%s1336 + $0xa0] sm:$0xff]
        %v1358 = vld [vmem:[%s1336 + $0xa8] sm:$0xff]
        %v1359 = vld [vmem:[%s1336 + $0xb0] sm:$0xff]
        %v1360 = vld [vmem:[%s1336 + $0xb8] sm:$0xff]
        %v1361 = vld [vmem:[%s1336 + $0xc0] sm:$0xff]
        %v1362 = vld [vmem:[%s1336 + $0xc8] sm:$0xff]
        %v1363 = vld [vmem:[%s1336 + $0xd0] sm:$0xff]
        %v1364 = vld [vmem:[%s1336 + $0xd8] sm:$0xff]
        %v1365 = vld [vmem:[%s1336 + $0xe0] sm:$0xff]
        %v1366 = vld [vmem:[%s1336 + $0xe8] sm:$0xff]
        %v1367 = vld [vmem:[%s1336 + $0xf0] sm:$0xff]
        %v1368 = vld [vmem:[%s1336 + $0xf8] sm:$0xff]
        %v1369 = vld [vmem:[%s1336 + $0x100] sm:$0xff]
        %v1370 = vld [vmem:[%s1336 + $0x108] sm:$0xff]
        %v1371 = vld [vmem:[%s1336 + $0x110] sm:$0xff]
        %v1372 = vld [vmem:[%s1336 + $0x118] sm:$0xff]
        %v1373 = vld [vmem:[%s1336 + $0x120] sm:$0xff]
        %v1374 = vld [vmem:[%s1336 + $0x128] sm:$0xff]
        %v1375 = vld [vmem:[%s1336 + $0x130] sm:$0xff]
        %v1376 = vld [vmem:[%s1336 + $0x138] sm:$0xff]
        %v1377 = vld [vmem:[%s1336 + $0x140] sm:$0xff]
        %v1378 = vld [vmem:[%s1336 + $0x148] sm:$0xff]
        %v1379 = vld [vmem:[%s1336 + $0x150] sm:$0xff]
        %v1380 = vld [vmem:[%s1336 + $0x158] sm:$0xff]
        %v1381 = vld [vmem:[%s1336 + $0x160] sm:$0xff]
        %v1382 = vld [vmem:[%s1336 + $0x168] sm:$0xff]
        %v1383 = vld [vmem:[%s1336 + $0x170] sm:$0xff]
        %v1384 = vld [vmem:[%s1336 + $0x178] sm:$0xff]
        %v1385 = vld [vmem:[%s1336 + $0x180] sm:$0xff]
        %v1386 = vld [vmem:[%s1336 + $0x188] sm:$0xff]
        %v1387 = vld [vmem:[%s1336 + $0x190] sm:$0xff]
        %v1388 = vld [vmem:[%s1336 + $0x198] sm:$0xff]
        %v1389 = vld [vmem:[%s1336 + $0x1a0] sm:$0xff]
        %v1390 = vld [vmem:[%s1336 + $0x1a8] sm:$0xff]
        %v1391 = vld [vmem:[%s1336 + $0x1b0] sm:$0xff]
        %v1392 = vld [vmem:[%s1336 + $0x1b8] sm:$0xff]
        %v1393 = vld [vmem:[%s1336 + $0x1c0] sm:$0xff]
        %v1394 = vld [vmem:[%s1336 + $0x1c8] sm:$0xff]
        %v1395 = vld [vmem:[%s1336 + $0x1d0] sm:$0xff]
        %v1396 = vld [vmem:[%s1336 + $0x1d8] sm:$0xff]
        %v1397 = vld [vmem:[%s1336 + $0x1e0] sm:$0xff]
        %v1398 = vld [vmem:[%s1336 + $0x1e8] sm:$0xff]
        %v1399 = vld [vmem:[%s1336 + $0x1f0] sm:$0xff]
        %v1400 = vld [vmem:[%s1336 + $0x1f8] sm:$0xff]
        %1401 = vmatprep.subr.mxu0 %v1338
        %1402 = vmatpush1.msra.mxu0 %v1337
        %1403 = vmatprep.subr.mxu0 %v1340
        %1404 = vmatpush1.msra.mxu0 %v1339
        %1405 = vmatprep.subr.mxu0 %v1342
        %1406 = vmatpush1.msra.mxu0 %v1341
        %1407 = vmatprep.subr.mxu0 %v1344
        %1408 = vmatpush1.msra.mxu0 %v1343
        %1409 = vmatprep.subr.mxu0 %v1346
        %1410 = vmatpush1.msra.mxu0 %v1345
        %1411 = vmatprep.subr.mxu0 %v1348
        %1412 = vmatpush1.msra.mxu0 %v1347
        %1413 = vmatprep.subr.mxu0 %v1350
        %1414 = vmatpush1.msra.mxu0 %v1349
        %1415 = vmatprep.subr.mxu0 %v1352
        %1416 = vmatpush1.msra.mxu0 %v1351
        %1417 = vmatprep.subr.mxu0 %v1354
        %1418 = vmatpush1.msra.mxu0 %v1353
        %1419 = vmatprep.subr.mxu0 %v1356
        %1420 = vmatpush1.msra.mxu0 %v1355
        %1421 = vmatprep.subr.mxu0 %v1358
        %1422 = vmatpush1.msra.mxu0 %v1357
        %1423 = vmatprep.subr.mxu0 %v1360
        %1424 = vmatpush1.msra.mxu0 %v1359
        %1425 = vmatprep.subr.mxu0 %v1362
        %1426 = vmatpush1.msra.mxu0 %v1361
        %1427 = vmatprep.subr.mxu0 %v1364
        %1428 = vmatpush1.msra.mxu0 %v1363
        %1429 = vmatprep.subr.mxu0 %v1366
        %1430 = vmatpush1.msra.mxu0 %v1365
        %1431 = vmatprep.subr.mxu0 %v1368
        %1432 = vmatpush1.msra.mxu0 %v1367
        %1433 = vmatprep.subr.mxu0 %v1370
        %1434 = vmatpush1.msra.mxu0 %v1369
        %1435 = vmatprep.subr.mxu0 %v1372
        %1436 = vmatpush1.msra.mxu0 %v1371
        %1437 = vmatprep.subr.mxu0 %v1374
        %1438 = vmatpush1.msra.mxu0 %v1373
        %1439 = vmatprep.subr.mxu0 %v1376
        %1440 = vmatpush1.msra.mxu0 %v1375
        %1441 = vmatprep.subr.mxu0 %v1378
        %1442 = vmatpush1.msra.mxu0 %v1377
        %1443 = vmatprep.subr.mxu0 %v1380
        %1444 = vmatpush1.msra.mxu0 %v1379
        %1445 = vmatprep.subr.mxu0 %v1382
        %1446 = vmatpush1.msra.mxu0 %v1381
        %1447 = vmatprep.subr.mxu0 %v1384
        %1448 = vmatpush1.msra.mxu0 %v1383
        %1449 = vmatprep.subr.mxu0 %v1386
        %1450 = vmatpush1.msra.mxu0 %v1385
        %1451 = vmatprep.subr.mxu0 %v1388
        %1452 = vmatpush1.msra.mxu0 %v1387
        %1453 = vmatprep.subr.mxu0 %v1390
        %1454 = vmatpush1.msra.mxu0 %v1389
        %1455 = vmatprep.subr.mxu0 %v1392
        %1456 = vmatpush1.msra.mxu0 %v1391
        %1457 = vmatprep.subr.mxu0 %v1394
        %1458 = vmatpush1.msra.mxu0 %v1393
        %1459 = vmatprep.subr.mxu0 %v1396
        %1460 = vmatpush1.msra.mxu0 %v1395
        %1461 = vmatprep.subr.mxu0 %v1398
        %1462 = vmatpush1.msra.mxu0 %v1397
        %1463 = vmatprep.subr.mxu0 %v1400
        %1464 = vmatpush1.msra.mxu0 %v1399
        %1465 = vmatprep.mubr.f32.mxu0 %v1329
        %1466 = vmatmul.mubr.f32.gmra.mrb[0].mxu0 %v1328
        %v1467 = vpop.f32.mrb[0].mxu0
        %v1468 = vadd.f32 0.0, %v1467
        %v1469 = vpop.f32.mrb[0].mxu0
        %v1470 = vadd.f32 0.0, %v1469
        %1471 = vmatprep.mubr.f32.mxu0 %v1331
        %1472 = vmatmul.mubr.f32.gmra.mrb[0].mxu0 %v1330
        %v1473 = vpop.f32.mrb[0].mxu0
        %v1474 = vadd.f32 0.0, %v1473
        %v1475 = vpop.f32.mrb[0].mxu0
        %v1476 = vadd.f32 0.0, %v1475
        %1477 = vmatprep.mubr.f32.mxu0 %v1333
        %1478 = vmatmul.mubr.f32.gmra.mrb[0].mxu0 %v1332
        %v1479 = vpop.f32.mrb[0].mxu0
        %v1480 = vadd.f32 0.0, %v1479
        %v1481 = vpop.f32.mrb[0].mxu0
        %v1482 = vadd.f32 0.0, %v1481
        %1483 = vmatprep.mubr.f32.mxu0 %v1335
        %1484 = vmatmul.mubr.f32.gmra.mrb[0].mxu0 %v1334
        %v1485 = vpop.f32.mrb[0].mxu0
        %v1486 = vadd.f32 0.0, %v1485
        %v1487 = vpop.f32.mrb[0].mxu0
        %v1488 = vadd.f32 0.0, %v1487
        %1489 = vdwg.mxu0
        %v1490 = vadd.f32 %v1304, %v1468
        %v1491 = vadd.f32 %v1305, %v1470
        %v1492 = vadd.f32 %v1306, %v1474
        %v1493 = vadd.f32 %v1307, %v1476
        %v1494 = vadd.f32 %v1308, %v1480
        %v1495 = vadd.f32 %v1309, %v1482
        %v1496 = vadd.f32 %v1310, %v1486
        %v1497 = vadd.f32 %v1311, %v1488
        %1498 = vset.pattern.permute.xlu0 4
        %1499 = vperm.xlu0 %1498, %v763
        %v1500 = vpop.permute.xlu0 %1499
        %1502 = vset.pattern.permute.xlu0 4
        %1503 = vperm.xlu0 %1502, %v764
        %v1504 = vpop.permute.xlu0 %1503
        %1506 = vset.pattern.permute.xlu0 4
        %1507 = vperm.xlu0 %1506, %v765
        %v1508 = vpop.permute.xlu0 %1507
        %1510 = vset.pattern.permute.xlu0 4
        %1511 = vperm.xlu0 %1510, %v766
        %v1512 = vpop.permute.xlu0 %1511
        %v1514 = vmul.f32 %v755, %v1500
        %v1515 = vmul.f32 %v756, %v1500
        %v1516 = vmul.f32 %v757, %v1504
        %v1517 = vmul.f32 %v758, %v1504
        %v1518 = vmul.f32 %v759, %v1508
        %v1519 = vmul.f32 %v760, %v1508
        %v1520 = vmul.f32 %v761, %v1512
        %v1521 = vmul.f32 %v762, %v1512
        %s1522 = scalar_lea.vmem [#allocation5], 2048
        %v1523 = vld [vmem:[%s1522] sm:$0xff]
        %v1524 = vld [vmem:[%s1522 + $0x8] sm:$0xff]
        %v1525 = vld [vmem:[%s1522 + $0x10] sm:$0xff]
        %v1526 = vld [vmem:[%s1522 + $0x18] sm:$0xff]
        %v1527 = vld [vmem:[%s1522 + $0x20] sm:$0xff]
        %v1528 = vld [vmem:[%s1522 + $0x28] sm:$0xff]
        %v1529 = vld [vmem:[%s1522 + $0x30] sm:$0xff]
        %v1530 = vld [vmem:[%s1522 + $0x38] sm:$0xff]
        %v1531 = vld [vmem:[%s1522 + $0x40] sm:$0xff]
        %v1532 = vld [vmem:[%s1522 + $0x48] sm:$0xff]
        %v1533 = vld [vmem:[%s1522 + $0x50] sm:$0xff]
        %v1534 = vld [vmem:[%s1522 + $0x58] sm:$0xff]
        %v1535 = vld [vmem:[%s1522 + $0x60] sm:$0xff]
        %v1536 = vld [vmem:[%s1522 + $0x68] sm:$0xff]
        %v1537 = vld [vmem:[%s1522 + $0x70] sm:$0xff]
        %v1538 = vld [vmem:[%s1522 + $0x78] sm:$0xff]
        %v1539 = vld [vmem:[%s1522 + $0x80] sm:$0xff]
        %v1540 = vld [vmem:[%s1522 + $0x88] sm:$0xff]
        %v1541 = vld [vmem:[%s1522 + $0x90] sm:$0xff]
        %v1542 = vld [vmem:[%s1522 + $0x98] sm:$0xff]
        %v1543 = vld [vmem:[%s1522 + $0xa0] sm:$0xff]
        %v1544 = vld [vmem:[%s1522 + $0xa8] sm:$0xff]
        %v1545 = vld [vmem:[%s1522 + $0xb0] sm:$0xff]
        %v1546 = vld [vmem:[%s1522 + $0xb8] sm:$0xff]
        %v1547 = vld [vmem:[%s1522 + $0xc0] sm:$0xff]
        %v1548 = vld [vmem:[%s1522 + $0xc8] sm:$0xff]
        %v1549 = vld [vmem:[%s1522 + $0xd0] sm:$0xff]
        %v1550 = vld [vmem:[%s1522 + $0xd8] sm:$0xff]
        %v1551 = vld [vmem:[%s1522 + $0xe0] sm:$0xff]
        %v1552 = vld [vmem:[%s1522 + $0xe8] sm:$0xff]
        %v1553 = vld [vmem:[%s1522 + $0xf0] sm:$0xff]
        %v1554 = vld [vmem:[%s1522 + $0xf8] sm:$0xff]
        %v1555 = vld [vmem:[%s1522 + $0x100] sm:$0xff]
        %v1556 = vld [vmem:[%s1522 + $0x108] sm:$0xff]
        %v1557 = vld [vmem:[%s1522 + $0x110] sm:$0xff]
        %v1558 = vld [vmem:[%s1522 + $0x118] sm:$0xff]
        %v1559 = vld [vmem:[%s1522 + $0x120] sm:$0xff]
        %v1560 = vld [vmem:[%s1522 + $0x128] sm:$0xff]
        %v1561 = vld [vmem:[%s1522 + $0x130] sm:$0xff]
        %v1562 = vld [vmem:[%s1522 + $0x138] sm:$0xff]
        %v1563 = vld [vmem:[%s1522 + $0x140] sm:$0xff]
        %v1564 = vld [vmem:[%s1522 + $0x148] sm:$0xff]
        %v1565 = vld [vmem:[%s1522 + $0x150] sm:$0xff]
        %v1566 = vld [vmem:[%s1522 + $0x158] sm:$0xff]
        %v1567 = vld [vmem:[%s1522 + $0x160] sm:$0xff]
        %v1568 = vld [vmem:[%s1522 + $0x168] sm:$0xff]
        %v1569 = vld [vmem:[%s1522 + $0x170] sm:$0xff]
        %v1570 = vld [vmem:[%s1522 + $0x178] sm:$0xff]
        %v1571 = vld [vmem:[%s1522 + $0x180] sm:$0xff]
        %v1572 = vld [vmem:[%s1522 + $0x188] sm:$0xff]
        %v1573 = vld [vmem:[%s1522 + $0x190] sm:$0xff]
        %v1574 = vld [vmem:[%s1522 + $0x198] sm:$0xff]
        %v1575 = vld [vmem:[%s1522 + $0x1a0] sm:$0xff]
        %v1576 = vld [vmem:[%s1522 + $0x1a8] sm:$0xff]
        %v1577 = vld [vmem:[%s1522 + $0x1b0] sm:$0xff]
        %v1578 = vld [vmem:[%s1522 + $0x1b8] sm:$0xff]
        %v1579 = vld [vmem:[%s1522 + $0x1c0] sm:$0xff]
        %v1580 = vld [vmem:[%s1522 + $0x1c8] sm:$0xff]
        %v1581 = vld [vmem:[%s1522 + $0x1d0] sm:$0xff]
        %v1582 = vld [vmem:[%s1522 + $0x1d8] sm:$0xff]
        %v1583 = vld [vmem:[%s1522 + $0x1e0] sm:$0xff]
        %v1584 = vld [vmem:[%s1522 + $0x1e8] sm:$0xff]
        %v1585 = vld [vmem:[%s1522 + $0x1f0] sm:$0xff]
        %v1586 = vld [vmem:[%s1522 + $0x1f8] sm:$0xff]
        %1587 = vmatprep.subr.mxu0 %v1524
        %1588 = vmatpush1.msra.mxu0 %v1523
        %1589 = vmatprep.subr.mxu0 %v1526
        %1590 = vmatpush1.msra.mxu0 %v1525
        %1591 = vmatprep.subr.mxu0 %v1528
        %1592 = vmatpush1.msra.mxu0 %v1527
        %1593 = vmatprep.subr.mxu0 %v1530
        %1594 = vmatpush1.msra.mxu0 %v1529
        %1595 = vmatprep.subr.mxu0 %v1532
        %1596 = vmatpush1.msra.mxu0 %v1531
        %1597 = vmatprep.subr.mxu0 %v1534
        %1598 = vmatpush1.msra.mxu0 %v1533
        %1599 = vmatprep.subr.mxu0 %v1536
        %1600 = vmatpush1.msra.mxu0 %v1535
        %1601 = vmatprep.subr.mxu0 %v1538
        %1602 = vmatpush1.msra.mxu0 %v1537
        %1603 = vmatprep.subr.mxu0 %v1540
        %1604 = vmatpush1.msra.mxu0 %v1539
        %1605 = vmatprep.subr.mxu0 %v1542
        %1606 = vmatpush1.msra.mxu0 %v1541
        %1607 = vmatprep.subr.mxu0 %v1544
        %1608 = vmatpush1.msra.mxu0 %v1543
        %1609 = vmatprep.subr.mxu0 %v1546
        %1610 = vmatpush1.msra.mxu0 %v1545
        %1611 = vmatprep.subr.mxu0 %v1548
        %1612 = vmatpush1.msra.mxu0 %v1547
        %1613 = vmatprep.subr.mxu0 %v1550
        %1614 = vmatpush1.msra.mxu0 %v1549
        %1615 = vmatprep.subr.mxu0 %v1552
        %1616 = vmatpush1.msra.mxu0 %v1551
        %1617 = vmatprep.subr.mxu0 %v1554
        %1618 = vmatpush1.msra.mxu0 %v1553
        %1619 = vmatprep.subr.mxu0 %v1556
        %1620 = vmatpush1.msra.mxu0 %v1555
        %1621 = vmatprep.subr.mxu0 %v1558
        %1622 = vmatpush1.msra.mxu0 %v1557
        %1623 = vmatprep.subr.mxu0 %v1560
        %1624 = vmatpush1.msra.mxu0 %v1559
        %1625 = vmatprep.subr.mxu0 %v1562
        %1626 = vmatpush1.msra.mxu0 %v1561
        %1627 = vmatprep.subr.mxu0 %v1564
        %1628 = vmatpush1.msra.mxu0 %v1563
        %1629 = vmatprep.subr.mxu0 %v1566
        %1630 = vmatpush1.msra.mxu0 %v1565
        %1631 = vmatprep.subr.mxu0 %v1568
        %1632 = vmatpush1.msra.mxu0 %v1567
        %1633 = vmatprep.subr.mxu0 %v1570
        %1634 = vmatpush1.msra.mxu0 %v1569
        %1635 = vmatprep.subr.mxu0 %v1572
        %1636 = vmatpush1.msra.mxu0 %v1571
        %1637 = vmatprep.subr.mxu0 %v1574
        %1638 = vmatpush1.msra.mxu0 %v1573
        %1639 = vmatprep.subr.mxu0 %v1576
        %1640 = vmatpush1.msra.mxu0 %v1575
        %1641 = vmatprep.subr.mxu0 %v1578
        %1642 = vmatpush1.msra.mxu0 %v1577
        %1643 = vmatprep.subr.mxu0 %v1580
        %1644 = vmatpush1.msra.mxu0 %v1579
        %1645 = vmatprep.subr.mxu0 %v1582
        %1646 = vmatpush1.msra.mxu0 %v1581
        %1647 = vmatprep.subr.mxu0 %v1584
        %1648 = vmatpush1.msra.mxu0 %v1583
        %1649 = vmatprep.subr.mxu0 %v1586
        %1650 = vmatpush1.msra.mxu0 %v1585
        %1651 = vmatprep.mubr.f32.mxu0 %v1515
        %1652 = vmatmul.mubr.f32.gmra.mrb[0].mxu0 %v1514
        %v1653 = vpop.f32.mrb[0].mxu0
        %v1654 = vadd.f32 0.0, %v1653
        %v1655 = vpop.f32.mrb[0].mxu0
        %v1656 = vadd.f32 0.0, %v1655
        %1657 = vmatprep.mubr.f32.mxu0 %v1517
        %1658 = vmatmul.mubr.f32.gmra.mrb[0].mxu0 %v1516
        %v1659 = vpop.f32.mrb[0].mxu0
        %v1660 = vadd.f32 0.0, %v1659
        %v1661 = vpop.f32.mrb[0].mxu0
        %v1662 = vadd.f32 0.0, %v1661
        %1663 = vmatprep.mubr.f32.mxu0 %v1519
        %1664 = vmatmul.mubr.f32.gmra.mrb[0].mxu0 %v1518
        %v1665 = vpop.f32.mrb[0].mxu0
        %v1666 = vadd.f32 0.0, %v1665
        %v1667 = vpop.f32.mrb[0].mxu0
        %v1668 = vadd.f32 0.0, %v1667
        %1669 = vmatprep.mubr.f32.mxu0 %v1521
        %1670 = vmatmul.mubr.f32.gmra.mrb[0].mxu0 %v1520
        %v1671 = vpop.f32.mrb[0].mxu0
        %v1672 = vadd.f32 0.0, %v1671
        %v1673 = vpop.f32.mrb[0].mxu0
        %v1674 = vadd.f32 0.0, %v1673
        %1675 = vdwg.mxu0
        %v1676 = vadd.f32 %v1490, %v1654
        %v1677 = vadd.f32 %v1491, %v1656
        %v1678 = vadd.f32 %v1492, %v1660
        %v1679 = vadd.f32 %v1493, %v1662
        %v1680 = vadd.f32 %v1494, %v1666
        %v1681 = vadd.f32 %v1495, %v1668
        %v1682 = vadd.f32 %v1496, %v1672
        %v1683 = vadd.f32 %v1497, %v1674
        %1684 = vset.pattern.permute.xlu0 5
        %1685 = vperm.xlu0 %1684, %v763
        %v1686 = vpop.permute.xlu0 %1685
        %1688 = vset.pattern.permute.xlu0 5
        %1689 = vperm.xlu0 %1688, %v764
        %v1690 = vpop.permute.xlu0 %1689
        %1692 = vset.pattern.permute.xlu0 5
        %1693 = vperm.xlu0 %1692, %v765
        %v1694 = vpop.permute.xlu0 %1693
        %1696 = vset.pattern.permute.xlu0 5
        %1697 = vperm.xlu0 %1696, %v766
        %v1698 = vpop.permute.xlu0 %1697
        %v1700 = vmul.f32 %v755, %v1686
        %v1701 = vmul.f32 %v756, %v1686
        %v1702 = vmul.f32 %v757, %v1690
        %v1703 = vmul.f32 %v758, %v1690
        %v1704 = vmul.f32 %v759, %v1694
        %v1705 = vmul.f32 %v760, %v1694
        %v1706 = vmul.f32 %v761, %v1698
        %v1707 = vmul.f32 %v762, %v1698
        %s1708 = scalar_lea.vmem [#allocation5], 2560
        %v1709 = vld [vmem:[%s1708] sm:$0xff]
        %v1710 = vld [vmem:[%s1708 + $0x8] sm:$0xff]
        %v1711 = vld [vmem:[%s1708 + $0x10] sm:$0xff]
        %v1712 = vld [vmem:[%s1708 + $0x18] sm:$0xff]
        %v1713 = vld [vmem:[%s1708 + $0x20] sm:$0xff]
        %v1714 = vld [vmem:[%s1708 + $0x28] sm:$0xff]
        %v1715 = vld [vmem:[%s1708 + $0x30] sm:$0xff]
        %v1716 = vld [vmem:[%s1708 + $0x38] sm:$0xff]
        %v1717 = vld [vmem:[%s1708 + $0x40] sm:$0xff]
        %v1718 = vld [vmem:[%s1708 + $0x48] sm:$0xff]
        %v1719 = vld [vmem:[%s1708 + $0x50] sm:$0xff]
        %v1720 = vld [vmem:[%s1708 + $0x58] sm:$0xff]
        %v1721 = vld [vmem:[%s1708 + $0x60] sm:$0xff]
        %v1722 = vld [vmem:[%s1708 + $0x68] sm:$0xff]
        %v1723 = vld [vmem:[%s1708 + $0x70] sm:$0xff]
        %v1724 = vld [vmem:[%s1708 + $0x78] sm:$0xff]
        %v1725 = vld [vmem:[%s1708 + $0x80] sm:$0xff]
        %v1726 = vld [vmem:[%s1708 + $0x88] sm:$0xff]
        %v1727 = vld [vmem:[%s1708 + $0x90] sm:$0xff]
        %v1728 = vld [vmem:[%s1708 + $0x98] sm:$0xff]
        %v1729 = vld [vmem:[%s1708 + $0xa0] sm:$0xff]
        %v1730 = vld [vmem:[%s1708 + $0xa8] sm:$0xff]
        %v1731 = vld [vmem:[%s1708 + $0xb0] sm:$0xff]
        %v1732 = vld [vmem:[%s1708 + $0xb8] sm:$0xff]
        %v1733 = vld [vmem:[%s1708 + $0xc0] sm:$0xff]
        %v1734 = vld [vmem:[%s1708 + $0xc8] sm:$0xff]
        %v1735 = vld [vmem:[%s1708 + $0xd0] sm:$0xff]
        %v1736 = vld [vmem:[%s1708 + $0xd8] sm:$0xff]
        %v1737 = vld [vmem:[%s1708 + $0xe0] sm:$0xff]
        %v1738 = vld [vmem:[%s1708 + $0xe8] sm:$0xff]
        %v1739 = vld [vmem:[%s1708 + $0xf0] sm:$0xff]
        %v1740 = vld [vmem:[%s1708 + $0xf8] sm:$0xff]
        %v1741 = vld [vmem:[%s1708 + $0x100] sm:$0xff]
        %v1742 = vld [vmem:[%s1708 + $0x108] sm:$0xff]
        %v1743 = vld [vmem:[%s1708 + $0x110] sm:$0xff]
        %v1744 = vld [vmem:[%s1708 + $0x118] sm:$0xff]
        %v1745 = vld [vmem:[%s1708 + $0x120] sm:$0xff]
        %v1746 = vld [vmem:[%s1708 + $0x128] sm:$0xff]
        %v1747 = vld [vmem:[%s1708 + $0x130] sm:$0xff]
        %v1748 = vld [vmem:[%s1708 + $0x138] sm:$0xff]
        %v1749 = vld [vmem:[%s1708 + $0x140] sm:$0xff]
        %v1750 = vld [vmem:[%s1708 + $0x148] sm:$0xff]
        %v1751 = vld [vmem:[%s1708 + $0x150] sm:$0xff]
        %v1752 = vld [vmem:[%s1708 + $0x158] sm:$0xff]
        %v1753 = vld [vmem:[%s1708 + $0x160] sm:$0xff]
        %v1754 = vld [vmem:[%s1708 + $0x168] sm:$0xff]
        %v1755 = vld [vmem:[%s1708 + $0x170] sm:$0xff]
        %v1756 = vld [vmem:[%s1708 + $0x178] sm:$0xff]
        %v1757 = vld [vmem:[%s1708 + $0x180] sm:$0xff]
        %v1758 = vld [vmem:[%s1708 + $0x188] sm:$0xff]
        %v1759 = vld [vmem:[%s1708 + $0x190] sm:$0xff]
        %v1760 = vld [vmem:[%s1708 + $0x198] sm:$0xff]
        %v1761 = vld [vmem:[%s1708 + $0x1a0] sm:$0xff]
        %v1762 = vld [vmem:[%s1708 + $0x1a8] sm:$0xff]
        %v1763 = vld [vmem:[%s1708 + $0x1b0] sm:$0xff]
        %v1764 = vld [vmem:[%s1708 + $0x1b8] sm:$0xff]
        %v1765 = vld [vmem:[%s1708 + $0x1c0] sm:$0xff]
        %v1766 = vld [vmem:[%s1708 + $0x1c8] sm:$0xff]
        %v1767 = vld [vmem:[%s1708 + $0x1d0] sm:$0xff]
        %v1768 = vld [vmem:[%s1708 + $0x1d8] sm:$0xff]
        %v1769 = vld [vmem:[%s1708 + $0x1e0] sm:$0xff]
        %v1770 = vld [vmem:[%s1708 + $0x1e8] sm:$0xff]
        %v1771 = vld [vmem:[%s1708 + $0x1f0] sm:$0xff]
        %v1772 = vld [vmem:[%s1708 + $0x1f8] sm:$0xff]
        %1773 = vmatprep.subr.mxu0 %v1710
        %1774 = vmatpush1.msra.mxu0 %v1709
        %1775 = vmatprep.subr.mxu0 %v1712
        %1776 = vmatpush1.msra.mxu0 %v1711
        %1777 = vmatprep.subr.mxu0 %v1714
        %1778 = vmatpush1.msra.mxu0 %v1713
        %1779 = vmatprep.subr.mxu0 %v1716
        %1780 = vmatpush1.msra.mxu0 %v1715
        %1781 = vmatprep.subr.mxu0 %v1718
        %1782 = vmatpush1.msra.mxu0 %v1717
        %1783 = vmatprep.subr.mxu0 %v1720
        %1784 = vmatpush1.msra.mxu0 %v1719
        %1785 = vmatprep.subr.mxu0 %v1722
        %1786 = vmatpush1.msra.mxu0 %v1721
        %1787 = vmatprep.subr.mxu0 %v1724
        %1788 = vmatpush1.msra.mxu0 %v1723
        %1789 = vmatprep.subr.mxu0 %v1726
        %1790 = vmatpush1.msra.mxu0 %v1725
        %1791 = vmatprep.subr.mxu0 %v1728
        %1792 = vmatpush1.msra.mxu0 %v1727
        %1793 = vmatprep.subr.mxu0 %v1730
        %1794 = vmatpush1.msra.mxu0 %v1729
        %1795 = vmatprep.subr.mxu0 %v1732
        %1796 = vmatpush1.msra.mxu0 %v1731
        %1797 = vmatprep.subr.mxu0 %v1734
        %1798 = vmatpush1.msra.mxu0 %v1733
        %1799 = vmatprep.subr.mxu0 %v1736
        %1800 = vmatpush1.msra.mxu0 %v1735
        %1801 = vmatprep.subr.mxu0 %v1738
        %1802 = vmatpush1.msra.mxu0 %v1737
        %1803 = vmatprep.subr.mxu0 %v1740
        %1804 = vmatpush1.msra.mxu0 %v1739
        %1805 = vmatprep.subr.mxu0 %v1742
        %1806 = vmatpush1.msra.mxu0 %v1741
        %1807 = vmatprep.subr.mxu0 %v1744
        %1808 = vmatpush1.msra.mxu0 %v1743
        %1809 = vmatprep.subr.mxu0 %v1746
        %1810 = vmatpush1.msra.mxu0 %v1745
        %1811 = vmatprep.subr.mxu0 %v1748
        %1812 = vmatpush1.msra.mxu0 %v1747
        %1813 = vmatprep.subr.mxu0 %v1750
        %1814 = vmatpush1.msra.mxu0 %v1749
        %1815 = vmatprep.subr.mxu0 %v1752
        %1816 = vmatpush1.msra.mxu0 %v1751
        %1817 = vmatprep.subr.mxu0 %v1754
        %1818 = vmatpush1.msra.mxu0 %v1753
        %1819 = vmatprep.subr.mxu0 %v1756
        %1820 = vmatpush1.msra.mxu0 %v1755
        %1821 = vmatprep.subr.mxu0 %v1758
        %1822 = vmatpush1.msra.mxu0 %v1757
        %1823 = vmatprep.subr.mxu0 %v1760
        %1824 = vmatpush1.msra.mxu0 %v1759
        %1825 = vmatprep.subr.mxu0 %v1762
        %1826 = vmatpush1.msra.mxu0 %v1761
        %1827 = vmatprep.subr.mxu0 %v1764
        %1828 = vmatpush1.msra.mxu0 %v1763
        %1829 = vmatprep.subr.mxu0 %v1766
        %1830 = vmatpush1.msra.mxu0 %v1765
        %1831 = vmatprep.subr.mxu0 %v1768
        %1832 = vmatpush1.msra.mxu0 %v1767
        %1833 = vmatprep.subr.mxu0 %v1770
        %1834 = vmatpush1.msra.mxu0 %v1769
        %1835 = vmatprep.subr.mxu0 %v1772
        %1836 = vmatpush1.msra.mxu0 %v1771
        %1837 = vmatprep.mubr.f32.mxu0 %v1701
        %1838 = vmatmul.mubr.f32.gmra.mrb[0].mxu0 %v1700
        %v1839 = vpop.f32.mrb[0].mxu0
        %v1840 = vadd.f32 0.0, %v1839
        %v1841 = vpop.f32.mrb[0].mxu0
        %v1842 = vadd.f32 0.0, %v1841
        %1843 = vmatprep.mubr.f32.mxu0 %v1703
        %1844 = vmatmul.mubr.f32.gmra.mrb[0].mxu0 %v1702
        %v1845 = vpop.f32.mrb[0].mxu0
        %v1846 = vadd.f32 0.0, %v1845
        %v1847 = vpop.f32.mrb[0].mxu0
        %v1848 = vadd.f32 0.0, %v1847
        %1849 = vmatprep.mubr.f32.mxu0 %v1705
        %1850 = vmatmul.mubr.f32.gmra.mrb[0].mxu0 %v1704
        %v1851 = vpop.f32.mrb[0].mxu0
        %v1852 = vadd.f32 0.0, %v1851
        %v1853 = vpop.f32.mrb[0].mxu0
        %v1854 = vadd.f32 0.0, %v1853
        %1855 = vmatprep.mubr.f32.mxu0 %v1707
        %1856 = vmatmul.mubr.f32.gmra.mrb[0].mxu0 %v1706
        %v1857 = vpop.f32.mrb[0].mxu0
        %v1858 = vadd.f32 0.0, %v1857
        %v1859 = vpop.f32.mrb[0].mxu0
        %v1860 = vadd.f32 0.0, %v1859
        %1861 = vdwg.mxu0
        %v1862 = vadd.f32 %v1676, %v1840
        %v1863 = vadd.f32 %v1677, %v1842
        %v1864 = vadd.f32 %v1678, %v1846
        %v1865 = vadd.f32 %v1679, %v1848
        %v1866 = vadd.f32 %v1680, %v1852
        %v1867 = vadd.f32 %v1681, %v1854
        %v1868 = vadd.f32 %v1682, %v1858
        %v1869 = vadd.f32 %v1683, %v1860
        %1870 = vset.pattern.permute.xlu0 6
        %1871 = vperm.xlu0 %1870, %v763
        %v1872 = vpop.permute.xlu0 %1871
        %1874 = vset.pattern.permute.xlu0 6
        %1875 = vperm.xlu0 %1874, %v764
        %v1876 = vpop.permute.xlu0 %1875
        %1878 = vset.pattern.permute.xlu0 6
        %1879 = vperm.xlu0 %1878, %v765
        %v1880 = vpop.permute.xlu0 %1879
        %1882 = vset.pattern.permute.xlu0 6
        %1883 = vperm.xlu0 %1882, %v766
        %v1884 = vpop.permute.xlu0 %1883
        %v1886 = vmul.f32 %v755, %v1872
        %v1887 = vmul.f32 %v756, %v1872
        %v1888 = vmul.f32 %v757, %v1876
        %v1889 = vmul.f32 %v758, %v1876
        %v1890 = vmul.f32 %v759, %v1880
        %v1891 = vmul.f32 %v760, %v1880
        %v1892 = vmul.f32 %v761, %v1884
        %v1893 = vmul.f32 %v762, %v1884
        %s1894 = scalar_lea.vmem [#allocation5], 3072
        %v1895 = vld [vmem:[%s1894] sm:$0xff]
        %v1896 = vld [vmem:[%s1894 + $0x8] sm:$0xff]
        %v1897 = vld [vmem:[%s1894 + $0x10] sm:$0xff]
        %v1898 = vld [vmem:[%s1894 + $0x18] sm:$0xff]
        %v1899 = vld [vmem:[%s1894 + $0x20] sm:$0xff]
        %v1900 = vld [vmem:[%s1894 + $0x28] sm:$0xff]
        %v1901 = vld [vmem:[%s1894 + $0x30] sm:$0xff]
        %v1902 = vld [vmem:[%s1894 + $0x38] sm:$0xff]
        %v1903 = vld [vmem:[%s1894 + $0x40] sm:$0xff]
        %v1904 = vld [vmem:[%s1894 + $0x48] sm:$0xff]
        %v1905 = vld [vmem:[%s1894 + $0x50] sm:$0xff]
        %v1906 = vld [vmem:[%s1894 + $0x58] sm:$0xff]
        %v1907 = vld [vmem:[%s1894 + $0x60] sm:$0xff]
        %v1908 = vld [vmem:[%s1894 + $0x68] sm:$0xff]
        %v1909 = vld [vmem:[%s1894 + $0x70] sm:$0xff]
        %v1910 = vld [vmem:[%s1894 + $0x78] sm:$0xff]
        %v1911 = vld [vmem:[%s1894 + $0x80] sm:$0xff]
        %v1912 = vld [vmem:[%s1894 + $0x88] sm:$0xff]
        %v1913 = vld [vmem:[%s1894 + $0x90] sm:$0xff]
        %v1914 = vld [vmem:[%s1894 + $0x98] sm:$0xff]
        %v1915 = vld [vmem:[%s1894 + $0xa0] sm:$0xff]
        %v1916 = vld [vmem:[%s1894 + $0xa8] sm:$0xff]
        %v1917 = vld [vmem:[%s1894 + $0xb0] sm:$0xff]
        %v1918 = vld [vmem:[%s1894 + $0xb8] sm:$0xff]
        %v1919 = vld [vmem:[%s1894 + $0xc0] sm:$0xff]
        %v1920 = vld [vmem:[%s1894 + $0xc8] sm:$0xff]
        %v1921 = vld [vmem:[%s1894 + $0xd0] sm:$0xff]
        %v1922 = vld [vmem:[%s1894 + $0xd8] sm:$0xff]
        %v1923 = vld [vmem:[%s1894 + $0xe0] sm:$0xff]
        %v1924 = vld [vmem:[%s1894 + $0xe8] sm:$0xff]
        %v1925 = vld [vmem:[%s1894 + $0xf0] sm:$0xff]
        %v1926 = vld [vmem:[%s1894 + $0xf8] sm:$0xff]
        %v1927 = vld [vmem:[%s1894 + $0x100] sm:$0xff]
        %v1928 = vld [vmem:[%s1894 + $0x108] sm:$0xff]
        %v1929 = vld [vmem:[%s1894 + $0x110] sm:$0xff]
        %v1930 = vld [vmem:[%s1894 + $0x118] sm:$0xff]
        %v1931 = vld [vmem:[%s1894 + $0x120] sm:$0xff]
        %v1932 = vld [vmem:[%s1894 + $0x128] sm:$0xff]
        %v1933 = vld [vmem:[%s1894 + $0x130] sm:$0xff]
        %v1934 = vld [vmem:[%s1894 + $0x138] sm:$0xff]
        %v1935 = vld [vmem:[%s1894 + $0x140] sm:$0xff]
        %v1936 = vld [vmem:[%s1894 + $0x148] sm:$0xff]
        %v1937 = vld [vmem:[%s1894 + $0x150] sm:$0xff]
        %v1938 = vld [vmem:[%s1894 + $0x158] sm:$0xff]
        %v1939 = vld [vmem:[%s1894 + $0x160] sm:$0xff]
        %v1940 = vld [vmem:[%s1894 + $0x168] sm:$0xff]
        %v1941 = vld [vmem:[%s1894 + $0x170] sm:$0xff]
        %v1942 = vld [vmem:[%s1894 + $0x178] sm:$0xff]
        %v1943 = vld [vmem:[%s1894 + $0x180] sm:$0xff]
        %v1944 = vld [vmem:[%s1894 + $0x188] sm:$0xff]
        %v1945 = vld [vmem:[%s1894 + $0x190] sm:$0xff]
        %v1946 = vld [vmem:[%s1894 + $0x198] sm:$0xff]
        %v1947 = vld [vmem:[%s1894 + $0x1a0] sm:$0xff]
        %v1948 = vld [vmem:[%s1894 + $0x1a8] sm:$0xff]
        %v1949 = vld [vmem:[%s1894 + $0x1b0] sm:$0xff]
        %v1950 = vld [vmem:[%s1894 + $0x1b8] sm:$0xff]
        %v1951 = vld [vmem:[%s1894 + $0x1c0] sm:$0xff]
        %v1952 = vld [vmem:[%s1894 + $0x1c8] sm:$0xff]
        %v1953 = vld [vmem:[%s1894 + $0x1d0] sm:$0xff]
        %v1954 = vld [vmem:[%s1894 + $0x1d8] sm:$0xff]
        %v1955 = vld [vmem:[%s1894 + $0x1e0] sm:$0xff]
        %v1956 = vld [vmem:[%s1894 + $0x1e8] sm:$0xff]
        %v1957 = vld [vmem:[%s1894 + $0x1f0] sm:$0xff]
        %v1958 = vld [vmem:[%s1894 + $0x1f8] sm:$0xff]
        %1959 = vmatprep.subr.mxu0 %v1896
        %1960 = vmatpush1.msra.mxu0 %v1895
        %1961 = vmatprep.subr.mxu0 %v1898
        %1962 = vmatpush1.msra.mxu0 %v1897
        %1963 = vmatprep.subr.mxu0 %v1900
        %1964 = vmatpush1.msra.mxu0 %v1899
        %1965 = vmatprep.subr.mxu0 %v1902
        %1966 = vmatpush1.msra.mxu0 %v1901
        %1967 = vmatprep.subr.mxu0 %v1904
        %1968 = vmatpush1.msra.mxu0 %v1903
        %1969 = vmatprep.subr.mxu0 %v1906
        %1970 = vmatpush1.msra.mxu0 %v1905
        %1971 = vmatprep.subr.mxu0 %v1908
        %1972 = vmatpush1.msra.mxu0 %v1907
        %1973 = vmatprep.subr.mxu0 %v1910
        %1974 = vmatpush1.msra.mxu0 %v1909
        %1975 = vmatprep.subr.mxu0 %v1912
        %1976 = vmatpush1.msra.mxu0 %v1911
        %1977 = vmatprep.subr.mxu0 %v1914
        %1978 = vmatpush1.msra.mxu0 %v1913
        %1979 = vmatprep.subr.mxu0 %v1916
        %1980 = vmatpush1.msra.mxu0 %v1915
        %1981 = vmatprep.subr.mxu0 %v1918
        %1982 = vmatpush1.msra.mxu0 %v1917
        %1983 = vmatprep.subr.mxu0 %v1920
        %1984 = vmatpush1.msra.mxu0 %v1919
        %1985 = vmatprep.subr.mxu0 %v1922
        %1986 = vmatpush1.msra.mxu0 %v1921
        %1987 = vmatprep.subr.mxu0 %v1924
        %1988 = vmatpush1.msra.mxu0 %v1923
        %1989 = vmatprep.subr.mxu0 %v1926
        %1990 = vmatpush1.msra.mxu0 %v1925
        %1991 = vmatprep.subr.mxu0 %v1928
        %1992 = vmatpush1.msra.mxu0 %v1927
        %1993 = vmatprep.subr.mxu0 %v1930
        %1994 = vmatpush1.msra.mxu0 %v1929
        %1995 = vmatprep.subr.mxu0 %v1932
        %1996 = vmatpush1.msra.mxu0 %v1931
        %1997 = vmatprep.subr.mxu0 %v1934
        %1998 = vmatpush1.msra.mxu0 %v1933
        %1999 = vmatprep.subr.mxu0 %v1936
        %2000 = vmatpush1.msra.mxu0 %v1935
        %2001 = vmatprep.subr.mxu0 %v1938
        %2002 = vmatpush1.msra.mxu0 %v1937
        %2003 = vmatprep.subr.mxu0 %v1940
        %2004 = vmatpush1.msra.mxu0 %v1939
        %2005 = vmatprep.subr.mxu0 %v1942
        %2006 = vmatpush1.msra.mxu0 %v1941
        %2007 = vmatprep.subr.mxu0 %v1944
        %2008 = vmatpush1.msra.mxu0 %v1943
        %2009 = vmatprep.subr.mxu0 %v1946
        %2010 = vmatpush1.msra.mxu0 %v1945
        %2011 = vmatprep.subr.mxu0 %v1948
        %2012 = vmatpush1.msra.mxu0 %v1947
        %2013 = vmatprep.subr.mxu0 %v1950
        %2014 = vmatpush1.msra.mxu0 %v1949
        %2015 = vmatprep.subr.mxu0 %v1952
        %2016 = vmatpush1.msra.mxu0 %v1951
        %2017 = vmatprep.subr.mxu0 %v1954
        %2018 = vmatpush1.msra.mxu0 %v1953
        %2019 = vmatprep.subr.mxu0 %v1956
        %2020 = vmatpush1.msra.mxu0 %v1955
        %2021 = vmatprep.subr.mxu0 %v1958
        %2022 = vmatpush1.msra.mxu0 %v1957
        %2023 = vmatprep.mubr.f32.mxu0 %v1887
        %2024 = vmatmul.mubr.f32.gmra.mrb[0].mxu0 %v1886
        %v2025 = vpop.f32.mrb[0].mxu0
        %v2026 = vadd.f32 0.0, %v2025
        %v2027 = vpop.f32.mrb[0].mxu0
        %v2028 = vadd.f32 0.0, %v2027
        %2029 = vmatprep.mubr.f32.mxu0 %v1889
        %2030 = vmatmul.mubr.f32.gmra.mrb[0].mxu0 %v1888
        %v2031 = vpop.f32.mrb[0].mxu0
        %v2032 = vadd.f32 0.0, %v2031
        %v2033 = vpop.f32.mrb[0].mxu0
        %v2034 = vadd.f32 0.0, %v2033
        %2035 = vmatprep.mubr.f32.mxu0 %v1891
        %2036 = vmatmul.mubr.f32.gmra.mrb[0].mxu0 %v1890
        %v2037 = vpop.f32.mrb[0].mxu0
        %v2038 = vadd.f32 0.0, %v2037
        %v2039 = vpop.f32.mrb[0].mxu0
        %v2040 = vadd.f32 0.0, %v2039
        %2041 = vmatprep.mubr.f32.mxu0 %v1893
        %2042 = vmatmul.mubr.f32.gmra.mrb[0].mxu0 %v1892
        %v2043 = vpop.f32.mrb[0].mxu0
        %v2044 = vadd.f32 0.0, %v2043
        %v2045 = vpop.f32.mrb[0].mxu0
        %v2046 = vadd.f32 0.0, %v2045
        %2047 = vdwg.mxu0
        %v2048 = vadd.f32 %v1862, %v2026
        %v2049 = vadd.f32 %v1863, %v2028
        %v2050 = vadd.f32 %v1864, %v2032
        %v2051 = vadd.f32 %v1865, %v2034
        %v2052 = vadd.f32 %v1866, %v2038
        %v2053 = vadd.f32 %v1867, %v2040
        %v2054 = vadd.f32 %v1868, %v2044
        %v2055 = vadd.f32 %v1869, %v2046
        %2056 = vset.pattern.permute.xlu0 7
        %2057 = vperm.xlu0 %2056, %v763
        %v2058 = vpop.permute.xlu0 %2057
        %2060 = vset.pattern.permute.xlu0 7
        %2061 = vperm.xlu0 %2060, %v764
        %v2062 = vpop.permute.xlu0 %2061
        %2064 = vset.pattern.permute.xlu0 7
        %2065 = vperm.xlu0 %2064, %v765
        %v2066 = vpop.permute.xlu0 %2065
        %2068 = vset.pattern.permute.xlu0 7
        %2069 = vperm.xlu0 %2068, %v766
        %v2070 = vpop.permute.xlu0 %2069
        %v2072 = vmul.f32 %v755, %v2058
        %v2073 = vmul.f32 %v756, %v2058
        %v2074 = vmul.f32 %v757, %v2062
        %v2075 = vmul.f32 %v758, %v2062
        %v2076 = vmul.f32 %v759, %v2066
        %v2077 = vmul.f32 %v760, %v2066
        %v2078 = vmul.f32 %v761, %v2070
        %v2079 = vmul.f32 %v762, %v2070
        %s2080 = scalar_lea.vmem [#allocation5], 3584
        %v2081 = vld [vmem:[%s2080] sm:$0xff]
        %v2082 = vld [vmem:[%s2080 + $0x8] sm:$0xff]
        %v2083 = vld [vmem:[%s2080 + $0x10] sm:$0xff]
        %v2084 = vld [vmem:[%s2080 + $0x18] sm:$0xff]
        %v2085 = vld [vmem:[%s2080 + $0x20] sm:$0xff]
        %v2086 = vld [vmem:[%s2080 + $0x28] sm:$0xff]
        %v2087 = vld [vmem:[%s2080 + $0x30] sm:$0xff]
        %v2088 = vld [vmem:[%s2080 + $0x38] sm:$0xff]
        %v2089 = vld [vmem:[%s2080 + $0x40] sm:$0xff]
        %v2090 = vld [vmem:[%s2080 + $0x48] sm:$0xff]
        %v2091 = vld [vmem:[%s2080 + $0x50] sm:$0xff]
        %v2092 = vld [vmem:[%s2080 + $0x58] sm:$0xff]
        %v2093 = vld [vmem:[%s2080 + $0x60] sm:$0xff]
        %v2094 = vld [vmem:[%s2080 + $0x68] sm:$0xff]
        %v2095 = vld [vmem:[%s2080 + $0x70] sm:$0xff]
        %v2096 = vld [vmem:[%s2080 + $0x78] sm:$0xff]
        %v2097 = vld [vmem:[%s2080 + $0x80] sm:$0xff]
        %v2098 = vld [vmem:[%s2080 + $0x88] sm:$0xff]
        %v2099 = vld [vmem:[%s2080 + $0x90] sm:$0xff]
        %v2100 = vld [vmem:[%s2080 + $0x98] sm:$0xff]
        %v2101 = vld [vmem:[%s2080 + $0xa0] sm:$0xff]
        %v2102 = vld [vmem:[%s2080 + $0xa8] sm:$0xff]
        %v2103 = vld [vmem:[%s2080 + $0xb0] sm:$0xff]
        %v2104 = vld [vmem:[%s2080 + $0xb8] sm:$0xff]
        %v2105 = vld [vmem:[%s2080 + $0xc0] sm:$0xff]
        %v2106 = vld [vmem:[%s2080 + $0xc8] sm:$0xff]
        %v2107 = vld [vmem:[%s2080 + $0xd0] sm:$0xff]
        %v2108 = vld [vmem:[%s2080 + $0xd8] sm:$0xff]
        %v2109 = vld [vmem:[%s2080 + $0xe0] sm:$0xff]
        %v2110 = vld [vmem:[%s2080 + $0xe8] sm:$0xff]
        %v2111 = vld [vmem:[%s2080 + $0xf0] sm:$0xff]
        %v2112 = vld [vmem:[%s2080 + $0xf8] sm:$0xff]
        %v2113 = vld [vmem:[%s2080 + $0x100] sm:$0xff]
        %v2114 = vld [vmem:[%s2080 + $0x108] sm:$0xff]
        %v2115 = vld [vmem:[%s2080 + $0x110] sm:$0xff]
        %v2116 = vld [vmem:[%s2080 + $0x118] sm:$0xff]
        %v2117 = vld [vmem:[%s2080 + $0x120] sm:$0xff]
        %v2118 = vld [vmem:[%s2080 + $0x128] sm:$0xff]
        %v2119 = vld [vmem:[%s2080 + $0x130] sm:$0xff]
        %v2120 = vld [vmem:[%s2080 + $0x138] sm:$0xff]
        %v2121 = vld [vmem:[%s2080 + $0x140] sm:$0xff]
        %v2122 = vld [vmem:[%s2080 + $0x148] sm:$0xff]
        %v2123 = vld [vmem:[%s2080 + $0x150] sm:$0xff]
        %v2124 = vld [vmem:[%s2080 + $0x158] sm:$0xff]
        %v2125 = vld [vmem:[%s2080 + $0x160] sm:$0xff]
        %v2126 = vld [vmem:[%s2080 + $0x168] sm:$0xff]
        %v2127 = vld [vmem:[%s2080 + $0x170] sm:$0xff]
        %v2128 = vld [vmem:[%s2080 + $0x178] sm:$0xff]
        %v2129 = vld [vmem:[%s2080 + $0x180] sm:$0xff]
        %v2130 = vld [vmem:[%s2080 + $0x188] sm:$0xff]
        %v2131 = vld [vmem:[%s2080 + $0x190] sm:$0xff]
        %v2132 = vld [vmem:[%s2080 + $0x198] sm:$0xff]
        %v2133 = vld [vmem:[%s2080 + $0x1a0] sm:$0xff]
        %v2134 = vld [vmem:[%s2080 + $0x1a8] sm:$0xff]
        %v2135 = vld [vmem:[%s2080 + $0x1b0] sm:$0xff]
        %v2136 = vld [vmem:[%s2080 + $0x1b8] sm:$0xff]
        %v2137 = vld [vmem:[%s2080 + $0x1c0] sm:$0xff]
        %v2138 = vld [vmem:[%s2080 + $0x1c8] sm:$0xff]
        %v2139 = vld [vmem:[%s2080 + $0x1d0] sm:$0xff]
        %v2140 = vld [vmem:[%s2080 + $0x1d8] sm:$0xff]
        %v2141 = vld [vmem:[%s2080 + $0x1e0] sm:$0xff]
        %v2142 = vld [vmem:[%s2080 + $0x1e8] sm:$0xff]
        %v2143 = vld [vmem:[%s2080 + $0x1f0] sm:$0xff]
        %v2144 = vld [vmem:[%s2080 + $0x1f8] sm:$0xff]
        %2145 = vmatprep.subr.mxu0 %v2082
        %2146 = vmatpush1.msra.mxu0 %v2081
        %2147 = vmatprep.subr.mxu0 %v2084
        %2148 = vmatpush1.msra.mxu0 %v2083
        %2149 = vmatprep.subr.mxu0 %v2086
        %2150 = vmatpush1.msra.mxu0 %v2085
        %2151 = vmatprep.subr.mxu0 %v2088
        %2152 = vmatpush1.msra.mxu0 %v2087
        %2153 = vmatprep.subr.mxu0 %v2090
        %2154 = vmatpush1.msra.mxu0 %v2089
        %2155 = vmatprep.subr.mxu0 %v2092
        %2156 = vmatpush1.msra.mxu0 %v2091
        %2157 = vmatprep.subr.mxu0 %v2094
        %2158 = vmatpush1.msra.mxu0 %v2093
        %2159 = vmatprep.subr.mxu0 %v2096
        %2160 = vmatpush1.msra.mxu0 %v2095
        %2161 = vmatprep.subr.mxu0 %v2098
        %2162 = vmatpush1.msra.mxu0 %v2097
        %2163 = vmatprep.subr.mxu0 %v2100
        %2164 = vmatpush1.msra.mxu0 %v2099
        %2165 = vmatprep.subr.mxu0 %v2102
        %2166 = vmatpush1.msra.mxu0 %v2101
        %2167 = vmatprep.subr.mxu0 %v2104
        %2168 = vmatpush1.msra.mxu0 %v2103
        %2169 = vmatprep.subr.mxu0 %v2106
        %2170 = vmatpush1.msra.mxu0 %v2105
        %2171 = vmatprep.subr.mxu0 %v2108
        %2172 = vmatpush1.msra.mxu0 %v2107
        %2173 = vmatprep.subr.mxu0 %v2110
        %2174 = vmatpush1.msra.mxu0 %v2109
        %2175 = vmatprep.subr.mxu0 %v2112
        %2176 = vmatpush1.msra.mxu0 %v2111
        %2177 = vmatprep.subr.mxu0 %v2114
        %2178 = vmatpush1.msra.mxu0 %v2113
        %2179 = vmatprep.subr.mxu0 %v2116
        %2180 = vmatpush1.msra.mxu0 %v2115
        %2181 = vmatprep.subr.mxu0 %v2118
        %2182 = vmatpush1.msra.mxu0 %v2117
        %2183 = vmatprep.subr.mxu0 %v2120
        %2184 = vmatpush1.msra.mxu0 %v2119
        %2185 = vmatprep.subr.mxu0 %v2122
        %2186 = vmatpush1.msra.mxu0 %v2121
        %2187 = vmatprep.subr.mxu0 %v2124
        %2188 = vmatpush1.msra.mxu0 %v2123
        %2189 = vmatprep.subr.mxu0 %v2126
        %2190 = vmatpush1.msra.mxu0 %v2125
        %2191 = vmatprep.subr.mxu0 %v2128
        %2192 = vmatpush1.msra.mxu0 %v2127
        %2193 = vmatprep.subr.mxu0 %v2130
        %2194 = vmatpush1.msra.mxu0 %v2129
        %2195 = vmatprep.subr.mxu0 %v2132
        %2196 = vmatpush1.msra.mxu0 %v2131
        %2197 = vmatprep.subr.mxu0 %v2134
        %2198 = vmatpush1.msra.mxu0 %v2133
        %2199 = vmatprep.subr.mxu0 %v2136
        %2200 = vmatpush1.msra.mxu0 %v2135
        %2201 = vmatprep.subr.mxu0 %v2138
        %2202 = vmatpush1.msra.mxu0 %v2137
        %2203 = vmatprep.subr.mxu0 %v2140
        %2204 = vmatpush1.msra.mxu0 %v2139
        %2205 = vmatprep.subr.mxu0 %v2142
        %2206 = vmatpush1.msra.mxu0 %v2141
        %2207 = vmatprep.subr.mxu0 %v2144
        %2208 = vmatpush1.msra.mxu0 %v2143
        %2209 = vmatprep.mubr.f32.mxu0 %v2073
        %2210 = vmatmul.mubr.f32.gmra.mrb[0].mxu0 %v2072
        %v2211 = vpop.f32.mrb[0].mxu0
        %v2212 = vadd.f32 0.0, %v2211
        %v2213 = vpop.f32.mrb[0].mxu0
        %v2214 = vadd.f32 0.0, %v2213
        %2215 = vmatprep.mubr.f32.mxu0 %v2075
        %2216 = vmatmul.mubr.f32.gmra.mrb[0].mxu0 %v2074
        %v2217 = vpop.f32.mrb[0].mxu0
        %v2218 = vadd.f32 0.0, %v2217
        %v2219 = vpop.f32.mrb[0].mxu0
        %v2220 = vadd.f32 0.0, %v2219
        %2221 = vmatprep.mubr.f32.mxu0 %v2077
        %2222 = vmatmul.mubr.f32.gmra.mrb[0].mxu0 %v2076
        %v2223 = vpop.f32.mrb[0].mxu0
        %v2224 = vadd.f32 0.0, %v2223
        %v2225 = vpop.f32.mrb[0].mxu0
        %v2226 = vadd.f32 0.0, %v2225
        %2227 = vmatprep.mubr.f32.mxu0 %v2079
        %2228 = vmatmul.mubr.f32.gmra.mrb[0].mxu0 %v2078
        %v2229 = vpop.f32.mrb[0].mxu0
        %v2230 = vadd.f32 0.0, %v2229
        %v2231 = vpop.f32.mrb[0].mxu0
        %v2232 = vadd.f32 0.0, %v2231
        %2233 = vdwg.mxu0
        %v2234 = vadd.f32 %v2048, %v2212
        %v2235 = vadd.f32 %v2049, %v2214
        %v2236 = vadd.f32 %v2050, %v2218
        %v2237 = vadd.f32 %v2051, %v2220
        %v2238 = vadd.f32 %v2052, %v2224
        %v2239 = vadd.f32 %v2053, %v2226
        %v2240 = vadd.f32 %v2054, %v2230
        %v2241 = vadd.f32 %v2055, %v2232
        %2242 = vset.pattern.permute.xlu0 8
        %2243 = vperm.xlu0 %2242, %v763
        %v2244 = vpop.permute.xlu0 %2243
        %2246 = vset.pattern.permute.xlu0 8
        %2247 = vperm.xlu0 %2246, %v764
        %v2248 = vpop.permute.xlu0 %2247
        %2250 = vset.pattern.permute.xlu0 8
        %2251 = vperm.xlu0 %2250, %v765
        %v2252 = vpop.permute.xlu0 %2251
        %2254 = vset.pattern.permute.xlu0 8
        %2255 = vperm.xlu0 %2254, %v766
        %v2256 = vpop.permute.xlu0 %2255
        %v2258 = vmul.f32 %v755, %v2244
        %v2259 = vmul.f32 %v756, %v2244
        %v2260 = vmul.f32 %v757, %v2248
        %v2261 = vmul.f32 %v758, %v2248
        %v2262 = vmul.f32 %v759, %v2252
        %v2263 = vmul.f32 %v760, %v2252
        %v2264 = vmul.f32 %v761, %v2256
        %v2265 = vmul.f32 %v762, %v2256
        %s2266 = scalar_lea.vmem [#allocation5], 4096
        %v2267 = vld [vmem:[%s2266] sm:$0xff]
        %v2268 = vld [vmem:[%s2266 + $0x8] sm:$0xff]
        %v2269 = vld [vmem:[%s2266 + $0x10] sm:$0xff]
        %v2270 = vld [vmem:[%s2266 + $0x18] sm:$0xff]
        %v2271 = vld [vmem:[%s2266 + $0x20] sm:$0xff]
        %v2272 = vld [vmem:[%s2266 + $0x28] sm:$0xff]
        %v2273 = vld [vmem:[%s2266 + $0x30] sm:$0xff]
        %v2274 = vld [vmem:[%s2266 + $0x38] sm:$0xff]
        %v2275 = vld [vmem:[%s2266 + $0x40] sm:$0xff]
        %v2276 = vld [vmem:[%s2266 + $0x48] sm:$0xff]
        %v2277 = vld [vmem:[%s2266 + $0x50] sm:$0xff]
        %v2278 = vld [vmem:[%s2266 + $0x58] sm:$0xff]
        %v2279 = vld [vmem:[%s2266 + $0x60] sm:$0xff]
        %v2280 = vld [vmem:[%s2266 + $0x68] sm:$0xff]
        %v2281 = vld [vmem:[%s2266 + $0x70] sm:$0xff]
        %v2282 = vld [vmem:[%s2266 + $0x78] sm:$0xff]
        %v2283 = vld [vmem:[%s2266 + $0x80] sm:$0xff]
        %v2284 = vld [vmem:[%s2266 + $0x88] sm:$0xff]
        %v2285 = vld [vmem:[%s2266 + $0x90] sm:$0xff]
        %v2286 = vld [vmem:[%s2266 + $0x98] sm:$0xff]
        %v2287 = vld [vmem:[%s2266 + $0xa0] sm:$0xff]
        %v2288 = vld [vmem:[%s2266 + $0xa8] sm:$0xff]
        %v2289 = vld [vmem:[%s2266 + $0xb0] sm:$0xff]
        %v2290 = vld [vmem:[%s2266 + $0xb8] sm:$0xff]
        %v2291 = vld [vmem:[%s2266 + $0xc0] sm:$0xff]
        %v2292 = vld [vmem:[%s2266 + $0xc8] sm:$0xff]
        %v2293 = vld [vmem:[%s2266 + $0xd0] sm:$0xff]
        %v2294 = vld [vmem:[%s2266 + $0xd8] sm:$0xff]
        %v2295 = vld [vmem:[%s2266 + $0xe0] sm:$0xff]
        %v2296 = vld [vmem:[%s2266 + $0xe8] sm:$0xff]
        %v2297 = vld [vmem:[%s2266 + $0xf0] sm:$0xff]
        %v2298 = vld [vmem:[%s2266 + $0xf8] sm:$0xff]
        %v2299 = vld [vmem:[%s2266 + $0x100] sm:$0xff]
        %v2300 = vld [vmem:[%s2266 + $0x108] sm:$0xff]
        %v2301 = vld [vmem:[%s2266 + $0x110] sm:$0xff]
        %v2302 = vld [vmem:[%s2266 + $0x118] sm:$0xff]
        %v2303 = vld [vmem:[%s2266 + $0x120] sm:$0xff]
        %v2304 = vld [vmem:[%s2266 + $0x128] sm:$0xff]
        %v2305 = vld [vmem:[%s2266 + $0x130] sm:$0xff]
        %v2306 = vld [vmem:[%s2266 + $0x138] sm:$0xff]
        %v2307 = vld [vmem:[%s2266 + $0x140] sm:$0xff]
        %v2308 = vld [vmem:[%s2266 + $0x148] sm:$0xff]
        %v2309 = vld [vmem:[%s2266 + $0x150] sm:$0xff]
        %v2310 = vld [vmem:[%s2266 + $0x158] sm:$0xff]
        %v2311 = vld [vmem:[%s2266 + $0x160] sm:$0xff]
        %v2312 = vld [vmem:[%s2266 + $0x168] sm:$0xff]
        %v2313 = vld [vmem:[%s2266 + $0x170] sm:$0xff]
        %v2314 = vld [vmem:[%s2266 + $0x178] sm:$0xff]
        %v2315 = vld [vmem:[%s2266 + $0x180] sm:$0xff]
        %v2316 = vld [vmem:[%s2266 + $0x188] sm:$0xff]
        %v2317 = vld [vmem:[%s2266 + $0x190] sm:$0xff]
        %v2318 = vld [vmem:[%s2266 + $0x198] sm:$0xff]
        %v2319 = vld [vmem:[%s2266 + $0x1a0] sm:$0xff]
        %v2320 = vld [vmem:[%s2266 + $0x1a8] sm:$0xff]
        %v2321 = vld [vmem:[%s2266 + $0x1b0] sm:$0xff]
        %v2322 = vld [vmem:[%s2266 + $0x1b8] sm:$0xff]
        %v2323 = vld [vmem:[%s2266 + $0x1c0] sm:$0xff]
        %v2324 = vld [vmem:[%s2266 + $0x1c8] sm:$0xff]
        %v2325 = vld [vmem:[%s2266 + $0x1d0] sm:$0xff]
        %v2326 = vld [vmem:[%s2266 + $0x1d8] sm:$0xff]
        %v2327 = vld [vmem:[%s2266 + $0x1e0] sm:$0xff]
        %v2328 = vld [vmem:[%s2266 + $0x1e8] sm:$0xff]
        %v2329 = vld [vmem:[%s2266 + $0x1f0] sm:$0xff]
        %v2330 = vld [vmem:[%s2266 + $0x1f8] sm:$0xff]
        %2331 = vmatprep.subr.mxu0 %v2268
        %2332 = vmatpush1.msra.mxu0 %v2267
        %2333 = vmatprep.subr.mxu0 %v2270
        %2334 = vmatpush1.msra.mxu0 %v2269
        %2335 = vmatprep.subr.mxu0 %v2272
        %2336 = vmatpush1.msra.mxu0 %v2271
        %2337 = vmatprep.subr.mxu0 %v2274
        %2338 = vmatpush1.msra.mxu0 %v2273
        %2339 = vmatprep.subr.mxu0 %v2276
        %2340 = vmatpush1.msra.mxu0 %v2275
        %2341 = vmatprep.subr.mxu0 %v2278
        %2342 = vmatpush1.msra.mxu0 %v2277
        %2343 = vmatprep.subr.mxu0 %v2280
        %2344 = vmatpush1.msra.mxu0 %v2279
        %2345 = vmatprep.subr.mxu0 %v2282
        %2346 = vmatpush1.msra.mxu0 %v2281
        %2347 = vmatprep.subr.mxu0 %v2284
        %2348 = vmatpush1.msra.mxu0 %v2283
        %2349 = vmatprep.subr.mxu0 %v2286
        %2350 = vmatpush1.msra.mxu0 %v2285
        %2351 = vmatprep.subr.mxu0 %v2288
        %2352 = vmatpush1.msra.mxu0 %v2287
        %2353 = vmatprep.subr.mxu0 %v2290
        %2354 = vmatpush1.msra.mxu0 %v2289
        %2355 = vmatprep.subr.mxu0 %v2292
        %2356 = vmatpush1.msra.mxu0 %v2291
        %2357 = vmatprep.subr.mxu0 %v2294
        %2358 = vmatpush1.msra.mxu0 %v2293
        %2359 = vmatprep.subr.mxu0 %v2296
        %2360 = vmatpush1.msra.mxu0 %v2295
        %2361 = vmatprep.subr.mxu0 %v2298
        %2362 = vmatpush1.msra.mxu0 %v2297
        %2363 = vmatprep.subr.mxu0 %v2300
        %2364 = vmatpush1.msra.mxu0 %v2299
        %2365 = vmatprep.subr.mxu0 %v2302
        %2366 = vmatpush1.msra.mxu0 %v2301
        %2367 = vmatprep.subr.mxu0 %v2304
        %2368 = vmatpush1.msra.mxu0 %v2303
        %2369 = vmatprep.subr.mxu0 %v2306
        %2370 = vmatpush1.msra.mxu0 %v2305
        %2371 = vmatprep.subr.mxu0 %v2308
        %2372 = vmatpush1.msra.mxu0 %v2307
        %2373 = vmatprep.subr.mxu0 %v2310
        %2374 = vmatpush1.msra.mxu0 %v2309
        %2375 = vmatprep.subr.mxu0 %v2312
        %2376 = vmatpush1.msra.mxu0 %v2311
        %2377 = vmatprep.subr.mxu0 %v2314
        %2378 = vmatpush1.msra.mxu0 %v2313
        %2379 = vmatprep.subr.mxu0 %v2316
        %2380 = vmatpush1.msra.mxu0 %v2315
        %2381 = vmatprep.subr.mxu0 %v2318
        %2382 = vmatpush1.msra.mxu0 %v2317
        %2383 = vmatprep.subr.mxu0 %v2320
        %2384 = vmatpush1.msra.mxu0 %v2319
        %2385 = vmatprep.subr.mxu0 %v2322
        %2386 = vmatpush1.msra.mxu0 %v2321
        %2387 = vmatprep.subr.mxu0 %v2324
        %2388 = vmatpush1.msra.mxu0 %v2323
        %2389 = vmatprep.subr.mxu0 %v2326
        %2390 = vmatpush1.msra.mxu0 %v2325
        %2391 = vmatprep.subr.mxu0 %v2328
        %2392 = vmatpush1.msra.mxu0 %v2327
        %2393 = vmatprep.subr.mxu0 %v2330
        %2394 = vmatpush1.msra.mxu0 %v2329
        %2395 = vmatprep.mubr.f32.mxu0 %v2259
        %2396 = vmatmul.mubr.f32.gmra.mrb[0].mxu0 %v2258
        %v2397 = vpop.f32.mrb[0].mxu0
        %v2398 = vadd.f32 0.0, %v2397
        %v2399 = vpop.f32.mrb[0].mxu0
        %v2400 = vadd.f32 0.0, %v2399
        %2401 = vmatprep.mubr.f32.mxu0 %v2261
        %2402 = vmatmul.mubr.f32.gmra.mrb[0].mxu0 %v2260
        %v2403 = vpop.f32.mrb[0].mxu0
        %v2404 = vadd.f32 0.0, %v2403
        %v2405 = vpop.f32.mrb[0].mxu0
        %v2406 = vadd.f32 0.0, %v2405
        %2407 = vmatprep.mubr.f32.mxu0 %v2263
        %2408 = vmatmul.mubr.f32.gmra.mrb[0].mxu0 %v2262
        %v2409 = vpop.f32.mrb[0].mxu0
        %v2410 = vadd.f32 0.0, %v2409
        %v2411 = vpop.f32.mrb[0].mxu0
        %v2412 = vadd.f32 0.0, %v2411
        %2413 = vmatprep.mubr.f32.mxu0 %v2265
        %2414 = vmatmul.mubr.f32.gmra.mrb[0].mxu0 %v2264
        %v2415 = vpop.f32.mrb[0].mxu0
        %v2416 = vadd.f32 0.0, %v2415
        %v2417 = vpop.f32.mrb[0].mxu0
        %v2418 = vadd.f32 0.0, %v2417
        %2419 = vdwg.mxu0
        %v2420 = vadd.f32 %v2234, %v2398
        %v2421 = vadd.f32 %v2235, %v2400
        %v2422 = vadd.f32 %v2236, %v2404
        %v2423 = vadd.f32 %v2237, %v2406
        %v2424 = vadd.f32 %v2238, %v2410
        %v2425 = vadd.f32 %v2239, %v2412
        %v2426 = vadd.f32 %v2240, %v2416
        %v2427 = vadd.f32 %v2241, %v2418
        %v2428 = vld [vmem:[%s6] sm:$0xff]
        %v2429 = vld [vmem:[%s6 + $0x8] sm:$0xff]
        %v2430 = vld [vmem:[%s6 + $0x10] sm:$0xff]
        %v2431 = vld [vmem:[%s6 + $0x18] sm:$0xff]
        %2433 = vset.pattern.permute.xlu0 0
        %2434 = vperm.xlu0 %2433, %v2428
        %v2435 = vpop.permute.xlu0 %2434
        %2438 = vset.pattern.permute.xlu0 0
        %2439 = vperm.xlu0 %2438, %v2429
        %v2440 = vpop.permute.xlu0 %2439
        %2443 = vset.pattern.permute.xlu0 0
        %2444 = vperm.xlu0 %2443, %v2430
        %v2445 = vpop.permute.xlu0 %2444
        %2448 = vset.pattern.permute.xlu0 0
        %2449 = vperm.xlu0 %2448, %v2431
        %v2450 = vpop.permute.xlu0 %2449
        %v2452 = vmul.f32 %v2420, %v2435
        %v2453 = vmul.f32 %v2421, %v2435
        %v2454 = vmul.f32 %v2422, %v2440
        %v2455 = vmul.f32 %v2423, %v2440
        %v2456 = vmul.f32 %v2424, %v2445
        %v2457 = vmul.f32 %v2425, %v2445
        %v2458 = vmul.f32 %v2426, %v2450
        %v2459 = vmul.f32 %v2427, %v2450
        %v2460 = vld [vmem:[%s7] sm:$0xff]
        %v2461 = vld [vmem:[%s7 + $0x8] sm:$0xff]
        %v2462 = vld [vmem:[%s7 + $0x10] sm:$0xff]
        %v2463 = vld [vmem:[%s7 + $0x18] sm:$0xff]
        %2465 = vset.pattern.permute.xlu0 0
        %2466 = vperm.xlu0 %2465, %v2460
        %v2467 = vpop.permute.xlu0 %2466
        %2470 = vset.pattern.permute.xlu0 0
        %2471 = vperm.xlu0 %2470, %v2461
        %v2472 = vpop.permute.xlu0 %2471
        %2475 = vset.pattern.permute.xlu0 0
        %2476 = vperm.xlu0 %2475, %v2462
        %v2477 = vpop.permute.xlu0 %2476
        %2480 = vset.pattern.permute.xlu0 0
        %2481 = vperm.xlu0 %2480, %v2463
        %v2482 = vpop.permute.xlu0 %2481
        %v2484 = vadd.f32 %v2452, %v2467
        %v2485 = vadd.f32 %v2453, %v2467
        %v2486 = vadd.f32 %v2454, %v2472
        %v2487 = vadd.f32 %v2455, %v2472
        %v2488 = vadd.f32 %v2456, %v2477
        %v2489 = vadd.f32 %v2457, %v2477
        %v2490 = vadd.f32 %v2458, %v2482
        %v2491 = vadd.f32 %v2459, %v2482
        %v2492 = vadd.f32 %v2484, 3.0
        %v2493 = vadd.f32 %v2485, 3.0
        %v2494 = vadd.f32 %v2486, 3.0
        %v2495 = vadd.f32 %v2487, 3.0
        %v2496 = vadd.f32 %v2488, 3.0
        %v2497 = vadd.f32 %v2489, 3.0
        %v2498 = vadd.f32 %v2490, 3.0
        %v2499 = vadd.f32 %v2491, 3.0
        %v2500 = vmax.f32 %v2492, 0.0
        %v2501 = vmax.f32 %v2493, 0.0
        %v2502 = vmax.f32 %v2494, 0.0
        %v2503 = vmax.f32 %v2495, 0.0
        %v2504 = vmax.f32 %v2496, 0.0
        %v2505 = vmax.f32 %v2497, 0.0
        %v2506 = vmax.f32 %v2498, 0.0
        %v2507 = vmax.f32 %v2499, 0.0
        %v2508 = vmin.f32 %v2500, 6.0
        %v2509 = vmin.f32 %v2501, 6.0
        %v2510 = vmin.f32 %v2502, 6.0
        %v2511 = vmin.f32 %v2503, 6.0
        %v2512 = vmin.f32 %v2504, 6.0
        %v2513 = vmin.f32 %v2505, 6.0
        %v2514 = vmin.f32 %v2506, 6.0
        %v2515 = vmin.f32 %v2507, 6.0
        %v2516 = vmul.f32 %v2484, %v2508
        %v2517 = vmul.f32 %v2485, %v2509
        %v2518 = vmul.f32 %v2486, %v2510
        %v2519 = vmul.f32 %v2487, %v2511
        %v2520 = vmul.f32 %v2488, %v2512
        %v2521 = vmul.f32 %v2489, %v2513
        %v2522 = vmul.f32 %v2490, %v2514
        %v2523 = vmul.f32 %v2491, %v2515
        %v2524 = vmul.f32 %v2516, 0.16666667
        %v2525 = vmul.f32 %v2517, 0.16666667
        %v2526 = vmul.f32 %v2518, 0.16666667
        %v2527 = vmul.f32 %v2519, 0.16666667
        %v2528 = vmul.f32 %v2520, 0.16666667
        %v2529 = vmul.f32 %v2521, 0.16666667
        %v2530 = vmul.f32 %v2522, 0.16666667
        %v2531 = vmul.f32 %v2523, 0.16666667
        %v2532 = vadd.f32 %v2524, %v2525
        %2533 = vadd.xlane.f32.xlu0 %v2532
        %v2534 = vpop.xlane.xlu0 %2533
        %v2535 = vadd.f32 %v2526, %v2527
        %2536 = vadd.xlane.f32.xlu0 %v2535
        %v2537 = vpop.xlane.xlu0 %2536
        %v2538 = vadd.f32 %v2528, %v2529
        %2539 = vadd.xlane.f32.xlu0 %v2538
        %v2540 = vpop.xlane.xlu0 %2539
        %v2541 = vadd.f32 %v2530, %v2531
        %2542 = vadd.xlane.f32.xlu0 %v2541
        %v2543 = vpop.xlane.xlu0 %2542
        %v2544 = vrcp.pop 256.0
        %v2545 = vmul.f32 %v2534, %v2544
        %v2546 = vmul.f32 %v2537, %v2544
        %v2547 = vmul.f32 %v2540, %v2544
        %v2548 = vmul.f32 %v2543, %v2544
        %v2549 = vld [vmem:[%s8] sm:$0xff]
        %v2550 = vld [vmem:[%s8 + $0x8] sm:$0xff]
        %v2551 = vld [vmem:[%s8 + $0x10] sm:$0xff]
        %v2552 = vld [vmem:[%s8 + $0x18] sm:$0xff]
        %v2553 = vmul.f32 %v2549, %v2545
        %v2554 = vmul.f32 %v2550, %v2546
        %v2555 = vmul.f32 %v2551, %v2547
        %v2556 = vmul.f32 %v2552, %v2548
        %v2557 = vsel %vm557, %v2553, 0.0
        %v2558 = vsel %vm557, %v2554, 0.0
        %v2559 = vadd.f32 %v2557, %v2558
        %v2560 = vsel %vm557, %v2555, 0.0
        %v2561 = vadd.f32 %v2559, %v2560
        %v2562 = vsel %vm557, %v2556, 0.0
        %v2563 = vadd.f32 %v2561, %v2562
        %v2564 = vrot.slane %v2563, 4
        %v2565 = vadd.f32 %v2563, %v2564
        %v2566 = vrot.slane %v2565, 2
        %v2567 = vadd.f32 %v2565, %v2566
        %v2568 = vrot.slane %v2567, 1
        %v2569 = vadd.f32 %v2567, %v2568
        %v2570 = vld [vmem:[#allocation7] sm:$0x1]
        %v2571 = vadd.f32 %v2569, %v2570
        %v2572 = vmax.f32 %v2571, 0.0
        %v2573 = vld [vmem:[%s10] sm:$0xff]
        %v2574 = vld [vmem:[%s10 + $0x8] sm:$0xff]
        %v2575 = vld [vmem:[%s10 + $0x10] sm:$0xff]
        %v2576 = vld [vmem:[%s10 + $0x18] sm:$0xff]
        %v2577 = vlaneseq
        %v2578 = vshrl.u32 %v2577, 7
        %v2579 = vsub.s32 0, %v2578
        %v2580 = vrot.slane %v2572, %v2579
        %v2581 = vmul.f32 %v2573, %v2580
        %v2582 = vmul.f32 %v2574, %v2580
        %v2583 = vmul.f32 %v2575, %v2580
        %v2584 = vmul.f32 %v2576, %v2580
        %v2585 = vsel %vm557, %v2581, 0.0
        %2586 = vadd.xlane.f32.xlu0 %v2585
        %v2587 = vpop.xlane.xlu0 %2586
        %v2588 = vsel %vm557, %v2582, 0.0
        %2589 = vadd.xlane.f32.xlu0 %v2588
        %v2590 = vpop.xlane.xlu0 %2589
        %v2591 = vsel %vm557, %v2583, 0.0
        %2592 = vadd.xlane.f32.xlu0 %v2591
        %v2593 = vpop.xlane.xlu0 %2592
        %v2594 = vsel %vm557, %v2584, 0.0
        %2595 = vadd.xlane.f32.xlu0 %v2594
        %v2596 = vpop.xlane.xlu0 %2595
        %v2597 = vld [vmem:[%s11] sm:$0xff]
        %v2598 = vld [vmem:[%s11 + $0x8] sm:$0xff]
        %v2599 = vld [vmem:[%s11 + $0x10] sm:$0xff]
        %v2600 = vld [vmem:[%s11 + $0x18] sm:$0xff]
        %v2601 = vadd.f32 %v2587, %v2597
        %v2602 = vadd.f32 %v2590, %v2598
        %v2603 = vadd.f32 %v2593, %v2599
        %v2604 = vadd.f32 %v2596, %v2600
        %v2605 = vxor.u32 %v2601, 2147483648
        %v2606 = vxor.u32 %v2602, 2147483648
        %v2607 = vxor.u32 %v2603, 2147483648
        %v2608 = vxor.u32 %v2604, 2147483648
        %v2609 = vmul.f32 %v2605, 1.442695
        %v2610 = vpow.pop %v2609
        %v2611 = vmul.f32 %v2606, 1.442695
        %v2612 = vpow.pop %v2611
        %v2613 = vmul.f32 %v2607, 1.442695
        %v2614 = vpow.pop %v2613
        %v2615 = vmul.f32 %v2608, 1.442695
        %v2616 = vpow.pop %v2615
        %v2617 = vadd.f32 %v2610, 1.0
        %v2618 = vadd.f32 %v2612, 1.0
        %v2619 = vadd.f32 %v2614, 1.0
        %v2620 = vadd.f32 %v2616, 1.0
        %v2621 = vrcp.pop %v2617
        %v2622 = vmul.f32 1.0, %v2621
        %v2623 = vrcp.pop %v2618
        %v2624 = vmul.f32 1.0, %v2623
        %v2625 = vrcp.pop %v2619
        %v2626 = vmul.f32 1.0, %v2625
        %v2627 = vrcp.pop %v2620
        %v2628 = vmul.f32 1.0, %v2627
        %2630 = vset.pattern.permute.xlu0 0
        %2631 = vperm.xlu0 %2630, %v2622
        %v2632 = vpop.permute.xlu0 %2631
        %2635 = vset.pattern.permute.xlu0 0
        %2636 = vperm.xlu0 %2635, %v2624
        %v2637 = vpop.permute.xlu0 %2636
        %2640 = vset.pattern.permute.xlu0 0
        %2641 = vperm.xlu0 %2640, %v2626
        %v2642 = vpop.permute.xlu0 %2641
        %2645 = vset.pattern.permute.xlu0 0
        %2646 = vperm.xlu0 %2645, %v2628
        %v2647 = vpop.permute.xlu0 %2646
        %v2649 = vmul.f32 %v2524, %v2632
        %v2650 = vmul.f32 %v2525, %v2632
        %v2651 = vmul.f32 %v2526, %v2637
        %v2652 = vmul.f32 %v2527, %v2637
        %v2653 = vmul.f32 %v2528, %v2642
        %v2654 = vmul.f32 %v2529, %v2642
        %v2655 = vmul.f32 %v2530, %v2647
        %v2656 = vmul.f32 %v2531, %v2647
        %v2657 = vld [vmem:[#allocation8] sm:$0xff]
        %vm2658 = vcmask 261120
        %v2660 = vsel %vm2658, %v2657, 0
        %2662 = vmatprep.subr.mxu0 %v2650
        %2663 = vmatpush1.msra.mxu0 %v2649
        %2664 = vmatprep.subr.mxu0 %v2652
        %2665 = vmatpush1.msra.mxu0 %v2651
        %2666 = vmatprep.subr.mxu0 %v2654
        %2667 = vmatpush1.msra.mxu0 %v2653
        %2668 = vmatprep.subr.mxu0 %v2656
        %2669 = vmatpush1.msra.mxu0 %v2655
        %2670 = vmatprep.subr.mxu0 0.0
        %2671 = vmatpush1.msra.mxu0 0.0
        %2672 = vmatprep.subr.mxu0 0.0
        %2673 = vmatpush1.msra.mxu0 0.0
        %2674 = vmatprep.subr.mxu0 0.0
        %2675 = vmatpush1.msra.mxu0 0.0
        %2676 = vmatprep.subr.mxu0 0.0
        %2677 = vmatpush1.msra.mxu0 0.0
        %2678 = vmatprep.subr.mxu0 0.0
        %2679 = vmatpush1.msra.mxu0 0.0
        %2680 = vmatprep.subr.mxu0 0.0
        %2681 = vmatpush1.msra.mxu0 0.0
        %2682 = vmatprep.subr.mxu0 0.0
        %2683 = vmatpush1.msra.mxu0 0.0
        %2684 = vmatprep.subr.mxu0 0.0
        %2685 = vmatpush1.msra.mxu0 0.0
        %2686 = vmatprep.subr.mxu0 0.0
        %2687 = vmatpush1.msra.mxu0 0.0
        %2688 = vmatprep.subr.mxu0 0.0
        %2689 = vmatpush1.msra.mxu0 0.0
        %2690 = vmatprep.subr.mxu0 0.0
        %2691 = vmatpush1.msra.mxu0 0.0
        %2692 = vmatprep.subr.mxu0 0.0
        %2693 = vmatpush1.msra.mxu0 0.0
        %2694 = vmatprep.subr.mxu0 0.0
        %2695 = vmatpush1.msra.mxu0 0.0
        %2696 = vmatprep.subr.mxu0 0.0
        %2697 = vmatpush1.msra.mxu0 0.0
        %2698 = vmatprep.subr.mxu0 0.0
        %2699 = vmatpush1.msra.mxu0 0.0
        %2700 = vmatprep.subr.mxu0 0.0
        %2701 = vmatpush1.msra.mxu0 0.0
        %2702 = vmatprep.subr.mxu0 0.0
        %2703 = vmatpush1.msra.mxu0 0.0
        %2704 = vmatprep.subr.mxu0 0.0
        %2705 = vmatpush1.msra.mxu0 0.0
        %2706 = vmatprep.subr.mxu0 0.0
        %2707 = vmatpush1.msra.mxu0 0.0
        %2708 = vmatprep.subr.mxu0 0.0
        %2709 = vmatpush1.msra.mxu0 0.0
        %2710 = vmatprep.subr.mxu0 0.0
        %2711 = vmatpush1.msra.mxu0 0.0
        %2712 = vmatprep.subr.mxu0 0.0
        %2713 = vmatpush1.msra.mxu0 0.0
        %2714 = vmatprep.subr.mxu0 0.0
        %2715 = vmatpush1.msra.mxu0 0.0
        %2716 = vmatprep.subr.mxu0 0.0
        %2717 = vmatpush1.msra.mxu0 0.0
        %2718 = vmatprep.subr.mxu0 0.0
        %2719 = vmatpush1.msra.mxu0 0.0
        %2720 = vmatprep.subr.mxu0 0.0
        %2721 = vmatpush1.msra.mxu0 0.0
        %2722 = vmatprep.subr.mxu0 0.0
        %2723 = vmatpush1.msra.mxu0 0.0
        %2724 = vmatprep.subr.mxu0 0.0
        %2725 = vmatpush1.msra.mxu0 0.0
        %2726 = vmatprep.mubr.f32.mxu0 0.0
        %2727 = vmatmul.mubr.f32.gmra.mrb[0].mxu0 %v2660
        %v2728 = vpop.f32.mrb[0].mxu0
        %v2729 = vadd.f32 0.0, %v2728
        %v2730 = vpop.f32.mrb[0].mxu0
        %v2731 = vadd.f32 0.0, %v2730
        %2732 = vdwg.mxu0
        %v2733 = vld [vmem:[%s13] sm:$0xff]
        %2735 = vset.pattern.permute.xlu0 0
        %2736 = vperm.xlu0 %2735, %v2733
        %v2737 = vpop.permute.xlu0 %2736
        %v2739 = vmul.f32 %v2729, %v2737
        %v2740 = vmul.f32 %v2731, %v2737
        %v2741 = vld [vmem:[%s14] sm:$0xff]
        %2743 = vset.pattern.permute.xlu0 0
        %2744 = vperm.xlu0 %2743, %v2741
        %v2745 = vpop.permute.xlu0 %2744
        %v2747 = vadd.f32 %v2739, %v2745
        %v2748 = vadd.f32 %v2740, %v2745
        %v2749 = vadd.f32 %v2747, %v551
        %v2750 = vadd.f32 %v2748, %v552
        %2751 = vst [vmem:[%s550] sm:$0xff] %v2749
        %2752 = vst [vmem:[%s550 + $0x8] sm:$0xff] %v2750
        %s2753 = sand.u32 %s362, 1
        %s2754 = scalar_lea.sflag [#allocation4], %s2753
        %s2755 = sand.u32 %s362, 1
        %s2756 = smul.addr %s2755, 16
        %s2757 = scalar_lea.vmem [#allocation10], %s2756
        // Predicated region
        $region97: #{tpu_custom_call.1} parent=79 // pred_check
          %p2758 = pneg %p372
        $region98: #{tpu_custom_call.1} parent=79 // pred_check_branch
          %2760 = sbr.rel (%p2758) target = $region100
        $region99: #{tpu_custom_call.1} parent=79 // pred_region
          %s2762 = ssub.s32 256, 256
          %2763 = vsyncadd %s2754, %s2762
          %s2764 = smul.addr %s34, 2
          %s2765 = smul.addr %s2764, 128
          %s2766 = scalar_lea.hbm %s15, %s2765
          %s2768 = sshll.u32 %s2757, 4
          %s2769 = int_to_ptr.vmem [resolvable:$true] %s2768
          %2771 = dma.vmem_to_hbm [thread:$0]  %s2769, 256, %s2766, %s2754
        $region100: #{tpu_custom_call.1} parent=79 // pred_fallthru
          _
      $region80: #{tpu_custom_call.1} parent=5 // pred_fallthru
        _
      %p2772 = scmp.le.s32.totalorder 2, %s29
      // Predicated region
      $region101: #{tpu_custom_call.1} parent=5 // pred_check
        %p2773 = pneg %p2772
      $region102: #{tpu_custom_call.1} parent=5 // pred_check_branch
        %2775 = sbr.rel (%p2773) target = $region104
      $region103: #{tpu_custom_call.1} parent=5 // pred_region
        %s2776 = ssub.s32 %s29, 2
        // Predicated region
        $region105: #{tpu_custom_call.1} parent=103 // pred_check
          %p2777 = pneg %p378
        $region106: #{tpu_custom_call.1} parent=103 // pred_check_branch
          %2779 = sbr.rel (%p2777) target = $region108
        $region107: #{tpu_custom_call.1} parent=103 // pred_region
          %s2780 = sand.u32 %s363, 1
          %s2781 = scalar_lea.sflag [#allocation4], %s2780
          %s2782 = sand.u32 %s363, 1
          %s2783 = smul.addr %s2782, 16
          %s2784 = scalar_lea.vmem [#allocation10], %s2783
          %2785 = dma.done %s2781, 256
        $region108: #{tpu_custom_call.1} parent=103 // pred_fallthru
          _
      $region104: #{tpu_custom_call.1} parent=5 // pred_fallthru
        _
    $region6: #{tpu_custom_call.1} parent=1 // loop_footer
      %s33 = sadd.s32 1, %s29
    $region7: #{tpu_custom_call.1} parent=1 // loop_footer_branch
      %28 = sbr.rel target = $region3
    $region8: #{tpu_custom_call.1} parent=1 // loop_exit
      _
    %2786 = vsyncpa [#allocation3], 1
    %s2787 = scalar_lea.sflag [#allocation3], 1
    %2788 = vsyncpa %s2787, 1
    %2789 = vsyncpa [#allocation6], 1
    %2790 = vsyncpa [#allocation9], 1
    %2791 = vsyncpa [#allocation4], 1
    %s2792 = scalar_lea.sflag [#allocation4], 1
    %2793 = vsyncpa %s2792, 1

</llo_original>
